<compile_context>
chip_gen: v5e
topology: v5e:2x2
jax: 0.10.0
libtpu: 0.0.40
codegen_flags: <defaults>
</compile_context>

<pallas_src>
import functools
import math

import jax
import jax.numpy as jnp
import numpy as np
from jax.experimental import pallas as pl
from jax.experimental.pallas import tpu as pltpu

NUM_HEADS = 4
E_PAD = 128                    # all channel dims run lane-dense at 128 inside the kernel
STAGE_E = (128, 64, 32)        # real embed dim per stage (PyTorch: 128, 64, 32)
STAGE_DIL = (1, 1, 4)
KSIZE = 3
LN_EPS = 1e-5
NEG_BIG = -1e30                # additive mask for cross-batch attention scores
SOFTMAX_APPROX_RECIP = True    # EUP reciprocal; set False for exact softmax division


# --------------------------------------------------------------------------- #
# Fused kernel body
# --------------------------------------------------------------------------- #
def _stage(x, conv_w, w_all, b_all, vecs, sel, amask, *, e_real):
    """One TCN block + MHA + residual + LayerNorm on a flattened (B_TILE*L, C) slab.

    x:      (nr_in, C_in)              activations (padded lanes, if any, exactly zero)
    conv_w: (K, C_in, 128)             conv taps; output lanes >= e_real are zero
    w_all:  (128, 256 + 128*H)         [Wq | Wk | Wv@Wo per head], zero in padding
    b_all:  (1, 256 + 128*H)           [bq | bk | zeros]
    vecs:   (5, 128)                   conv bias, attn bias (bo + bv@Wo), ln gamma, ln beta, lane mask
    sel:    (K, nr_out, nr_in)         block-diagonal 0/1 time-shift matrices (constant)
    amask:  (nr_out, nr_out)           0 on same-batch blocks, -1e30 elsewhere (constant)
    """
    K, _, E = conv_w.shape
    nr_out = sel.shape[1]
    wdt = conv_w.dtype

    # --- dilated conv + ReLU ------------------------------------------------ #
    # time shift as block-diagonal selection matmuls, ordered sel @ (x @ W_k) so the
    # intermediates are 128-lane dense (stage 1's x has only C_in=16 lanes).
    xl = x.astype(wdt)
    acc = jnp.zeros((nr_out, E), jnp.float32)
    for k in range(K):                                             # static K=3 loop
        xw = jnp.dot(xl, conv_w[k], preferred_element_type=jnp.float32)      # (nr_in, 128)
        acc = acc + jnp.dot(sel[k], xw, preferred_element_type=jnp.float32)  # (nr_out, 128)
    h = jnp.maximum(acc + vecs[0:1, :], 0.0)

    # --- single fused projection: [q | k | v@Wo per head] -------------------- #
    proj = jnp.dot(h.astype(wdt), w_all, preferred_element_type=jnp.float32) + b_all
    q = proj[:, 0:E]
    kk = proj[:, E:2 * E]

    # --- multi-head self-attention on the flattened batch axis --------------- #
    H = NUM_HEADS
    Dh = e_real // H
    scale = 1.0 / math.sqrt(Dh)
    attn = jnp.zeros((nr_out, E), jnp.float32) + vecs[1:2, :]      # bo + sum_h bv_h @ Wo_h
    for hh in range(H):                                            # static 4-iter loop
        qh = q[:, hh * Dh:(hh + 1) * Dh]
        kh = kk[:, hh * Dh:(hh + 1) * Dh]
        s = jax.lax.dot_general(qh, kh, (((1,), (1,)), ((), ())),
                                preferred_element_type=jnp.float32) * scale
        s = s + amask                                   # cross-batch entries -> -1e30
        s = s - jnp.max(s, axis=-1, keepdims=True)
        e = jnp.exp(s)                                  # masked entries underflow to 0
        denom = jnp.sum(e, axis=-1, keepdims=True)
        if SOFTMAX_APPROX_RECIP:
            p = e * pl.reciprocal(denom, approx=True)   # EUP slot
        else:
            p = e / denom
        vh = proj[:, 2 * E + hh * E: 2 * E + (hh + 1) * E]         # (nr_out, 128) lane-dense
        attn = attn + jnp.dot(p, vh, preferred_element_type=jnp.float32)

    # --- residual + LayerNorm over the e_real real lanes --------------------- #
    y = h + attn                                        # padded lanes of y are exactly zero
    inv_e = 1.0 / e_real
    mu = jnp.sum(y, axis=-1, keepdims=True) * inv_e
    diff = (y - mu) * vecs[4:5, :]                      # precomputed lane mask
    var = jnp.sum(diff * diff, axis=-1, keepdims=True) * inv_e
    return diff * jax.lax.rsqrt(var + LN_EPS) * vecs[2:3, :] + vecs[3:4, :]


def _fused_kernel(*refs, e_reals):
    x_ref = refs[0]
    out_ref = refs[-1]
    prm = refs[1:13]               # (conv_w, w_all, b_all, vecs) x 3 stages
    cst = refs[13:-1]              # (sel, amask) x 3 stages, then pool

    h = x_ref[...].astype(jnp.float32)                  # (B_TILE*L0, C_in)
    for si in range(3):
        conv_w, w_all, b_all, vecs = (r[...] for r in prm[4 * si:4 * si + 4])
        h = _stage(h, conv_w, w_all, b_all, vecs,
                   cst[2 * si][...], cst[2 * si + 1][...], e_real=e_reals[si])
    pool = cst[6][...]                                  # (B_TILE, B_TILE*L3), 1/L3 block rows
    out_ref[...] = jnp.dot(pool, h, preferred_element_type=jnp.float32).astype(out_ref.dtype)


# --------------------------------------------------------------------------- #
# Parameter packing (done once, outside the kernel)
# --------------------------------------------------------------------------- #
def _pad_last(a, target):
    d = target - a.shape[-1]
    if d == 0:
        return a
    return jnp.pad(a, [(0, 0)] * (a.ndim - 1) + [(0, d)])


def _pack_stage(conv_w, conv_b, mha, *, e_real, c_in_pad, dtype):
    K, c_in, _ = conv_w.shape
    cw = conv_w
    if c_in_pad > c_in:
        cw = jnp.pad(cw, ((0, 0), (0, c_in_pad - c_in), (0, 0)))
    cw = _pad_last(cw, E_PAD).astype(dtype)                        # (K, c_in_pad, 128)

    H, Dh = NUM_HEADS, e_real // NUM_HEADS

    def emb(w):                                                    # (e_real, e_real) -> (128, 128)
        return jnp.pad(w, ((0, E_PAD - e_real), (0, E_PAD - e_real)))

    blocks = [emb(mha["wq"]), emb(mha["wk"])]
    for h in range(H):                                             # pre-fuse Wv_h @ Wo_h (item 3a)
        blocks.append(emb(mha["wv"][:, h * Dh:(h + 1) * Dh] @ mha["wo"][h * Dh:(h + 1) * Dh, :]))
    w_all = jnp.concatenate(blocks, axis=1).astype(dtype)          # (128, 256 + 128*H)

    b_all = jnp.concatenate(
        [_pad_last(mha["bq"][None, :], E_PAD), _pad_last(mha["bk"][None, :], E_PAD),
         jnp.zeros((1, E_PAD * H), jnp.float32)], axis=1)          # (1, 256 + 128*H)

    attn_bias = mha["bo"] + mha["bv"] @ mha["wo"]                  # bo + sum_h bv_h @ Wo_h
    lane_mask = (jnp.arange(E_PAD) < e_real).astype(jnp.float32)   # LN lane mask (precomputed)
    vecs = jnp.stack([_pad_last(conv_b, E_PAD), _pad_last(attn_bias, E_PAD),
                      _pad_last(mha["ln_g"], E_PAD), _pad_last(mha["ln_b"], E_PAD),
                      lane_mask])                                  # (5, 128)
    return cw, w_all, b_all, vecs


def pack_params(params, in_channels, dtype=jnp.float32):
    """dtype=jnp.bfloat16 enables the bf16 MXU path (v6e/v7x) and halves weight VMEM;
    default f32 keeps numerics identical to the reference (2e-3 tolerance)."""
    s1 = _pack_stage(params["conv1_w"], params["conv1_b"], params["mha1"],
                     e_real=STAGE_E[0], c_in_pad=in_channels, dtype=dtype)
    s2 = _pack_stage(params["conv2_w"], params["conv2_b"], params["mha2"],
                     e_real=STAGE_E[1], c_in_pad=E_PAD, dtype=dtype)
    s3 = _pack_stage(params["conv3_w"], params["conv3_b"], params["mha3"],
                     e_real=STAGE_E[2], c_in_pad=E_PAD, dtype=dtype)
    return tuple(s1) + tuple(s2) + tuple(s3)


# --------------------------------------------------------------------------- #
# Host-built constants: time-shift matrices, attention block masks, pooling matrix
# --------------------------------------------------------------------------- #
def _build_consts(b_tile, l0):
    consts = []
    l_in = l0
    for si in range(3):
        dil = STAGE_DIL[si]
        pad = (KSIZE - 1) * dil
        l_out = l_in + pad                                # both-side padding, no chomp
        sel = np.zeros((KSIZE, b_tile * l_out, b_tile * l_in), np.float32)
        for k in range(KSIZE):
            for b in range(b_tile):
                for t_out in range(l_out):
                    t_in = t_out - pad + k * dil
                    if 0 <= t_in < l_in:
                        sel[k, b * l_out + t_out, b * l_in + t_in] = 1.0
        amask = np.full((b_tile * l_out, b_tile * l_out), NEG_BIG, np.float32)
        for b in range(b_tile):
            amask[b * l_out:(b + 1) * l_out, b * l_out:(b + 1) * l_out] = 0.0
        consts += [jnp.asarray(sel), jnp.asarray(amask)]
        l_in = l_out
    pool = np.zeros((b_tile, b_tile * l_in), np.float32)
    for b in range(b_tile):
        pool[b, b * l_in:(b + 1) * l_in] = 1.0 / l_in
    consts.append(jnp.asarray(pool))
    return consts


# --------------------------------------------------------------------------- #
# Wrapper: single fused pallas_call, batch-tiled grid
# --------------------------------------------------------------------------- #
def _const_spec(arr):
    zeros = (0,) * arr.ndim
    return pl.BlockSpec(arr.shape, lambda i, _z=zeros: _z)


def shared_tcn_attention(x, packed, *, b_tile=None):
    """x: (B, T, C_in) float32.  packed: tuple from pack_params().  Returns (B, 32)."""
    B, L0, C_in = x.shape
    if b_tile is None:
        # fatten matmul M (= b_tile*L) while keeping >= 2 grid steps whenever B >= 2,
        # so dimension_semantics=("parallel",) maps work onto both v7x TensorCores.
        b_tile = max(1, min(8, B // 2))
    num_blocks = int(pl.cdiv(B, b_tile))
    b_pad = num_blocks * b_tile
    if b_pad != B:
        x = jnp.pad(x, ((0, b_pad - B), (0, 0), (0, 0)))
    x_flat = x.reshape(num_blocks, b_tile * L0, C_in)      # flatten batch tile onto sublanes
    consts = _build_consts(b_tile, L0)

    kernel = functools.partial(_fused_kernel, e_reals=STAGE_E)
    in_specs = [pl.BlockSpec((None, b_tile * L0, C_in), lambda i: (i, 0, 0))]
    in_specs += [_const_spec(a) for a in packed]
    in_specs += [_const_spec(a) for a in consts]

    out = pl.pallas_call(
        kernel,
        out_shape=jax.ShapeDtypeStruct((num_blocks, b_tile, E_PAD), jnp.float32),
        grid=(num_blocks,),
        in_specs=in_specs,
        out_specs=pl.BlockSpec((None, b_tile, E_PAD), lambda i: (i, 0, 0)),
        compiler_params=pltpu.CompilerParams(dimension_semantics=("parallel",)),
    )(x_flat, *packed, *consts)
    return out.reshape(b_pad, E_PAD)[:B, :STAGE_E[-1]]


# --------------------------------------------------------------------------- #
# Parameter init (synthetic, deterministic; natural "PyTorch-like" layout)
# --------------------------------------------------------------------------- #
def init_params(key, in_channels):
    keys = iter(jax.random.split(key, 64))

    def nrm(shape, scale=0.05):
        return (scale * jax.random.normal(next(keys), shape)).astype(jnp.float32)

    def mha_params(E):
        return dict(
            wq=nrm((E, E)), wk=nrm((E, E)), wv=nrm((E, E)),
            bq=nrm((E,)), bk=nrm((E,)), bv=nrm((E,)),
            wo=nrm((E, E)), bo=nrm((E,)),
            ln_g=jnp.ones((E,), jnp.float32),
            ln_b=jnp.zeros((E,), jnp.float32),
        )

    return dict(
        conv1_w=nrm((KSIZE, in_channels, 128)), conv1_b=nrm((128,)), mha1=mha_params(128),
        conv2_w=nrm((KSIZE, 128, 64)), conv2_b=nrm((64,)), mha2=mha_params(64),
        conv3_w=nrm((KSIZE, 64, 32)), conv3_b=nrm((32,)), mha3=mha_params(32),
    )


# --------------------------------------------------------------------------- #
# Pure-JAX reference (for correctness check)
# --------------------------------------------------------------------------- #
def _ref_conv_relu(x, w, b, dilation):
    B, L_in, _ = x.shape
    K, _, C_out = w.shape
    pad = (K - 1) * dilation
    L_out = L_in + pad
    x_pad = jnp.pad(x, ((0, 0), (pad, pad), (0, 0)))
    acc = jnp.zeros((B, L_out, C_out), jnp.float32) + b
    for k in range(K):
        acc = acc + jnp.einsum('blc,cd->bld',
                               x_pad[:, k * dilation:k * dilation + L_out, :], w[k])
    return jnp.maximum(acc, 0.0)


def _ref_mha_ln(x, p, num_heads):
    B, L, E = x.shape
    Dh = E // num_heads
    q = x @ p["wq"] + p["bq"]
    k = x @ p["wk"] + p["bk"]
    v = x @ p["wv"] + p["bv"]
    sp = lambda t: t.reshape(B, L, num_heads, Dh).transpose(0, 2, 1, 3)
    s = jnp.einsum('bhqd,bhkd->bhqk', sp(q), sp(k)) / math.sqrt(Dh)
    pw = jax.nn.softmax(s, axis=-1)
    o = jnp.einsum('bhqk,bhkd->bhqd', pw, sp(v)).transpose(0, 2, 1, 3).reshape(B, L, E)
    y = x + (o @ p["wo"] + p["bo"])
    mu = y.mean(-1, keepdims=True)
    var = ((y - mu) ** 2).mean(-1, keepdims=True)
    return (y - mu) / jnp.sqrt(var + LN_EPS) * p["ln_g"] + p["ln_b"]


def _ref_forward(x, params):
    h = _ref_conv_relu(x, params["conv1_w"], params["conv1_b"], STAGE_DIL[0])
    h = _ref_mha_ln(h, params["mha1"], NUM_HEADS)
    h = _ref_conv_relu(h, params["conv2_w"], params["conv2_b"], STAGE_DIL[1])
    h = _ref_mha_ln(h, params["mha2"], NUM_HEADS)
    h = _ref_conv_relu(h, params["conv3_w"], params["conv3_b"], STAGE_DIL[2])
    h = _ref_mha_ln(h, params["mha3"], NUM_HEADS)
    return h.mean(axis=1)


if __name__ == "__main__":
    B, T, C_in = 2, 8, 16
    key = jax.random.PRNGKey(0)
    k_x, k_p = jax.random.split(key)
    x = jax.random.normal(k_x, (B, T, C_in), dtype=jnp.float32)
    params = init_params(k_p, C_in)
    packed = pack_params(params, C_in)          # f32; pass dtype=jnp.bfloat16 on v6e/v7x

    out = jax.block_until_ready(shared_tcn_attention(x, packed))
    ref = jax.block_until_ready(_ref_forward(x, params))

    assert out.shape == (B, STAGE_E[-1]), out.shape
    np.testing.assert_allclose(np.asarray(out), np.asarray(ref), atol=2e-3, rtol=2e-3)
    print("KERNEL_OK")
</pallas_src>

<mosaic_0001>
module attributes {stable_mosaic.version = 11 : i64} {
  func.func @_fused_kernel(%arg0: i32, %arg1: memref<1x8x16xf32, #tpu.memory_space<vmem>>, %arg2: memref<3x16x128xf32, #tpu.memory_space<vmem>>, %arg3: memref<128x768xf32, #tpu.memory_space<vmem>>, %arg4: memref<1x768xf32, #tpu.memory_space<vmem>>, %arg5: memref<5x128xf32, #tpu.memory_space<vmem>>, %arg6: memref<3x128x128xf32, #tpu.memory_space<vmem>>, %arg7: memref<128x768xf32, #tpu.memory_space<vmem>>, %arg8: memref<1x768xf32, #tpu.memory_space<vmem>>, %arg9: memref<5x128xf32, #tpu.memory_space<vmem>>, %arg10: memref<3x128x128xf32, #tpu.memory_space<vmem>>, %arg11: memref<128x768xf32, #tpu.memory_space<vmem>>, %arg12: memref<1x768xf32, #tpu.memory_space<vmem>>, %arg13: memref<5x128xf32, #tpu.memory_space<vmem>>, %arg14: memref<3x10x8xf32, #tpu.memory_space<vmem>>, %arg15: memref<10x10xf32, #tpu.memory_space<vmem>>, %arg16: memref<3x12x10xf32, #tpu.memory_space<vmem>>, %arg17: memref<12x12xf32, #tpu.memory_space<vmem>>, %arg18: memref<3x20x12xf32, #tpu.memory_space<vmem>>, %arg19: memref<20x20xf32, #tpu.memory_space<vmem>>, %arg20: memref<1x20xf32, #tpu.memory_space<vmem>>, %arg21: memref<1x1x128xf32, #tpu.memory_space<vmem>>) attributes {dimension_semantics = [#tpu.dimension_semantics<parallel>], iteration_bounds = array<i64: 2>, scalar_prefetch = 0 : i64, scratch_operands = 0 : i64, tpu.core_type = #tpu.core_type<tc>, window_params = [{transform_indices = @transform_0, window_bounds = array<i64: 1, 8, 16>}, {pipeline_mode = #tpu.pipeline_mode<synchronous>, transform_indices = @transform_1, window_bounds = array<i64: 3, 16, 128>}, {pipeline_mode = #tpu.pipeline_mode<synchronous>, transform_indices = @transform_2, window_bounds = array<i64: 128, 768>}, {pipeline_mode = #tpu.pipeline_mode<synchronous>, transform_indices = @transform_3, window_bounds = array<i64: 1, 768>}, {pipeline_mode = #tpu.pipeline_mode<synchronous>, transform_indices = @transform_4, window_bounds = array<i64: 5, 128>}, {pipeline_mode = #tpu.pipeline_mode<synchronous>, transform_indices = @transform_5, window_bounds = array<i64: 3, 128, 128>}, {pipeline_mode = #tpu.pipeline_mode<synchronous>, transform_indices = @transform_6, window_bounds = array<i64: 128, 768>}, {pipeline_mode = #tpu.pipeline_mode<synchronous>, transform_indices = @transform_7, window_bounds = array<i64: 1, 768>}, {pipeline_mode = #tpu.pipeline_mode<synchronous>, transform_indices = @transform_8, window_bounds = array<i64: 5, 128>}, {pipeline_mode = #tpu.pipeline_mode<synchronous>, transform_indices = @transform_9, window_bounds = array<i64: 3, 128, 128>}, {pipeline_mode = #tpu.pipeline_mode<synchronous>, transform_indices = @transform_10, window_bounds = array<i64: 128, 768>}, {pipeline_mode = #tpu.pipeline_mode<synchronous>, transform_indices = @transform_11, window_bounds = array<i64: 1, 768>}, {pipeline_mode = #tpu.pipeline_mode<synchronous>, transform_indices = @transform_12, window_bounds = array<i64: 5, 128>}, {pipeline_mode = #tpu.pipeline_mode<synchronous>, transform_indices = @transform_13, window_bounds = array<i64: 3, 10, 8>}, {pipeline_mode = #tpu.pipeline_mode<synchronous>, transform_indices = @transform_14, window_bounds = array<i64: 10, 10>}, {pipeline_mode = #tpu.pipeline_mode<synchronous>, transform_indices = @transform_15, window_bounds = array<i64: 3, 12, 10>}, {pipeline_mode = #tpu.pipeline_mode<synchronous>, transform_indices = @transform_16, window_bounds = array<i64: 12, 12>}, {pipeline_mode = #tpu.pipeline_mode<synchronous>, transform_indices = @transform_17, window_bounds = array<i64: 3, 20, 12>}, {pipeline_mode = #tpu.pipeline_mode<synchronous>, transform_indices = @transform_18, window_bounds = array<i64: 20, 20>}, {pipeline_mode = #tpu.pipeline_mode<synchronous>, transform_indices = @transform_19, window_bounds = array<i64: 1, 20>}, {transform_indices = @transform_20, window_bounds = array<i64: 1, 1, 128>}]} {
    %c0 = arith.constant 0 : index
    %c0_0 = arith.constant 0 : index
    %c0_1 = arith.constant 0 : index
    %0 = vector.load %arg1[%c0, %c0_0, %c0_1] : memref<1x8x16xf32, #tpu.memory_space<vmem>>, vector<1x8x16xf32>
    %1 = vector.shape_cast %0 : vector<1x8x16xf32> to vector<8x16xf32>
    %c0_2 = arith.constant 0 : index
    %c0_3 = arith.constant 0 : index
    %c0_4 = arith.constant 0 : index
    %2 = vector.load %arg2[%c0_2, %c0_3, %c0_4] : memref<3x16x128xf32, #tpu.memory_space<vmem>>, vector<3x16x128xf32>
    %c0_5 = arith.constant 0 : index
    %c0_6 = arith.constant 0 : index
    %3 = vector.load %arg3[%c0_5, %c0_6] : memref<128x768xf32, #tpu.memory_space<vmem>>, vector<128x768xf32>
    %c0_7 = arith.constant 0 : index
    %c0_8 = arith.constant 0 : index
    %4 = vector.load %arg4[%c0_7, %c0_8] : memref<1x768xf32, #tpu.memory_space<vmem>>, vector<1x768xf32>
    %c0_9 = arith.constant 0 : index
    %c0_10 = arith.constant 0 : index
    %5 = vector.load %arg5[%c0_9, %c0_10] : memref<5x128xf32, #tpu.memory_space<vmem>>, vector<5x128xf32>
    %c0_11 = arith.constant 0 : index
    %c0_12 = arith.constant 0 : index
    %c0_13 = arith.constant 0 : index
    %6 = vector.load %arg14[%c0_11, %c0_12, %c0_13] : memref<3x10x8xf32, #tpu.memory_space<vmem>>, vector<3x10x8xf32>
    %c0_14 = arith.constant 0 : index
    %c0_15 = arith.constant 0 : index
    %7 = vector.load %arg15[%c0_14, %c0_15] : memref<10x10xf32, #tpu.memory_space<vmem>>, vector<10x10xf32>
    %cst = arith.constant 0.000000e+00 : f32
    %8 = vector.broadcast %cst : f32 to vector<10x128xf32>
    %9 = vector.extract_strided_slice %2 {offsets = [0, 0, 0], sizes = [1, 16, 128], strides = [1, 1, 1]} : vector<3x16x128xf32> to vector<1x16x128xf32>
    %10 = vector.shape_cast %9 : vector<1x16x128xf32> to vector<16x128xf32>
    %cst_16 = arith.constant dense<0.000000e+00> : vector<8x128xf32>
    %11 = tpu.matmul %1, %10, %cst_16 {dimension_numbers = #tpu.dot_dimension_numbers<[1], [0], [0], [1], [0, 0, 1, 1], [], []>} : vector<8x16xf32>, vector<16x128xf32>, vector<8x128xf32> -> vector<8x128xf32>
    %12 = vector.extract_strided_slice %6 {offsets = [0, 0, 0], sizes = [1, 10, 8], strides = [1, 1, 1]} : vector<3x10x8xf32> to vector<1x10x8xf32>
    %13 = vector.shape_cast %12 : vector<1x10x8xf32> to vector<10x8xf32>
    %cst_17 = arith.constant dense<0.000000e+00> : vector<10x128xf32>
    %14 = tpu.matmul %13, %11, %cst_17 {dimension_numbers = #tpu.dot_dimension_numbers<[1], [0], [0], [1], [0, 0, 1, 1], [], []>} : vector<10x8xf32>, vector<8x128xf32>, vector<10x128xf32> -> vector<10x128xf32>
    %15 = arith.addf %8, %14 : vector<10x128xf32>
    %16 = vector.extract_strided_slice %2 {offsets = [1, 0, 0], sizes = [1, 16, 128], strides = [1, 1, 1]} : vector<3x16x128xf32> to vector<1x16x128xf32>
    %17 = vector.shape_cast %16 : vector<1x16x128xf32> to vector<16x128xf32>
    %cst_18 = arith.constant dense<0.000000e+00> : vector<8x128xf32>
    %18 = tpu.matmul %1, %17, %cst_18 {dimension_numbers = #tpu.dot_dimension_numbers<[1], [0], [0], [1], [0, 0, 1, 1], [], []>} : vector<8x16xf32>, vector<16x128xf32>, vector<8x128xf32> -> vector<8x128xf32>
    %19 = vector.extract_strided_slice %6 {offsets = [1, 0, 0], sizes = [1, 10, 8], strides = [1, 1, 1]} : vector<3x10x8xf32> to vector<1x10x8xf32>
    %20 = vector.shape_cast %19 : vector<1x10x8xf32> to vector<10x8xf32>
    %cst_19 = arith.constant dense<0.000000e+00> : vector<10x128xf32>
    %21 = tpu.matmul %20, %18, %cst_19 {dimension_numbers = #tpu.dot_dimension_numbers<[1], [0], [0], [1], [0, 0, 1, 1], [], []>} : vector<10x8xf32>, vector<8x128xf32>, vector<10x128xf32> -> vector<10x128xf32>
    %22 = arith.addf %15, %21 : vector<10x128xf32>
    %23 = vector.extract_strided_slice %2 {offsets = [2, 0, 0], sizes = [1, 16, 128], strides = [1, 1, 1]} : vector<3x16x128xf32> to vector<1x16x128xf32>
    %24 = vector.shape_cast %23 : vector<1x16x128xf32> to vector<16x128xf32>
    %cst_20 = arith.constant dense<0.000000e+00> : vector<8x128xf32>
    %25 = tpu.matmul %1, %24, %cst_20 {dimension_numbers = #tpu.dot_dimension_numbers<[1], [0], [0], [1], [0, 0, 1, 1], [], []>} : vector<8x16xf32>, vector<16x128xf32>, vector<8x128xf32> -> vector<8x128xf32>
    %26 = vector.extract_strided_slice %6 {offsets = [2, 0, 0], sizes = [1, 10, 8], strides = [1, 1, 1]} : vector<3x10x8xf32> to vector<1x10x8xf32>
    %27 = vector.shape_cast %26 : vector<1x10x8xf32> to vector<10x8xf32>
    %cst_21 = arith.constant dense<0.000000e+00> : vector<10x128xf32>
    %28 = tpu.matmul %27, %25, %cst_21 {dimension_numbers = #tpu.dot_dimension_numbers<[1], [0], [0], [1], [0, 0, 1, 1], [], []>} : vector<10x8xf32>, vector<8x128xf32>, vector<10x128xf32> -> vector<10x128xf32>
    %29 = arith.addf %22, %28 : vector<10x128xf32>
    %30 = vector.extract_strided_slice %5 {offsets = [0, 0], sizes = [1, 128], strides = [1, 1]} : vector<5x128xf32> to vector<1x128xf32>
    %31 = vector.broadcast %30 : vector<1x128xf32> to vector<10x128xf32>
    %32 = arith.addf %29, %31 : vector<10x128xf32>
    %cst_22 = arith.constant 0.000000e+00 : f32
    %33 = vector.broadcast %cst_22 : f32 to vector<10x128xf32>
    %34 = arith.maximumf %32, %33 : vector<10x128xf32>
    %cst_23 = arith.constant dense<0.000000e+00> : vector<10x768xf32>
    %35 = tpu.matmul %34, %3, %cst_23 {dimension_numbers = #tpu.dot_dimension_numbers<[1], [0], [0], [1], [0, 0, 1, 1], [], []>} : vector<10x128xf32>, vector<128x768xf32>, vector<10x768xf32> -> vector<10x768xf32>
    %36 = vector.broadcast %4 : vector<1x768xf32> to vector<10x768xf32>
    %37 = arith.addf %35, %36 : vector<10x768xf32>
    %38 = vector.extract_strided_slice %37 {offsets = [0, 0], sizes = [10, 128], strides = [1, 1]} : vector<10x768xf32> to vector<10x128xf32>
    %39 = vector.extract_strided_slice %37 {offsets = [0, 128], sizes = [10, 128], strides = [1, 1]} : vector<10x768xf32> to vector<10x128xf32>
    %cst_24 = arith.constant 0.000000e+00 : f32
    %40 = vector.broadcast %cst_24 : f32 to vector<10x128xf32>
    %41 = vector.extract_strided_slice %5 {offsets = [1, 0], sizes = [1, 128], strides = [1, 1]} : vector<5x128xf32> to vector<1x128xf32>
    %42 = vector.broadcast %41 : vector<1x128xf32> to vector<10x128xf32>
    %43 = arith.addf %40, %42 : vector<10x128xf32>
    %44 = vector.extract_strided_slice %38 {offsets = [0, 0], sizes = [10, 32], strides = [1, 1]} : vector<10x128xf32> to vector<10x32xf32>
    %45 = vector.extract_strided_slice %39 {offsets = [0, 0], sizes = [10, 32], strides = [1, 1]} : vector<10x128xf32> to vector<10x32xf32>
    %cst_25 = arith.constant dense<0.000000e+00> : vector<10x10xf32>
    %46 = tpu.matmul %44, %45, %cst_25 {dimension_numbers = #tpu.dot_dimension_numbers<[1], [1], [0], [0], [0, 0, 1, 0], [], []>} : vector<10x32xf32>, vector<10x32xf32>, vector<10x10xf32> -> vector<10x10xf32>
    %cst_26 = arith.constant 0.176776692 : f32
    %47 = vector.broadcast %cst_26 : f32 to vector<10x10xf32>
    %48 = arith.mulf %46, %47 : vector<10x10xf32>
    %49 = arith.addf %48, %7 : vector<10x10xf32>
    %cst_27 = arith.constant dense<0xFF800000> : vector<10xf32>
    %50 = vector.multi_reduction <maximumf>, %49, %cst_27 [1] : vector<10x10xf32> to vector<10xf32>
    %51 = vector.shape_cast %50 : vector<10xf32> to vector<10x1xf32>
    %52 = vector.broadcast %51 : vector<10x1xf32> to vector<10x10xf32>
    %53 = arith.subf %49, %52 : vector<10x10xf32>
    %54 = math.exp %53 : vector<10x10xf32>
    %cst_28 = arith.constant dense<0.000000e+00> : vector<10xf32>
    %55 = vector.multi_reduction <add>, %54, %cst_28 [1] : vector<10x10xf32> to vector<10xf32>
    %56 = vector.shape_cast %55 : vector<10xf32> to vector<10x1xf32>
    %57 = tpu.reciprocal %56 {approx = true} : vector<10x1xf32> -> vector<10x1xf32>
    %58 = vector.broadcast %57 : vector<10x1xf32> to vector<10x10xf32>
    %59 = arith.mulf %54, %58 : vector<10x10xf32>
    %60 = vector.extract_strided_slice %37 {offsets = [0, 256], sizes = [10, 128], strides = [1, 1]} : vector<10x768xf32> to vector<10x128xf32>
    %cst_29 = arith.constant dense<0.000000e+00> : vector<10x128xf32>
    %61 = tpu.matmul %59, %60, %cst_29 {dimension_numbers = #tpu.dot_dimension_numbers<[1], [0], [0], [1], [0, 0, 1, 1], [], []>} : vector<10x10xf32>, vector<10x128xf32>, vector<10x128xf32> -> vector<10x128xf32>
    %62 = arith.addf %43, %61 : vector<10x128xf32>
    %63 = vector.extract_strided_slice %38 {offsets = [0, 32], sizes = [10, 32], strides = [1, 1]} : vector<10x128xf32> to vector<10x32xf32>
    %64 = vector.extract_strided_slice %39 {offsets = [0, 32], sizes = [10, 32], strides = [1, 1]} : vector<10x128xf32> to vector<10x32xf32>
    %cst_30 = arith.constant dense<0.000000e+00> : vector<10x10xf32>
    %65 = tpu.matmul %63, %64, %cst_30 {dimension_numbers = #tpu.dot_dimension_numbers<[1], [1], [0], [0], [0, 0, 1, 0], [], []>} : vector<10x32xf32>, vector<10x32xf32>, vector<10x10xf32> -> vector<10x10xf32>
    %cst_31 = arith.constant 0.176776692 : f32
    %66 = vector.broadcast %cst_31 : f32 to vector<10x10xf32>
    %67 = arith.mulf %65, %66 : vector<10x10xf32>
    %68 = arith.addf %67, %7 : vector<10x10xf32>
    %cst_32 = arith.constant dense<0xFF800000> : vector<10xf32>
    %69 = vector.multi_reduction <maximumf>, %68, %cst_32 [1] : vector<10x10xf32> to vector<10xf32>
    %70 = vector.shape_cast %69 : vector<10xf32> to vector<10x1xf32>
    %71 = vector.broadcast %70 : vector<10x1xf32> to vector<10x10xf32>
    %72 = arith.subf %68, %71 : vector<10x10xf32>
    %73 = math.exp %72 : vector<10x10xf32>
    %cst_33 = arith.constant dense<0.000000e+00> : vector<10xf32>
    %74 = vector.multi_reduction <add>, %73, %cst_33 [1] : vector<10x10xf32> to vector<10xf32>
    %75 = vector.shape_cast %74 : vector<10xf32> to vector<10x1xf32>
    %76 = tpu.reciprocal %75 {approx = true} : vector<10x1xf32> -> vector<10x1xf32>
    %77 = vector.broadcast %76 : vector<10x1xf32> to vector<10x10xf32>
    %78 = arith.mulf %73, %77 : vector<10x10xf32>
    %79 = vector.extract_strided_slice %37 {offsets = [0, 384], sizes = [10, 128], strides = [1, 1]} : vector<10x768xf32> to vector<10x128xf32>
    %cst_34 = arith.constant dense<0.000000e+00> : vector<10x128xf32>
    %80 = tpu.matmul %78, %79, %cst_34 {dimension_numbers = #tpu.dot_dimension_numbers<[1], [0], [0], [1], [0, 0, 1, 1], [], []>} : vector<10x10xf32>, vector<10x128xf32>, vector<10x128xf32> -> vector<10x128xf32>
    %81 = arith.addf %62, %80 : vector<10x128xf32>
    %82 = vector.extract_strided_slice %38 {offsets = [0, 64], sizes = [10, 32], strides = [1, 1]} : vector<10x128xf32> to vector<10x32xf32>
    %83 = vector.extract_strided_slice %39 {offsets = [0, 64], sizes = [10, 32], strides = [1, 1]} : vector<10x128xf32> to vector<10x32xf32>
    %cst_35 = arith.constant dense<0.000000e+00> : vector<10x10xf32>
    %84 = tpu.matmul %82, %83, %cst_35 {dimension_numbers = #tpu.dot_dimension_numbers<[1], [1], [0], [0], [0, 0, 1, 0], [], []>} : vector<10x32xf32>, vector<10x32xf32>, vector<10x10xf32> -> vector<10x10xf32>
    %cst_36 = arith.constant 0.176776692 : f32
    %85 = vector.broadcast %cst_36 : f32 to vector<10x10xf32>
    %86 = arith.mulf %84, %85 : vector<10x10xf32>
    %87 = arith.addf %86, %7 : vector<10x10xf32>
    %cst_37 = arith.constant dense<0xFF800000> : vector<10xf32>
    %88 = vector.multi_reduction <maximumf>, %87, %cst_37 [1] : vector<10x10xf32> to vector<10xf32>
    %89 = vector.shape_cast %88 : vector<10xf32> to vector<10x1xf32>
    %90 = vector.broadcast %89 : vector<10x1xf32> to vector<10x10xf32>
    %91 = arith.subf %87, %90 : vector<10x10xf32>
    %92 = math.exp %91 : vector<10x10xf32>
    %cst_38 = arith.constant dense<0.000000e+00> : vector<10xf32>
    %93 = vector.multi_reduction <add>, %92, %cst_38 [1] : vector<10x10xf32> to vector<10xf32>
    %94 = vector.shape_cast %93 : vector<10xf32> to vector<10x1xf32>
    %95 = tpu.reciprocal %94 {approx = true} : vector<10x1xf32> -> vector<10x1xf32>
    %96 = vector.broadcast %95 : vector<10x1xf32> to vector<10x10xf32>
    %97 = arith.mulf %92, %96 : vector<10x10xf32>
    %98 = vector.extract_strided_slice %37 {offsets = [0, 512], sizes = [10, 128], strides = [1, 1]} : vector<10x768xf32> to vector<10x128xf32>
    %cst_39 = arith.constant dense<0.000000e+00> : vector<10x128xf32>
    %99 = tpu.matmul %97, %98, %cst_39 {dimension_numbers = #tpu.dot_dimension_numbers<[1], [0], [0], [1], [0, 0, 1, 1], [], []>} : vector<10x10xf32>, vector<10x128xf32>, vector<10x128xf32> -> vector<10x128xf32>
    %100 = arith.addf %81, %99 : vector<10x128xf32>
    %101 = vector.extract_strided_slice %38 {offsets = [0, 96], sizes = [10, 32], strides = [1, 1]} : vector<10x128xf32> to vector<10x32xf32>
    %102 = vector.extract_strided_slice %39 {offsets = [0, 96], sizes = [10, 32], strides = [1, 1]} : vector<10x128xf32> to vector<10x32xf32>
    %cst_40 = arith.constant dense<0.000000e+00> : vector<10x10xf32>
    %103 = tpu.matmul %101, %102, %cst_40 {dimension_numbers = #tpu.dot_dimension_numbers<[1], [1], [0], [0], [0, 0, 1, 0], [], []>} : vector<10x32xf32>, vector<10x32xf32>, vector<10x10xf32> -> vector<10x10xf32>
    %cst_41 = arith.constant 0.176776692 : f32
    %104 = vector.broadcast %cst_41 : f32 to vector<10x10xf32>
    %105 = arith.mulf %103, %104 : vector<10x10xf32>
    %106 = arith.addf %105, %7 : vector<10x10xf32>
    %cst_42 = arith.constant dense<0xFF800000> : vector<10xf32>
    %107 = vector.multi_reduction <maximumf>, %106, %cst_42 [1] : vector<10x10xf32> to vector<10xf32>
    %108 = vector.shape_cast %107 : vector<10xf32> to vector<10x1xf32>
    %109 = vector.broadcast %108 : vector<10x1xf32> to vector<10x10xf32>
    %110 = arith.subf %106, %109 : vector<10x10xf32>
    %111 = math.exp %110 : vector<10x10xf32>
    %cst_43 = arith.constant dense<0.000000e+00> : vector<10xf32>
    %112 = vector.multi_reduction <add>, %111, %cst_43 [1] : vector<10x10xf32> to vector<10xf32>
    %113 = vector.shape_cast %112 : vector<10xf32> to vector<10x1xf32>
    %114 = tpu.reciprocal %113 {approx = true} : vector<10x1xf32> -> vector<10x1xf32>
    %115 = vector.broadcast %114 : vector<10x1xf32> to vector<10x10xf32>
    %116 = arith.mulf %111, %115 : vector<10x10xf32>
    %117 = vector.extract_strided_slice %37 {offsets = [0, 640], sizes = [10, 128], strides = [1, 1]} : vector<10x768xf32> to vector<10x128xf32>
    %cst_44 = arith.constant dense<0.000000e+00> : vector<10x128xf32>
    %118 = tpu.matmul %116, %117, %cst_44 {dimension_numbers = #tpu.dot_dimension_numbers<[1], [0], [0], [1], [0, 0, 1, 1], [], []>} : vector<10x10xf32>, vector<10x128xf32>, vector<10x128xf32> -> vector<10x128xf32>
    %119 = arith.addf %100, %118 : vector<10x128xf32>
    %120 = arith.addf %34, %119 : vector<10x128xf32>
    %cst_45 = arith.constant dense<0.000000e+00> : vector<10xf32>
    %121 = vector.multi_reduction <add>, %120, %cst_45 [1] : vector<10x128xf32> to vector<10xf32>
    %122 = vector.shape_cast %121 : vector<10xf32> to vector<10x1xf32>
    %cst_46 = arith.constant 7.812500e-03 : f32
    %123 = vector.broadcast %cst_46 : f32 to vector<10x1xf32>
    %124 = arith.mulf %122, %123 : vector<10x1xf32>
    %125 = vector.broadcast %124 : vector<10x1xf32> to vector<10x128xf32>
    %126 = arith.subf %120, %125 : vector<10x128xf32>
    %127 = vector.extract_strided_slice %5 {offsets = [4, 0], sizes = [1, 128], strides = [1, 1]} : vector<5x128xf32> to vector<1x128xf32>
    %128 = vector.broadcast %127 : vector<1x128xf32> to vector<10x128xf32>
    %129 = arith.mulf %126, %128 : vector<10x128xf32>
    %130 = arith.mulf %129, %129 : vector<10x128xf32>
    %cst_47 = arith.constant dense<0.000000e+00> : vector<10xf32>
    %131 = vector.multi_reduction <add>, %130, %cst_47 [1] : vector<10x128xf32> to vector<10xf32>
    %132 = vector.shape_cast %131 : vector<10xf32> to vector<10x1xf32>
    %cst_48 = arith.constant 7.812500e-03 : f32
    %133 = vector.broadcast %cst_48 : f32 to vector<10x1xf32>
    %134 = arith.mulf %132, %133 : vector<10x1xf32>
    %cst_49 = arith.constant 9.99999974E-6 : f32
    %135 = vector.broadcast %cst_49 : f32 to vector<10x1xf32>
    %136 = arith.addf %134, %135 : vector<10x1xf32>
    %137 = math.rsqrt %136 : vector<10x1xf32>
    %138 = vector.broadcast %137 : vector<10x1xf32> to vector<10x128xf32>
    %139 = arith.mulf %129, %138 : vector<10x128xf32>
    %140 = vector.extract_strided_slice %5 {offsets = [2, 0], sizes = [1, 128], strides = [1, 1]} : vector<5x128xf32> to vector<1x128xf32>
    %141 = vector.broadcast %140 : vector<1x128xf32> to vector<10x128xf32>
    %142 = arith.mulf %139, %141 : vector<10x128xf32>
    %143 = vector.extract_strided_slice %5 {offsets = [3, 0], sizes = [1, 128], strides = [1, 1]} : vector<5x128xf32> to vector<1x128xf32>
    %144 = vector.broadcast %143 : vector<1x128xf32> to vector<10x128xf32>
    %145 = arith.addf %142, %144 : vector<10x128xf32>
    %c0_50 = arith.constant 0 : index
    %c0_51 = arith.constant 0 : index
    %c0_52 = arith.constant 0 : index
    %146 = vector.load %arg6[%c0_50, %c0_51, %c0_52] : memref<3x128x128xf32, #tpu.memory_space<vmem>>, vector<3x128x128xf32>
    %c0_53 = arith.constant 0 : index
    %c0_54 = arith.constant 0 : index
    %147 = vector.load %arg7[%c0_53, %c0_54] : memref<128x768xf32, #tpu.memory_space<vmem>>, vector<128x768xf32>
    %c0_55 = arith.constant 0 : index
    %c0_56 = arith.constant 0 : index
    %148 = vector.load %arg8[%c0_55, %c0_56] : memref<1x768xf32, #tpu.memory_space<vmem>>, vector<1x768xf32>
    %c0_57 = arith.constant 0 : index
    %c0_58 = arith.constant 0 : index
    %149 = vector.load %arg9[%c0_57, %c0_58] : memref<5x128xf32, #tpu.memory_space<vmem>>, vector<5x128xf32>
    %c0_59 = arith.constant 0 : index
    %c0_60 = arith.constant 0 : index
    %c0_61 = arith.constant 0 : index
    %150 = vector.load %arg16[%c0_59, %c0_60, %c0_61] : memref<3x12x10xf32, #tpu.memory_space<vmem>>, vector<3x12x10xf32>
    %c0_62 = arith.constant 0 : index
    %c0_63 = arith.constant 0 : index
    %151 = vector.load %arg17[%c0_62, %c0_63] : memref<12x12xf32, #tpu.memory_space<vmem>>, vector<12x12xf32>
    %cst_64 = arith.constant 0.000000e+00 : f32
    %152 = vector.broadcast %cst_64 : f32 to vector<12x128xf32>
    %153 = vector.extract_strided_slice %146 {offsets = [0, 0, 0], sizes = [1, 128, 128], strides = [1, 1, 1]} : vector<3x128x128xf32> to vector<1x128x128xf32>
    %154 = vector.shape_cast %153 : vector<1x128x128xf32> to vector<128x128xf32>
    %cst_65 = arith.constant dense<0.000000e+00> : vector<10x128xf32>
    %155 = tpu.matmul %145, %154, %cst_65 {dimension_numbers = #tpu.dot_dimension_numbers<[1], [0], [0], [1], [0, 0, 1, 1], [], []>} : vector<10x128xf32>, vector<128x128xf32>, vector<10x128xf32> -> vector<10x128xf32>
    %156 = vector.extract_strided_slice %150 {offsets = [0, 0, 0], sizes = [1, 12, 10], strides = [1, 1, 1]} : vector<3x12x10xf32> to vector<1x12x10xf32>
    %157 = vector.shape_cast %156 : vector<1x12x10xf32> to vector<12x10xf32>
    %cst_66 = arith.constant dense<0.000000e+00> : vector<12x128xf32>
    %158 = tpu.matmul %157, %155, %cst_66 {dimension_numbers = #tpu.dot_dimension_numbers<[1], [0], [0], [1], [0, 0, 1, 1], [], []>} : vector<12x10xf32>, vector<10x128xf32>, vector<12x128xf32> -> vector<12x128xf32>
    %159 = arith.addf %152, %158 : vector<12x128xf32>
    %160 = vector.extract_strided_slice %146 {offsets = [1, 0, 0], sizes = [1, 128, 128], strides = [1, 1, 1]} : vector<3x128x128xf32> to vector<1x128x128xf32>
    %161 = vector.shape_cast %160 : vector<1x128x128xf32> to vector<128x128xf32>
    %cst_67 = arith.constant dense<0.000000e+00> : vector<10x128xf32>
    %162 = tpu.matmul %145, %161, %cst_67 {dimension_numbers = #tpu.dot_dimension_numbers<[1], [0], [0], [1], [0, 0, 1, 1], [], []>} : vector<10x128xf32>, vector<128x128xf32>, vector<10x128xf32> -> vector<10x128xf32>
    %163 = vector.extract_strided_slice %150 {offsets = [1, 0, 0], sizes = [1, 12, 10], strides = [1, 1, 1]} : vector<3x12x10xf32> to vector<1x12x10xf32>
    %164 = vector.shape_cast %163 : vector<1x12x10xf32> to vector<12x10xf32>
    %cst_68 = arith.constant dense<0.000000e+00> : vector<12x128xf32>
    %165 = tpu.matmul %164, %162, %cst_68 {dimension_numbers = #tpu.dot_dimension_numbers<[1], [0], [0], [1], [0, 0, 1, 1], [], []>} : vector<12x10xf32>, vector<10x128xf32>, vector<12x128xf32> -> vector<12x128xf32>
    %166 = arith.addf %159, %165 : vector<12x128xf32>
    %167 = vector.extract_strided_slice %146 {offsets = [2, 0, 0], sizes = [1, 128, 128], strides = [1, 1, 1]} : vector<3x128x128xf32> to vector<1x128x128xf32>
    %168 = vector.shape_cast %167 : vector<1x128x128xf32> to vector<128x128xf32>
    %cst_69 = arith.constant dense<0.000000e+00> : vector<10x128xf32>
    %169 = tpu.matmul %145, %168, %cst_69 {dimension_numbers = #tpu.dot_dimension_numbers<[1], [0], [0], [1], [0, 0, 1, 1], [], []>} : vector<10x128xf32>, vector<128x128xf32>, vector<10x128xf32> -> vector<10x128xf32>
    %170 = vector.extract_strided_slice %150 {offsets = [2, 0, 0], sizes = [1, 12, 10], strides = [1, 1, 1]} : vector<3x12x10xf32> to vector<1x12x10xf32>
    %171 = vector.shape_cast %170 : vector<1x12x10xf32> to vector<12x10xf32>
    %cst_70 = arith.constant dense<0.000000e+00> : vector<12x128xf32>
    %172 = tpu.matmul %171, %169, %cst_70 {dimension_numbers = #tpu.dot_dimension_numbers<[1], [0], [0], [1], [0, 0, 1, 1], [], []>} : vector<12x10xf32>, vector<10x128xf32>, vector<12x128xf32> -> vector<12x128xf32>
    %173 = arith.addf %166, %172 : vector<12x128xf32>
    %174 = vector.extract_strided_slice %149 {offsets = [0, 0], sizes = [1, 128], strides = [1, 1]} : vector<5x128xf32> to vector<1x128xf32>
    %175 = vector.broadcast %174 : vector<1x128xf32> to vector<12x128xf32>
    %176 = arith.addf %173, %175 : vector<12x128xf32>
    %cst_71 = arith.constant 0.000000e+00 : f32
    %177 = vector.broadcast %cst_71 : f32 to vector<12x128xf32>
    %178 = arith.maximumf %176, %177 : vector<12x128xf32>
    %cst_72 = arith.constant dense<0.000000e+00> : vector<12x768xf32>
    %179 = tpu.matmul %178, %147, %cst_72 {dimension_numbers = #tpu.dot_dimension_numbers<[1], [0], [0], [1], [0, 0, 1, 1], [], []>} : vector<12x128xf32>, vector<128x768xf32>, vector<12x768xf32> -> vector<12x768xf32>
    %180 = vector.broadcast %148 : vector<1x768xf32> to vector<12x768xf32>
    %181 = arith.addf %179, %180 : vector<12x768xf32>
    %182 = vector.extract_strided_slice %181 {offsets = [0, 0], sizes = [12, 128], strides = [1, 1]} : vector<12x768xf32> to vector<12x128xf32>
    %183 = vector.extract_strided_slice %181 {offsets = [0, 128], sizes = [12, 128], strides = [1, 1]} : vector<12x768xf32> to vector<12x128xf32>
    %cst_73 = arith.constant 0.000000e+00 : f32
    %184 = vector.broadcast %cst_73 : f32 to vector<12x128xf32>
    %185 = vector.extract_strided_slice %149 {offsets = [1, 0], sizes = [1, 128], strides = [1, 1]} : vector<5x128xf32> to vector<1x128xf32>
    %186 = vector.broadcast %185 : vector<1x128xf32> to vector<12x128xf32>
    %187 = arith.addf %184, %186 : vector<12x128xf32>
    %188 = vector.extract_strided_slice %182 {offsets = [0, 0], sizes = [12, 16], strides = [1, 1]} : vector<12x128xf32> to vector<12x16xf32>
    %189 = vector.extract_strided_slice %183 {offsets = [0, 0], sizes = [12, 16], strides = [1, 1]} : vector<12x128xf32> to vector<12x16xf32>
    %cst_74 = arith.constant dense<0.000000e+00> : vector<12x12xf32>
    %190 = tpu.matmul %188, %189, %cst_74 {dimension_numbers = #tpu.dot_dimension_numbers<[1], [1], [0], [0], [0, 0, 1, 0], [], []>} : vector<12x16xf32>, vector<12x16xf32>, vector<12x12xf32> -> vector<12x12xf32>
    %cst_75 = arith.constant 2.500000e-01 : f32
    %191 = vector.broadcast %cst_75 : f32 to vector<12x12xf32>
    %192 = arith.mulf %190, %191 : vector<12x12xf32>
    %193 = arith.addf %192, %151 : vector<12x12xf32>
    %cst_76 = arith.constant dense<0xFF800000> : vector<12xf32>
    %194 = vector.multi_reduction <maximumf>, %193, %cst_76 [1] : vector<12x12xf32> to vector<12xf32>
    %195 = vector.shape_cast %194 : vector<12xf32> to vector<12x1xf32>
    %196 = vector.broadcast %195 : vector<12x1xf32> to vector<12x12xf32>
    %197 = arith.subf %193, %196 : vector<12x12xf32>
    %198 = math.exp %197 : vector<12x12xf32>
    %cst_77 = arith.constant dense<0.000000e+00> : vector<12xf32>
    %199 = vector.multi_reduction <add>, %198, %cst_77 [1] : vector<12x12xf32> to vector<12xf32>
    %200 = vector.shape_cast %199 : vector<12xf32> to vector<12x1xf32>
    %201 = tpu.reciprocal %200 {approx = true} : vector<12x1xf32> -> vector<12x1xf32>
    %202 = vector.broadcast %201 : vector<12x1xf32> to vector<12x12xf32>
    %203 = arith.mulf %198, %202 : vector<12x12xf32>
    %204 = vector.extract_strided_slice %181 {offsets = [0, 256], sizes = [12, 128], strides = [1, 1]} : vector<12x768xf32> to vector<12x128xf32>
    %cst_78 = arith.constant dense<0.000000e+00> : vector<12x128xf32>
    %205 = tpu.matmul %203, %204, %cst_78 {dimension_numbers = #tpu.dot_dimension_numbers<[1], [0], [0], [1], [0, 0, 1, 1], [], []>} : vector<12x12xf32>, vector<12x128xf32>, vector<12x128xf32> -> vector<12x128xf32>
    %206 = arith.addf %187, %205 : vector<12x128xf32>
    %207 = vector.extract_strided_slice %182 {offsets = [0, 16], sizes = [12, 16], strides = [1, 1]} : vector<12x128xf32> to vector<12x16xf32>
    %208 = vector.extract_strided_slice %183 {offsets = [0, 16], sizes = [12, 16], strides = [1, 1]} : vector<12x128xf32> to vector<12x16xf32>
    %cst_79 = arith.constant dense<0.000000e+00> : vector<12x12xf32>
    %209 = tpu.matmul %207, %208, %cst_79 {dimension_numbers = #tpu.dot_dimension_numbers<[1], [1], [0], [0], [0, 0, 1, 0], [], []>} : vector<12x16xf32>, vector<12x16xf32>, vector<12x12xf32> -> vector<12x12xf32>
    %cst_80 = arith.constant 2.500000e-01 : f32
    %210 = vector.broadcast %cst_80 : f32 to vector<12x12xf32>
    %211 = arith.mulf %209, %210 : vector<12x12xf32>
    %212 = arith.addf %211, %151 : vector<12x12xf32>
    %cst_81 = arith.constant dense<0xFF800000> : vector<12xf32>
    %213 = vector.multi_reduction <maximumf>, %212, %cst_81 [1] : vector<12x12xf32> to vector<12xf32>
    %214 = vector.shape_cast %213 : vector<12xf32> to vector<12x1xf32>
    %215 = vector.broadcast %214 : vector<12x1xf32> to vector<12x12xf32>
    %216 = arith.subf %212, %215 : vector<12x12xf32>
    %217 = math.exp %216 : vector<12x12xf32>
    %cst_82 = arith.constant dense<0.000000e+00> : vector<12xf32>
    %218 = vector.multi_reduction <add>, %217, %cst_82 [1] : vector<12x12xf32> to vector<12xf32>
    %219 = vector.shape_cast %218 : vector<12xf32> to vector<12x1xf32>
    %220 = tpu.reciprocal %219 {approx = true} : vector<12x1xf32> -> vector<12x1xf32>
    %221 = vector.broadcast %220 : vector<12x1xf32> to vector<12x12xf32>
    %222 = arith.mulf %217, %221 : vector<12x12xf32>
    %223 = vector.extract_strided_slice %181 {offsets = [0, 384], sizes = [12, 128], strides = [1, 1]} : vector<12x768xf32> to vector<12x128xf32>
    %cst_83 = arith.constant dense<0.000000e+00> : vector<12x128xf32>
    %224 = tpu.matmul %222, %223, %cst_83 {dimension_numbers = #tpu.dot_dimension_numbers<[1], [0], [0], [1], [0, 0, 1, 1], [], []>} : vector<12x12xf32>, vector<12x128xf32>, vector<12x128xf32> -> vector<12x128xf32>
    %225 = arith.addf %206, %224 : vector<12x128xf32>
    %226 = vector.extract_strided_slice %182 {offsets = [0, 32], sizes = [12, 16], strides = [1, 1]} : vector<12x128xf32> to vector<12x16xf32>
    %227 = vector.extract_strided_slice %183 {offsets = [0, 32], sizes = [12, 16], strides = [1, 1]} : vector<12x128xf32> to vector<12x16xf32>
    %cst_84 = arith.constant dense<0.000000e+00> : vector<12x12xf32>
    %228 = tpu.matmul %226, %227, %cst_84 {dimension_numbers = #tpu.dot_dimension_numbers<[1], [1], [0], [0], [0, 0, 1, 0], [], []>} : vector<12x16xf32>, vector<12x16xf32>, vector<12x12xf32> -> vector<12x12xf32>
    %cst_85 = arith.constant 2.500000e-01 : f32
    %229 = vector.broadcast %cst_85 : f32 to vector<12x12xf32>
    %230 = arith.mulf %228, %229 : vector<12x12xf32>
    %231 = arith.addf %230, %151 : vector<12x12xf32>
    %cst_86 = arith.constant dense<0xFF800000> : vector<12xf32>
    %232 = vector.multi_reduction <maximumf>, %231, %cst_86 [1] : vector<12x12xf32> to vector<12xf32>
    %233 = vector.shape_cast %232 : vector<12xf32> to vector<12x1xf32>
    %234 = vector.broadcast %233 : vector<12x1xf32> to vector<12x12xf32>
    %235 = arith.subf %231, %234 : vector<12x12xf32>
    %236 = math.exp %235 : vector<12x12xf32>
    %cst_87 = arith.constant dense<0.000000e+00> : vector<12xf32>
    %237 = vector.multi_reduction <add>, %236, %cst_87 [1] : vector<12x12xf32> to vector<12xf32>
    %238 = vector.shape_cast %237 : vector<12xf32> to vector<12x1xf32>
    %239 = tpu.reciprocal %238 {approx = true} : vector<12x1xf32> -> vector<12x1xf32>
    %240 = vector.broadcast %239 : vector<12x1xf32> to vector<12x12xf32>
    %241 = arith.mulf %236, %240 : vector<12x12xf32>
    %242 = vector.extract_strided_slice %181 {offsets = [0, 512], sizes = [12, 128], strides = [1, 1]} : vector<12x768xf32> to vector<12x128xf32>
    %cst_88 = arith.constant dense<0.000000e+00> : vector<12x128xf32>
    %243 = tpu.matmul %241, %242, %cst_88 {dimension_numbers = #tpu.dot_dimension_numbers<[1], [0], [0], [1], [0, 0, 1, 1], [], []>} : vector<12x12xf32>, vector<12x128xf32>, vector<12x128xf32> -> vector<12x128xf32>
    %244 = arith.addf %225, %243 : vector<12x128xf32>
    %245 = vector.extract_strided_slice %182 {offsets = [0, 48], sizes = [12, 16], strides = [1, 1]} : vector<12x128xf32> to vector<12x16xf32>
    %246 = vector.extract_strided_slice %183 {offsets = [0, 48], sizes = [12, 16], strides = [1, 1]} : vector<12x128xf32> to vector<12x16xf32>
    %cst_89 = arith.constant dense<0.000000e+00> : vector<12x12xf32>
    %247 = tpu.matmul %245, %246, %cst_89 {dimension_numbers = #tpu.dot_dimension_numbers<[1], [1], [0], [0], [0, 0, 1, 0], [], []>} : vector<12x16xf32>, vector<12x16xf32>, vector<12x12xf32> -> vector<12x12xf32>
    %cst_90 = arith.constant 2.500000e-01 : f32
    %248 = vector.broadcast %cst_90 : f32 to vector<12x12xf32>
    %249 = arith.mulf %247, %248 : vector<12x12xf32>
    %250 = arith.addf %249, %151 : vector<12x12xf32>
    %cst_91 = arith.constant dense<0xFF800000> : vector<12xf32>
    %251 = vector.multi_reduction <maximumf>, %250, %cst_91 [1] : vector<12x12xf32> to vector<12xf32>
    %252 = vector.shape_cast %251 : vector<12xf32> to vector<12x1xf32>
    %253 = vector.broadcast %252 : vector<12x1xf32> to vector<12x12xf32>
    %254 = arith.subf %250, %253 : vector<12x12xf32>
    %255 = math.exp %254 : vector<12x12xf32>
    %cst_92 = arith.constant dense<0.000000e+00> : vector<12xf32>
    %256 = vector.multi_reduction <add>, %255, %cst_92 [1] : vector<12x12xf32> to vector<12xf32>
    %257 = vector.shape_cast %256 : vector<12xf32> to vector<12x1xf32>
    %258 = tpu.reciprocal %257 {approx = true} : vector<12x1xf32> -> vector<12x1xf32>
    %259 = vector.broadcast %258 : vector<12x1xf32> to vector<12x12xf32>
    %260 = arith.mulf %255, %259 : vector<12x12xf32>
    %261 = vector.extract_strided_slice %181 {offsets = [0, 640], sizes = [12, 128], strides = [1, 1]} : vector<12x768xf32> to vector<12x128xf32>
    %cst_93 = arith.constant dense<0.000000e+00> : vector<12x128xf32>
    %262 = tpu.matmul %260, %261, %cst_93 {dimension_numbers = #tpu.dot_dimension_numbers<[1], [0], [0], [1], [0, 0, 1, 1], [], []>} : vector<12x12xf32>, vector<12x128xf32>, vector<12x128xf32> -> vector<12x128xf32>
    %263 = arith.addf %244, %262 : vector<12x128xf32>
    %264 = arith.addf %178, %263 : vector<12x128xf32>
    %cst_94 = arith.constant dense<0.000000e+00> : vector<12xf32>
    %265 = vector.multi_reduction <add>, %264, %cst_94 [1] : vector<12x128xf32> to vector<12xf32>
    %266 = vector.shape_cast %265 : vector<12xf32> to vector<12x1xf32>
    %cst_95 = arith.constant 1.562500e-02 : f32
    %267 = vector.broadcast %cst_95 : f32 to vector<12x1xf32>
    %268 = arith.mulf %266, %267 : vector<12x1xf32>
    %269 = vector.broadcast %268 : vector<12x1xf32> to vector<12x128xf32>
    %270 = arith.subf %264, %269 : vector<12x128xf32>
    %271 = vector.extract_strided_slice %149 {offsets = [4, 0], sizes = [1, 128], strides = [1, 1]} : vector<5x128xf32> to vector<1x128xf32>
    %272 = vector.broadcast %271 : vector<1x128xf32> to vector<12x128xf32>
    %273 = arith.mulf %270, %272 : vector<12x128xf32>
    %274 = arith.mulf %273, %273 : vector<12x128xf32>
    %cst_96 = arith.constant dense<0.000000e+00> : vector<12xf32>
    %275 = vector.multi_reduction <add>, %274, %cst_96 [1] : vector<12x128xf32> to vector<12xf32>
    %276 = vector.shape_cast %275 : vector<12xf32> to vector<12x1xf32>
    %cst_97 = arith.constant 1.562500e-02 : f32
    %277 = vector.broadcast %cst_97 : f32 to vector<12x1xf32>
    %278 = arith.mulf %276, %277 : vector<12x1xf32>
    %cst_98 = arith.constant 9.99999974E-6 : f32
    %279 = vector.broadcast %cst_98 : f32 to vector<12x1xf32>
    %280 = arith.addf %278, %279 : vector<12x1xf32>
    %281 = math.rsqrt %280 : vector<12x1xf32>
    %282 = vector.broadcast %281 : vector<12x1xf32> to vector<12x128xf32>
    %283 = arith.mulf %273, %282 : vector<12x128xf32>
    %284 = vector.extract_strided_slice %149 {offsets = [2, 0], sizes = [1, 128], strides = [1, 1]} : vector<5x128xf32> to vector<1x128xf32>
    %285 = vector.broadcast %284 : vector<1x128xf32> to vector<12x128xf32>
    %286 = arith.mulf %283, %285 : vector<12x128xf32>
    %287 = vector.extract_strided_slice %149 {offsets = [3, 0], sizes = [1, 128], strides = [1, 1]} : vector<5x128xf32> to vector<1x128xf32>
    %288 = vector.broadcast %287 : vector<1x128xf32> to vector<12x128xf32>
    %289 = arith.addf %286, %288 : vector<12x128xf32>
    %c0_99 = arith.constant 0 : index
    %c0_100 = arith.constant 0 : index
    %c0_101 = arith.constant 0 : index
    %290 = vector.load %arg10[%c0_99, %c0_100, %c0_101] : memref<3x128x128xf32, #tpu.memory_space<vmem>>, vector<3x128x128xf32>
    %c0_102 = arith.constant 0 : index
    %c0_103 = arith.constant 0 : index
    %291 = vector.load %arg11[%c0_102, %c0_103] : memref<128x768xf32, #tpu.memory_space<vmem>>, vector<128x768xf32>
    %c0_104 = arith.constant 0 : index
    %c0_105 = arith.constant 0 : index
    %292 = vector.load %arg12[%c0_104, %c0_105] : memref<1x768xf32, #tpu.memory_space<vmem>>, vector<1x768xf32>
    %c0_106 = arith.constant 0 : index
    %c0_107 = arith.constant 0 : index
    %293 = vector.load %arg13[%c0_106, %c0_107] : memref<5x128xf32, #tpu.memory_space<vmem>>, vector<5x128xf32>
    %c0_108 = arith.constant 0 : index
    %c0_109 = arith.constant 0 : index
    %c0_110 = arith.constant 0 : index
    %294 = vector.load %arg18[%c0_108, %c0_109, %c0_110] : memref<3x20x12xf32, #tpu.memory_space<vmem>>, vector<3x20x12xf32>
    %c0_111 = arith.constant 0 : index
    %c0_112 = arith.constant 0 : index
    %295 = vector.load %arg19[%c0_111, %c0_112] : memref<20x20xf32, #tpu.memory_space<vmem>>, vector<20x20xf32>
    %cst_113 = arith.constant 0.000000e+00 : f32
    %296 = vector.broadcast %cst_113 : f32 to vector<20x128xf32>
    %297 = vector.extract_strided_slice %290 {offsets = [0, 0, 0], sizes = [1, 128, 128], strides = [1, 1, 1]} : vector<3x128x128xf32> to vector<1x128x128xf32>
    %298 = vector.shape_cast %297 : vector<1x128x128xf32> to vector<128x128xf32>
    %cst_114 = arith.constant dense<0.000000e+00> : vector<12x128xf32>
    %299 = tpu.matmul %289, %298, %cst_114 {dimension_numbers = #tpu.dot_dimension_numbers<[1], [0], [0], [1], [0, 0, 1, 1], [], []>} : vector<12x128xf32>, vector<128x128xf32>, vector<12x128xf32> -> vector<12x128xf32>
    %300 = vector.extract_strided_slice %294 {offsets = [0, 0, 0], sizes = [1, 20, 12], strides = [1, 1, 1]} : vector<3x20x12xf32> to vector<1x20x12xf32>
    %301 = vector.shape_cast %300 : vector<1x20x12xf32> to vector<20x12xf32>
    %cst_115 = arith.constant dense<0.000000e+00> : vector<20x128xf32>
    %302 = tpu.matmul %301, %299, %cst_115 {dimension_numbers = #tpu.dot_dimension_numbers<[1], [0], [0], [1], [0, 0, 1, 1], [], []>} : vector<20x12xf32>, vector<12x128xf32>, vector<20x128xf32> -> vector<20x128xf32>
    %303 = arith.addf %296, %302 : vector<20x128xf32>
    %304 = vector.extract_strided_slice %290 {offsets = [1, 0, 0], sizes = [1, 128, 128], strides = [1, 1, 1]} : vector<3x128x128xf32> to vector<1x128x128xf32>
    %305 = vector.shape_cast %304 : vector<1x128x128xf32> to vector<128x128xf32>
    %cst_116 = arith.constant dense<0.000000e+00> : vector<12x128xf32>
    %306 = tpu.matmul %289, %305, %cst_116 {dimension_numbers = #tpu.dot_dimension_numbers<[1], [0], [0], [1], [0, 0, 1, 1], [], []>} : vector<12x128xf32>, vector<128x128xf32>, vector<12x128xf32> -> vector<12x128xf32>
    %307 = vector.extract_strided_slice %294 {offsets = [1, 0, 0], sizes = [1, 20, 12], strides = [1, 1, 1]} : vector<3x20x12xf32> to vector<1x20x12xf32>
    %308 = vector.shape_cast %307 : vector<1x20x12xf32> to vector<20x12xf32>
    %cst_117 = arith.constant dense<0.000000e+00> : vector<20x128xf32>
    %309 = tpu.matmul %308, %306, %cst_117 {dimension_numbers = #tpu.dot_dimension_numbers<[1], [0], [0], [1], [0, 0, 1, 1], [], []>} : vector<20x12xf32>, vector<12x128xf32>, vector<20x128xf32> -> vector<20x128xf32>
    %310 = arith.addf %303, %309 : vector<20x128xf32>
    %311 = vector.extract_strided_slice %290 {offsets = [2, 0, 0], sizes = [1, 128, 128], strides = [1, 1, 1]} : vector<3x128x128xf32> to vector<1x128x128xf32>
    %312 = vector.shape_cast %311 : vector<1x128x128xf32> to vector<128x128xf32>
    %cst_118 = arith.constant dense<0.000000e+00> : vector<12x128xf32>
    %313 = tpu.matmul %289, %312, %cst_118 {dimension_numbers = #tpu.dot_dimension_numbers<[1], [0], [0], [1], [0, 0, 1, 1], [], []>} : vector<12x128xf32>, vector<128x128xf32>, vector<12x128xf32> -> vector<12x128xf32>
    %314 = vector.extract_strided_slice %294 {offsets = [2, 0, 0], sizes = [1, 20, 12], strides = [1, 1, 1]} : vector<3x20x12xf32> to vector<1x20x12xf32>
    %315 = vector.shape_cast %314 : vector<1x20x12xf32> to vector<20x12xf32>
    %cst_119 = arith.constant dense<0.000000e+00> : vector<20x128xf32>
    %316 = tpu.matmul %315, %313, %cst_119 {dimension_numbers = #tpu.dot_dimension_numbers<[1], [0], [0], [1], [0, 0, 1, 1], [], []>} : vector<20x12xf32>, vector<12x128xf32>, vector<20x128xf32> -> vector<20x128xf32>
    %317 = arith.addf %310, %316 : vector<20x128xf32>
    %318 = vector.extract_strided_slice %293 {offsets = [0, 0], sizes = [1, 128], strides = [1, 1]} : vector<5x128xf32> to vector<1x128xf32>
    %319 = vector.broadcast %318 : vector<1x128xf32> to vector<20x128xf32>
    %320 = arith.addf %317, %319 : vector<20x128xf32>
    %cst_120 = arith.constant 0.000000e+00 : f32
    %321 = vector.broadcast %cst_120 : f32 to vector<20x128xf32>
    %322 = arith.maximumf %320, %321 : vector<20x128xf32>
    %cst_121 = arith.constant dense<0.000000e+00> : vector<20x768xf32>
    %323 = tpu.matmul %322, %291, %cst_121 {dimension_numbers = #tpu.dot_dimension_numbers<[1], [0], [0], [1], [0, 0, 1, 1], [], []>} : vector<20x128xf32>, vector<128x768xf32>, vector<20x768xf32> -> vector<20x768xf32>
    %324 = vector.broadcast %292 : vector<1x768xf32> to vector<20x768xf32>
    %325 = arith.addf %323, %324 : vector<20x768xf32>
    %326 = vector.extract_strided_slice %325 {offsets = [0, 0], sizes = [20, 128], strides = [1, 1]} : vector<20x768xf32> to vector<20x128xf32>
    %327 = vector.extract_strided_slice %325 {offsets = [0, 128], sizes = [20, 128], strides = [1, 1]} : vector<20x768xf32> to vector<20x128xf32>
    %cst_122 = arith.constant 0.000000e+00 : f32
    %328 = vector.broadcast %cst_122 : f32 to vector<20x128xf32>
    %329 = vector.extract_strided_slice %293 {offsets = [1, 0], sizes = [1, 128], strides = [1, 1]} : vector<5x128xf32> to vector<1x128xf32>
    %330 = vector.broadcast %329 : vector<1x128xf32> to vector<20x128xf32>
    %331 = arith.addf %328, %330 : vector<20x128xf32>
    %332 = vector.extract_strided_slice %326 {offsets = [0, 0], sizes = [20, 8], strides = [1, 1]} : vector<20x128xf32> to vector<20x8xf32>
    %333 = vector.extract_strided_slice %327 {offsets = [0, 0], sizes = [20, 8], strides = [1, 1]} : vector<20x128xf32> to vector<20x8xf32>
    %cst_123 = arith.constant dense<0.000000e+00> : vector<20x20xf32>
    %334 = tpu.matmul %332, %333, %cst_123 {dimension_numbers = #tpu.dot_dimension_numbers<[1], [1], [0], [0], [0, 0, 1, 0], [], []>} : vector<20x8xf32>, vector<20x8xf32>, vector<20x20xf32> -> vector<20x20xf32>
    %cst_124 = arith.constant 0.353553385 : f32
    %335 = vector.broadcast %cst_124 : f32 to vector<20x20xf32>
    %336 = arith.mulf %334, %335 : vector<20x20xf32>
    %337 = arith.addf %336, %295 : vector<20x20xf32>
    %cst_125 = arith.constant dense<0xFF800000> : vector<20xf32>
    %338 = vector.multi_reduction <maximumf>, %337, %cst_125 [1] : vector<20x20xf32> to vector<20xf32>
    %339 = vector.shape_cast %338 : vector<20xf32> to vector<20x1xf32>
    %340 = vector.broadcast %339 : vector<20x1xf32> to vector<20x20xf32>
    %341 = arith.subf %337, %340 : vector<20x20xf32>
    %342 = math.exp %341 : vector<20x20xf32>
    %cst_126 = arith.constant dense<0.000000e+00> : vector<20xf32>
    %343 = vector.multi_reduction <add>, %342, %cst_126 [1] : vector<20x20xf32> to vector<20xf32>
    %344 = vector.shape_cast %343 : vector<20xf32> to vector<20x1xf32>
    %345 = tpu.reciprocal %344 {approx = true} : vector<20x1xf32> -> vector<20x1xf32>
    %346 = vector.broadcast %345 : vector<20x1xf32> to vector<20x20xf32>
    %347 = arith.mulf %342, %346 : vector<20x20xf32>
    %348 = vector.extract_strided_slice %325 {offsets = [0, 256], sizes = [20, 128], strides = [1, 1]} : vector<20x768xf32> to vector<20x128xf32>
    %cst_127 = arith.constant dense<0.000000e+00> : vector<20x128xf32>
    %349 = tpu.matmul %347, %348, %cst_127 {dimension_numbers = #tpu.dot_dimension_numbers<[1], [0], [0], [1], [0, 0, 1, 1], [], []>} : vector<20x20xf32>, vector<20x128xf32>, vector<20x128xf32> -> vector<20x128xf32>
    %350 = arith.addf %331, %349 : vector<20x128xf32>
    %351 = vector.extract_strided_slice %326 {offsets = [0, 8], sizes = [20, 8], strides = [1, 1]} : vector<20x128xf32> to vector<20x8xf32>
    %352 = vector.extract_strided_slice %327 {offsets = [0, 8], sizes = [20, 8], strides = [1, 1]} : vector<20x128xf32> to vector<20x8xf32>
    %cst_128 = arith.constant dense<0.000000e+00> : vector<20x20xf32>
    %353 = tpu.matmul %351, %352, %cst_128 {dimension_numbers = #tpu.dot_dimension_numbers<[1], [1], [0], [0], [0, 0, 1, 0], [], []>} : vector<20x8xf32>, vector<20x8xf32>, vector<20x20xf32> -> vector<20x20xf32>
    %cst_129 = arith.constant 0.353553385 : f32
    %354 = vector.broadcast %cst_129 : f32 to vector<20x20xf32>
    %355 = arith.mulf %353, %354 : vector<20x20xf32>
    %356 = arith.addf %355, %295 : vector<20x20xf32>
    %cst_130 = arith.constant dense<0xFF800000> : vector<20xf32>
    %357 = vector.multi_reduction <maximumf>, %356, %cst_130 [1] : vector<20x20xf32> to vector<20xf32>
    %358 = vector.shape_cast %357 : vector<20xf32> to vector<20x1xf32>
    %359 = vector.broadcast %358 : vector<20x1xf32> to vector<20x20xf32>
    %360 = arith.subf %356, %359 : vector<20x20xf32>
    %361 = math.exp %360 : vector<20x20xf32>
    %cst_131 = arith.constant dense<0.000000e+00> : vector<20xf32>
    %362 = vector.multi_reduction <add>, %361, %cst_131 [1] : vector<20x20xf32> to vector<20xf32>
    %363 = vector.shape_cast %362 : vector<20xf32> to vector<20x1xf32>
    %364 = tpu.reciprocal %363 {approx = true} : vector<20x1xf32> -> vector<20x1xf32>
    %365 = vector.broadcast %364 : vector<20x1xf32> to vector<20x20xf32>
    %366 = arith.mulf %361, %365 : vector<20x20xf32>
    %367 = vector.extract_strided_slice %325 {offsets = [0, 384], sizes = [20, 128], strides = [1, 1]} : vector<20x768xf32> to vector<20x128xf32>
    %cst_132 = arith.constant dense<0.000000e+00> : vector<20x128xf32>
    %368 = tpu.matmul %366, %367, %cst_132 {dimension_numbers = #tpu.dot_dimension_numbers<[1], [0], [0], [1], [0, 0, 1, 1], [], []>} : vector<20x20xf32>, vector<20x128xf32>, vector<20x128xf32> -> vector<20x128xf32>
    %369 = arith.addf %350, %368 : vector<20x128xf32>
    %370 = vector.extract_strided_slice %326 {offsets = [0, 16], sizes = [20, 8], strides = [1, 1]} : vector<20x128xf32> to vector<20x8xf32>
    %371 = vector.extract_strided_slice %327 {offsets = [0, 16], sizes = [20, 8], strides = [1, 1]} : vector<20x128xf32> to vector<20x8xf32>
    %cst_133 = arith.constant dense<0.000000e+00> : vector<20x20xf32>
    %372 = tpu.matmul %370, %371, %cst_133 {dimension_numbers = #tpu.dot_dimension_numbers<[1], [1], [0], [0], [0, 0, 1, 0], [], []>} : vector<20x8xf32>, vector<20x8xf32>, vector<20x20xf32> -> vector<20x20xf32>
    %cst_134 = arith.constant 0.353553385 : f32
    %373 = vector.broadcast %cst_134 : f32 to vector<20x20xf32>
    %374 = arith.mulf %372, %373 : vector<20x20xf32>
    %375 = arith.addf %374, %295 : vector<20x20xf32>
    %cst_135 = arith.constant dense<0xFF800000> : vector<20xf32>
    %376 = vector.multi_reduction <maximumf>, %375, %cst_135 [1] : vector<20x20xf32> to vector<20xf32>
    %377 = vector.shape_cast %376 : vector<20xf32> to vector<20x1xf32>
    %378 = vector.broadcast %377 : vector<20x1xf32> to vector<20x20xf32>
    %379 = arith.subf %375, %378 : vector<20x20xf32>
    %380 = math.exp %379 : vector<20x20xf32>
    %cst_136 = arith.constant dense<0.000000e+00> : vector<20xf32>
    %381 = vector.multi_reduction <add>, %380, %cst_136 [1] : vector<20x20xf32> to vector<20xf32>
    %382 = vector.shape_cast %381 : vector<20xf32> to vector<20x1xf32>
    %383 = tpu.reciprocal %382 {approx = true} : vector<20x1xf32> -> vector<20x1xf32>
    %384 = vector.broadcast %383 : vector<20x1xf32> to vector<20x20xf32>
    %385 = arith.mulf %380, %384 : vector<20x20xf32>
    %386 = vector.extract_strided_slice %325 {offsets = [0, 512], sizes = [20, 128], strides = [1, 1]} : vector<20x768xf32> to vector<20x128xf32>
    %cst_137 = arith.constant dense<0.000000e+00> : vector<20x128xf32>
    %387 = tpu.matmul %385, %386, %cst_137 {dimension_numbers = #tpu.dot_dimension_numbers<[1], [0], [0], [1], [0, 0, 1, 1], [], []>} : vector<20x20xf32>, vector<20x128xf32>, vector<20x128xf32> -> vector<20x128xf32>
    %388 = arith.addf %369, %387 : vector<20x128xf32>
    %389 = vector.extract_strided_slice %326 {offsets = [0, 24], sizes = [20, 8], strides = [1, 1]} : vector<20x128xf32> to vector<20x8xf32>
    %390 = vector.extract_strided_slice %327 {offsets = [0, 24], sizes = [20, 8], strides = [1, 1]} : vector<20x128xf32> to vector<20x8xf32>
    %cst_138 = arith.constant dense<0.000000e+00> : vector<20x20xf32>
    %391 = tpu.matmul %389, %390, %cst_138 {dimension_numbers = #tpu.dot_dimension_numbers<[1], [1], [0], [0], [0, 0, 1, 0], [], []>} : vector<20x8xf32>, vector<20x8xf32>, vector<20x20xf32> -> vector<20x20xf32>
    %cst_139 = arith.constant 0.353553385 : f32
    %392 = vector.broadcast %cst_139 : f32 to vector<20x20xf32>
    %393 = arith.mulf %391, %392 : vector<20x20xf32>
    %394 = arith.addf %393, %295 : vector<20x20xf32>
    %cst_140 = arith.constant dense<0xFF800000> : vector<20xf32>
    %395 = vector.multi_reduction <maximumf>, %394, %cst_140 [1] : vector<20x20xf32> to vector<20xf32>
    %396 = vector.shape_cast %395 : vector<20xf32> to vector<20x1xf32>
    %397 = vector.broadcast %396 : vector<20x1xf32> to vector<20x20xf32>
    %398 = arith.subf %394, %397 : vector<20x20xf32>
    %399 = math.exp %398 : vector<20x20xf32>
    %cst_141 = arith.constant dense<0.000000e+00> : vector<20xf32>
    %400 = vector.multi_reduction <add>, %399, %cst_141 [1] : vector<20x20xf32> to vector<20xf32>
    %401 = vector.shape_cast %400 : vector<20xf32> to vector<20x1xf32>
    %402 = tpu.reciprocal %401 {approx = true} : vector<20x1xf32> -> vector<20x1xf32>
    %403 = vector.broadcast %402 : vector<20x1xf32> to vector<20x20xf32>
    %404 = arith.mulf %399, %403 : vector<20x20xf32>
    %405 = vector.extract_strided_slice %325 {offsets = [0, 640], sizes = [20, 128], strides = [1, 1]} : vector<20x768xf32> to vector<20x128xf32>
    %cst_142 = arith.constant dense<0.000000e+00> : vector<20x128xf32>
    %406 = tpu.matmul %404, %405, %cst_142 {dimension_numbers = #tpu.dot_dimension_numbers<[1], [0], [0], [1], [0, 0, 1, 1], [], []>} : vector<20x20xf32>, vector<20x128xf32>, vector<20x128xf32> -> vector<20x128xf32>
    %407 = arith.addf %388, %406 : vector<20x128xf32>
    %408 = arith.addf %322, %407 : vector<20x128xf32>
    %cst_143 = arith.constant dense<0.000000e+00> : vector<20xf32>
    %409 = vector.multi_reduction <add>, %408, %cst_143 [1] : vector<20x128xf32> to vector<20xf32>
    %410 = vector.shape_cast %409 : vector<20xf32> to vector<20x1xf32>
    %cst_144 = arith.constant 3.125000e-02 : f32
    %411 = vector.broadcast %cst_144 : f32 to vector<20x1xf32>
    %412 = arith.mulf %410, %411 : vector<20x1xf32>
    %413 = vector.broadcast %412 : vector<20x1xf32> to vector<20x128xf32>
    %414 = arith.subf %408, %413 : vector<20x128xf32>
    %415 = vector.extract_strided_slice %293 {offsets = [4, 0], sizes = [1, 128], strides = [1, 1]} : vector<5x128xf32> to vector<1x128xf32>
    %416 = vector.broadcast %415 : vector<1x128xf32> to vector<20x128xf32>
    %417 = arith.mulf %414, %416 : vector<20x128xf32>
    %418 = arith.mulf %417, %417 : vector<20x128xf32>
    %cst_145 = arith.constant dense<0.000000e+00> : vector<20xf32>
    %419 = vector.multi_reduction <add>, %418, %cst_145 [1] : vector<20x128xf32> to vector<20xf32>
    %420 = vector.shape_cast %419 : vector<20xf32> to vector<20x1xf32>
    %cst_146 = arith.constant 3.125000e-02 : f32
    %421 = vector.broadcast %cst_146 : f32 to vector<20x1xf32>
    %422 = arith.mulf %420, %421 : vector<20x1xf32>
    %cst_147 = arith.constant 9.99999974E-6 : f32
    %423 = vector.broadcast %cst_147 : f32 to vector<20x1xf32>
    %424 = arith.addf %422, %423 : vector<20x1xf32>
    %425 = math.rsqrt %424 : vector<20x1xf32>
    %426 = vector.broadcast %425 : vector<20x1xf32> to vector<20x128xf32>
    %427 = arith.mulf %417, %426 : vector<20x128xf32>
    %428 = vector.extract_strided_slice %293 {offsets = [2, 0], sizes = [1, 128], strides = [1, 1]} : vector<5x128xf32> to vector<1x128xf32>
    %429 = vector.broadcast %428 : vector<1x128xf32> to vector<20x128xf32>
    %430 = arith.mulf %427, %429 : vector<20x128xf32>
    %431 = vector.extract_strided_slice %293 {offsets = [3, 0], sizes = [1, 128], strides = [1, 1]} : vector<5x128xf32> to vector<1x128xf32>
    %432 = vector.broadcast %431 : vector<1x128xf32> to vector<20x128xf32>
    %433 = arith.addf %430, %432 : vector<20x128xf32>
    %c0_148 = arith.constant 0 : index
    %c0_149 = arith.constant 0 : index
    %434 = vector.load %arg20[%c0_148, %c0_149] : memref<1x20xf32, #tpu.memory_space<vmem>>, vector<1x20xf32>
    %cst_150 = arith.constant dense<0.000000e+00> : vector<1x128xf32>
    %435 = tpu.matmul %434, %433, %cst_150 {dimension_numbers = #tpu.dot_dimension_numbers<[1], [0], [0], [1], [0, 0, 1, 1], [], []>} : vector<1x20xf32>, vector<20x128xf32>, vector<1x128xf32> -> vector<1x128xf32>
    %c0_151 = arith.constant 0 : index
    %c0_152 = arith.constant 0 : index
    %c0_153 = arith.constant 0 : index
    %436 = vector.load %arg21[%c0_151, %c0_152, %c0_153] : memref<1x1x128xf32, #tpu.memory_space<vmem>>, vector<1x1x128xf32>
    %437 = vector.shape_cast %436 : vector<1x1x128xf32> to vector<1x128xf32>
    %438 = vector.shape_cast %435 : vector<1x128xf32> to vector<1x1x128xf32>
    tpu.vector_store %arg21[%c0_151, %c0_152, %c0_153], %438 {strides = array<i32>} : memref<1x1x128xf32, #tpu.memory_space<vmem>>, vector<1x1x128xf32>,
    return
  }
  func.func @transform_0(%arg0: i32) -> (i32, i32, i32) {
    %c0_i32 = arith.constant 0 : i32
    %c0_i32_0 = arith.constant 0 : i32
    %c0_i32_1 = arith.constant 0 : i32
    return %arg0, %c0_i32, %c0_i32_0 : i32, i32, i32
  }
  func.func @transform_1(%arg0: i32) -> (i32, i32, i32) {
    %c0_i32 = arith.constant 0 : i32
    %c0_i32_0 = arith.constant 0 : i32
    %c0_i32_1 = arith.constant 0 : i32
    %c0_i32_2 = arith.constant 0 : i32
    return %c0_i32, %c0_i32_0, %c0_i32_1 : i32, i32, i32
  }
  func.func @transform_2(%arg0: i32) -> (i32, i32) {
    %c0_i32 = arith.constant 0 : i32
    %c0_i32_0 = arith.constant 0 : i32
    %c0_i32_1 = arith.constant 0 : i32
    return %c0_i32, %c0_i32_0 : i32, i32
  }
  func.func @transform_3(%arg0: i32) -> (i32, i32) {
    %c0_i32 = arith.constant 0 : i32
    %c0_i32_0 = arith.constant 0 : i32
    %c0_i32_1 = arith.constant 0 : i32
    return %c0_i32, %c0_i32_0 : i32, i32
  }
  func.func @transform_4(%arg0: i32) -> (i32, i32) {
    %c0_i32 = arith.constant 0 : i32
    %c0_i32_0 = arith.constant 0 : i32
    %c0_i32_1 = arith.constant 0 : i32
    return %c0_i32, %c0_i32_0 : i32, i32
  }
  func.func @transform_5(%arg0: i32) -> (i32, i32, i32) {
    %c0_i32 = arith.constant 0 : i32
    %c0_i32_0 = arith.constant 0 : i32
    %c0_i32_1 = arith.constant 0 : i32
    %c0_i32_2 = arith.constant 0 : i32
    return %c0_i32, %c0_i32_0, %c0_i32_1 : i32, i32, i32
  }
  func.func @transform_6(%arg0: i32) -> (i32, i32) {
    %c0_i32 = arith.constant 0 : i32
    %c0_i32_0 = arith.constant 0 : i32
    %c0_i32_1 = arith.constant 0 : i32
    return %c0_i32, %c0_i32_0 : i32, i32
  }
  func.func @transform_7(%arg0: i32) -> (i32, i32) {
    %c0_i32 = arith.constant 0 : i32
    %c0_i32_0 = arith.constant 0 : i32
    %c0_i32_1 = arith.constant 0 : i32
    return %c0_i32, %c0_i32_0 : i32, i32
  }
  func.func @transform_8(%arg0: i32) -> (i32, i32) {
    %c0_i32 = arith.constant 0 : i32
    %c0_i32_0 = arith.constant 0 : i32
    %c0_i32_1 = arith.constant 0 : i32
    return %c0_i32, %c0_i32_0 : i32, i32
  }
  func.func @transform_9(%arg0: i32) -> (i32, i32, i32) {
    %c0_i32 = arith.constant 0 : i32
    %c0_i32_0 = arith.constant 0 : i32
    %c0_i32_1 = arith.constant 0 : i32
    %c0_i32_2 = arith.constant 0 : i32
    return %c0_i32, %c0_i32_0, %c0_i32_1 : i32, i32, i32
  }
  func.func @transform_10(%arg0: i32) -> (i32, i32) {
    %c0_i32 = arith.constant 0 : i32
    %c0_i32_0 = arith.constant 0 : i32
    %c0_i32_1 = arith.constant 0 : i32
    return %c0_i32, %c0_i32_0 : i32, i32
  }
  func.func @transform_11(%arg0: i32) -> (i32, i32) {
    %c0_i32 = arith.constant 0 : i32
    %c0_i32_0 = arith.constant 0 : i32
    %c0_i32_1 = arith.constant 0 : i32
    return %c0_i32, %c0_i32_0 : i32, i32
  }
  func.func @transform_12(%arg0: i32) -> (i32, i32) {
    %c0_i32 = arith.constant 0 : i32
    %c0_i32_0 = arith.constant 0 : i32
    %c0_i32_1 = arith.constant 0 : i32
    return %c0_i32, %c0_i32_0 : i32, i32
  }
  func.func @transform_13(%arg0: i32) -> (i32, i32, i32) {
    %c0_i32 = arith.constant 0 : i32
    %c0_i32_0 = arith.constant 0 : i32
    %c0_i32_1 = arith.constant 0 : i32
    %c0_i32_2 = arith.constant 0 : i32
    return %c0_i32, %c0_i32_0, %c0_i32_1 : i32, i32, i32
  }
  func.func @transform_14(%arg0: i32) -> (i32, i32) {
    %c0_i32 = arith.constant 0 : i32
    %c0_i32_0 = arith.constant 0 : i32
    %c0_i32_1 = arith.constant 0 : i32
    return %c0_i32, %c0_i32_0 : i32, i32
  }
  func.func @transform_15(%arg0: i32) -> (i32, i32, i32) {
    %c0_i32 = arith.constant 0 : i32
    %c0_i32_0 = arith.constant 0 : i32
    %c0_i32_1 = arith.constant 0 : i32
    %c0_i32_2 = arith.constant 0 : i32
    return %c0_i32, %c0_i32_0, %c0_i32_1 : i32, i32, i32
  }
  func.func @transform_16(%arg0: i32) -> (i32, i32) {
    %c0_i32 = arith.constant 0 : i32
    %c0_i32_0 = arith.constant 0 : i32
    %c0_i32_1 = arith.constant 0 : i32
    return %c0_i32, %c0_i32_0 : i32, i32
  }
  func.func @transform_17(%arg0: i32) -> (i32, i32, i32) {
    %c0_i32 = arith.constant 0 : i32
    %c0_i32_0 = arith.constant 0 : i32
    %c0_i32_1 = arith.constant 0 : i32
    %c0_i32_2 = arith.constant 0 : i32
    return %c0_i32, %c0_i32_0, %c0_i32_1 : i32, i32, i32
  }
  func.func @transform_18(%arg0: i32) -> (i32, i32) {
    %c0_i32 = arith.constant 0 : i32
    %c0_i32_0 = arith.constant 0 : i32
    %c0_i32_1 = arith.constant 0 : i32
    return %c0_i32, %c0_i32_0 : i32, i32
  }
  func.func @transform_19(%arg0: i32) -> (i32, i32) {
    %c0_i32 = arith.constant 0 : i32
    %c0_i32_0 = arith.constant 0 : i32
    %c0_i32_1 = arith.constant 0 : i32
    return %c0_i32, %c0_i32_0 : i32, i32
  }
  func.func @transform_20(%arg0: i32) -> (i32, i32, i32) {
    %c0_i32 = arith.constant 0 : i32
    %c0_i32_0 = arith.constant 0 : i32
    %c0_i32_1 = arith.constant 0 : i32
    return %arg0, %c0_i32, %c0_i32_0 : i32, i32, i32
  }
}

</mosaic_0001>

<llo_original>
// kernel: tpu_custom_call.1
$region0: #{tpu_custom_call.1}
  #allocation0 [shape = 'u32[]', space=smem, size = 0x4, offset = 0x4, fixed_abs, tag = 'smem constant byte address 0x4 - core index']
  #allocation1 [shape = 'u32[72,128]{1,0:T(1,128)}', space=vmem, size = 0x9000, scoped, tag = 'internal scratch']
  %s0 = inlined_call_operand.vmem [shape: f32[2,8,16], index: 0, kind: input, shape index: {}]
  %s1 = inlined_call_operand.vmem [shape: f32[3,16,128], index: 1, kind: input, shape index: {}]
  %s2 = inlined_call_operand.hbm [shape: f32[128,768], index: 2, kind: input, shape index: {}]
  %s3 = inlined_call_operand.vmem [shape: f32[1,768], index: 3, kind: input, shape index: {}]
  %s4 = inlined_call_operand.vmem [shape: f32[5,128], index: 4, kind: input, shape index: {}]
  %s5 = inlined_call_operand.hbm [shape: f32[3,128,128], index: 5, kind: input, shape index: {}]
  %s6 = inlined_call_operand.hbm [shape: f32[128,768], index: 6, kind: input, shape index: {}]
  %s7 = inlined_call_operand.vmem [shape: f32[1,768], index: 7, kind: input, shape index: {}]
  %s8 = inlined_call_operand.vmem [shape: f32[5,128], index: 8, kind: input, shape index: {}]
  %s9 = inlined_call_operand.hbm [shape: f32[3,128,128], index: 9, kind: input, shape index: {}]
  %s10 = inlined_call_operand.hbm [shape: f32[128,768], index: 10, kind: input, shape index: {}]
  %s11 = inlined_call_operand.vmem [shape: f32[1,768], index: 11, kind: input, shape index: {}]
  %s12 = inlined_call_operand.vmem [shape: f32[5,128], index: 12, kind: input, shape index: {}]
  %s13 = inlined_call_operand.vmem [shape: f32[3,10,8], index: 13, kind: input, shape index: {}]
  %s14 = inlined_call_operand.vmem [shape: f32[10,10], index: 14, kind: input, shape index: {}]
  %s15 = inlined_call_operand.vmem [shape: f32[3,12,10], index: 15, kind: input, shape index: {}]
  %s16 = inlined_call_operand.vmem [shape: f32[12,12], index: 16, kind: input, shape index: {}]
  %s17 = inlined_call_operand.vmem [shape: f32[3,20,12], index: 17, kind: input, shape index: {}]
  %s18 = inlined_call_operand.vmem [shape: f32[20,20], index: 18, kind: input, shape index: {}]
  %s19 = inlined_call_operand.vmem [shape: f32[1,20], index: 19, kind: input, shape index: {}]
  %s20 = inlined_call_operand.hbm [shape: f32[2,1,128], index: 20, kind: output, shape index: {}]
  %s21 = sld [smem:[#allocation0]]
  $region133: #{tpu_custom_call.1} parent=0
    _
  %s23 = ssub.s32 1, %s21
  %s24 = scalar_select 0, %s23, %s21
  $region1: #{tpu_custom_call.1} parent=0
    #allocation2 [shape = 'u8[393216]{0}', space=vmem, size = 0x60000, scoped, tag = 'input window, operand 2, single buffered']
    #allocation3 [shape = 's32[2]{0}', space=sflag, size = 0x8, scoped, tag = 'scoped memory for tpu_custom_call.1']
    #allocation4 [shape = 's32[2]{0}', space=sflag, size = 0x8, scoped, tag = 'scoped memory for tpu_custom_call.1']
    #allocation5 [shape = 'u8[196608]{0}', space=vmem, size = 0x30000, scoped, tag = 'input window, operand 5, single buffered']
    #allocation6 [shape = 's32[1]{0}', space=sflag, size = 0x4, scoped, tag = 'scoped memory for tpu_custom_call.1']
    #allocation7 [shape = 'u8[393216]{0}', space=vmem, size = 0x60000, scoped, tag = 'input window, operand 6, single buffered']
    #allocation8 [shape = 'u8[196608]{0}', space=vmem, size = 0x30000, scoped, tag = 'input window, operand 9, single buffered']
    #allocation9 [shape = 's32[1]{0}', space=sflag, size = 0x4, scoped, tag = 'scoped memory for tpu_custom_call.1']
    #allocation10 [shape = 'u8[393216]{0}', space=vmem, size = 0x60000, scoped, tag = 'input window, operand 10, single buffered']
    #allocation11 [shape = 'u8[1024]{0}', space=vmem, size = 0x400, scoped, tag = 'output window, operand 0']
    %25 = vsyncpa [#allocation3], 0
    %26 = vsyncpa [#allocation6], 0
    %27 = vsyncpa [#allocation9], 0
    %28 = vsyncpa [#allocation4], 0
    %s29 = scalar_lea.sflag [#allocation4], 1
    %30 = vsyncpa %s29, 0
    loop: start=0, step=1, limit=4
    $region2: #{tpu_custom_call.1} parent=1 // loop_pre_header
      _
    $region3: #{tpu_custom_call.1} parent=1 // loop_header
      %s32 = sphi 0, %s36
      %p33 = scmp.ge.s32.totalorder %s32, 4
      %s42 = sphi 0, %s44
      %s45 = sphi 0, %s42
      %s46 = sphi 0, %s45
      %s62 = sphi 0, %s46
      %s66 = sphi 0, %s66
      %s68 = sphi 0, %s66
      %s69 = sphi 0, %s68
      %s83 = sphi 0, %s69
      %s87 = sphi 0, %s87
      %s89 = sphi 0, %s87
      %s90 = sphi 0, %s89
      %s104 = sphi 0, %s90
      %s108 = sphi 0, %s108
      %s110 = sphi 0, %s108
      %s111 = sphi 0, %s110
      %s125 = sphi 0, %s111
      %s129 = sphi 0, %s129
      %s131 = sphi 0, %s129
      %s132 = sphi 0, %s131
      %s146 = sphi 0, %s132
      %s150 = sphi 0, %s150
      %s152 = sphi 0, %s150
      %s153 = sphi 0, %s152
      %s167 = sphi 0, %s153
      %s171 = sphi 0, %s171
      %s173 = sphi 0, %s171
      %s174 = sphi 0, %s173
      %s188 = sphi 0, %s174
      %s192 = sphi 0, %s192
      %s194 = sphi 0, %s192
      %s195 = sphi 0, %s194
      %s209 = sphi 0, %s195
      %s213 = sphi 0, %s213
      %s215 = sphi 0, %s213
      %s216 = sphi 0, %s215
      %s230 = sphi 0, %s216
      %s234 = sphi 0, %s234
      %s236 = sphi 0, %s234
      %s237 = sphi 0, %s236
      %s251 = sphi 0, %s237
      %s255 = sphi 0, %s255
      %s257 = sphi 0, %s255
      %s258 = sphi 0, %s257
      %s272 = sphi 0, %s258
      %s276 = sphi 0, %s276
      %s278 = sphi 0, %s276
      %s279 = sphi 0, %s278
      %s293 = sphi 0, %s279
      %s297 = sphi 0, %s297
      %s299 = sphi 0, %s297
      %s300 = sphi 0, %s299
      %s314 = sphi 0, %s300
      %s318 = sphi 0, %s318
      %s320 = sphi 0, %s318
      %s321 = sphi 0, %s320
      %s335 = sphi 0, %s321
      %s339 = sphi 0, %s339
      %s341 = sphi 0, %s339
      %s342 = sphi 0, %s341
      %s356 = sphi 0, %s342
      %s360 = sphi 0, %s360
      %s362 = sphi 0, %s360
      %s363 = sphi 0, %s362
      %s377 = sphi 0, %s363
      %s381 = sphi 0, %s381
      %s383 = sphi 0, %s381
      %s384 = sphi 0, %s383
      %s398 = sphi 0, %s384
      %s402 = sphi 0, %s402
      %s404 = sphi 0, %s402
      %s405 = sphi 0, %s404
      %s419 = sphi 0, %s405
      %s423 = sphi 0, %s423
      %s425 = sphi 0, %s423
      %s426 = sphi 0, %s425
      %s440 = sphi 0, %s426
      %s444 = sphi 0, %s444
      %s446 = sphi 0, %s444
      %s447 = sphi 0, %s446
      %s461 = sphi 0, %s447
      %s467 = sphi 0, %s469
      %s470 = sphi 0, %s467
      %s471 = sphi 0, %s470
      %s487 = sphi 0, %s471
    $region4: #{tpu_custom_call.1} parent=1 // loop_header_branch
      %35 = sbr.rel (%p33) target = $region8
    $region5: #{tpu_custom_call.1} parent=1 // loop_body
      %s37 = ssub.s32 %s32, 1
      %s38 = ssub.s32 %s32, 2
      %s39 = sadd.s32 %s32, 1
      %s40 = ssub.s32 %s32, %s39
      %p41 = scmp.eq.s32.totalorder %s40, 0
      %s43 = sadd.s32 %s42, 1
      %s44 = scalar_select %p41, %s42, %s43
      %p47 = pneg %p41
      %p48 = scmp.eq.s32.totalorder %s32, 1
      %p49 = por %p47, %p48
      %p50 = scmp.ne.s32.totalorder %s42, %s45
      %p51 = scmp.eq.s32.totalorder %s32, 0
      %p52 = por %p50, %p51
      %p53 = scmp.ne.s32.totalorder %s42, %s45
      %p54 = scmp.eq.s32.totalorder %s37, 1
      %p55 = por %p53, %p54
      %p56 = scmp.ne.s32.totalorder %s45, %s46
      %p57 = scmp.eq.s32.totalorder %s37, 0
      %p58 = por %p56, %p57
      %p59 = scmp.ne.s32.totalorder %s45, %s46
      %p60 = scmp.eq.s32.totalorder %s38, 1
      %p61 = por %p59, %p60
      %p63 = scmp.ne.s32.totalorder %s46, %s62
      %p64 = scmp.eq.s32.totalorder %s38, 0
      %p65 = por %p63, %p64
      %s67 = sadd.s32 %s66, 1
      %p70 = scmp.eq.s32.totalorder %s32, 1
      %p71 = scmp.ne.s32.totalorder %s66, %s68
      %p72 = scmp.eq.s32.totalorder %s32, 0
      %p73 = por %p71, %p72
      %p74 = scmp.ne.s32.totalorder %s66, %s68
      %p75 = scmp.eq.s32.totalorder %s37, 1
      %p76 = por %p74, %p75
      %p77 = scmp.ne.s32.totalorder %s68, %s69
      %p78 = scmp.eq.s32.totalorder %s37, 0
      %p79 = por %p77, %p78
      %p80 = scmp.ne.s32.totalorder %s68, %s69
      %p81 = scmp.eq.s32.totalorder %s38, 1
      %p82 = por %p80, %p81
      %p84 = scmp.ne.s32.totalorder %s69, %s83
      %p85 = scmp.eq.s32.totalorder %s38, 0
      %p86 = por %p84, %p85
      %s88 = sadd.s32 %s87, 1
      %p91 = scmp.eq.s32.totalorder %s32, 1
      %p92 = scmp.ne.s32.totalorder %s87, %s89
      %p93 = scmp.eq.s32.totalorder %s32, 0
      %p94 = por %p92, %p93
      %p95 = scmp.ne.s32.totalorder %s87, %s89
      %p96 = scmp.eq.s32.totalorder %s37, 1
      %p97 = por %p95, %p96
      %p98 = scmp.ne.s32.totalorder %s89, %s90
      %p99 = scmp.eq.s32.totalorder %s37, 0
      %p100 = por %p98, %p99
      %p101 = scmp.ne.s32.totalorder %s89, %s90
      %p102 = scmp.eq.s32.totalorder %s38, 1
      %p103 = por %p101, %p102
      %p105 = scmp.ne.s32.totalorder %s90, %s104
      %p106 = scmp.eq.s32.totalorder %s38, 0
      %p107 = por %p105, %p106
      %s109 = sadd.s32 %s108, 1
      %p112 = scmp.eq.s32.totalorder %s32, 1
      %p113 = scmp.ne.s32.totalorder %s108, %s110
      %p114 = scmp.eq.s32.totalorder %s32, 0
      %p115 = por %p113, %p114
      %p116 = scmp.ne.s32.totalorder %s108, %s110
      %p117 = scmp.eq.s32.totalorder %s37, 1
      %p118 = por %p116, %p117
      %p119 = scmp.ne.s32.totalorder %s110, %s111
      %p120 = scmp.eq.s32.totalorder %s37, 0
      %p121 = por %p119, %p120
      %p122 = scmp.ne.s32.totalorder %s110, %s111
      %p123 = scmp.eq.s32.totalorder %s38, 1
      %p124 = por %p122, %p123
      %p126 = scmp.ne.s32.totalorder %s111, %s125
      %p127 = scmp.eq.s32.totalorder %s38, 0
      %p128 = por %p126, %p127
      %s130 = sadd.s32 %s129, 1
      %p133 = scmp.eq.s32.totalorder %s32, 1
      %p134 = scmp.ne.s32.totalorder %s129, %s131
      %p135 = scmp.eq.s32.totalorder %s32, 0
      %p136 = por %p134, %p135
      %p137 = scmp.ne.s32.totalorder %s129, %s131
      %p138 = scmp.eq.s32.totalorder %s37, 1
      %p139 = por %p137, %p138
      %p140 = scmp.ne.s32.totalorder %s131, %s132
      %p141 = scmp.eq.s32.totalorder %s37, 0
      %p142 = por %p140, %p141
      %p143 = scmp.ne.s32.totalorder %s131, %s132
      %p144 = scmp.eq.s32.totalorder %s38, 1
      %p145 = por %p143, %p144
      %p147 = scmp.ne.s32.totalorder %s132, %s146
      %p148 = scmp.eq.s32.totalorder %s38, 0
      %p149 = por %p147, %p148
      %s151 = sadd.s32 %s150, 1
      %p154 = scmp.eq.s32.totalorder %s32, 1
      %p155 = scmp.ne.s32.totalorder %s150, %s152
      %p156 = scmp.eq.s32.totalorder %s32, 0
      %p157 = por %p155, %p156
      %p158 = scmp.ne.s32.totalorder %s150, %s152
      %p159 = scmp.eq.s32.totalorder %s37, 1
      %p160 = por %p158, %p159
      %p161 = scmp.ne.s32.totalorder %s152, %s153
      %p162 = scmp.eq.s32.totalorder %s37, 0
      %p163 = por %p161, %p162
      %p164 = scmp.ne.s32.totalorder %s152, %s153
      %p165 = scmp.eq.s32.totalorder %s38, 1
      %p166 = por %p164, %p165
      %p168 = scmp.ne.s32.totalorder %s153, %s167
      %p169 = scmp.eq.s32.totalorder %s38, 0
      %p170 = por %p168, %p169
      %s172 = sadd.s32 %s171, 1
      %p175 = scmp.eq.s32.totalorder %s32, 1
      %p176 = scmp.ne.s32.totalorder %s171, %s173
      %p177 = scmp.eq.s32.totalorder %s32, 0
      %p178 = por %p176, %p177
      %p179 = scmp.ne.s32.totalorder %s171, %s173
      %p180 = scmp.eq.s32.totalorder %s37, 1
      %p181 = por %p179, %p180
      %p182 = scmp.ne.s32.totalorder %s173, %s174
      %p183 = scmp.eq.s32.totalorder %s37, 0
      %p184 = por %p182, %p183
      %p185 = scmp.ne.s32.totalorder %s173, %s174
      %p186 = scmp.eq.s32.totalorder %s38, 1
      %p187 = por %p185, %p186
      %p189 = scmp.ne.s32.totalorder %s174, %s188
      %p190 = scmp.eq.s32.totalorder %s38, 0
      %p191 = por %p189, %p190
      %s193 = sadd.s32 %s192, 1
      %p196 = scmp.eq.s32.totalorder %s32, 1
      %p197 = scmp.ne.s32.totalorder %s192, %s194
      %p198 = scmp.eq.s32.totalorder %s32, 0
      %p199 = por %p197, %p198
      %p200 = scmp.ne.s32.totalorder %s192, %s194
      %p201 = scmp.eq.s32.totalorder %s37, 1
      %p202 = por %p200, %p201
      %p203 = scmp.ne.s32.totalorder %s194, %s195
      %p204 = scmp.eq.s32.totalorder %s37, 0
      %p205 = por %p203, %p204
      %p206 = scmp.ne.s32.totalorder %s194, %s195
      %p207 = scmp.eq.s32.totalorder %s38, 1
      %p208 = por %p206, %p207
      %p210 = scmp.ne.s32.totalorder %s195, %s209
      %p211 = scmp.eq.s32.totalorder %s38, 0
      %p212 = por %p210, %p211
      %s214 = sadd.s32 %s213, 1
      %p217 = scmp.eq.s32.totalorder %s32, 1
      %p218 = scmp.ne.s32.totalorder %s213, %s215
      %p219 = scmp.eq.s32.totalorder %s32, 0
      %p220 = por %p218, %p219
      %p221 = scmp.ne.s32.totalorder %s213, %s215
      %p222 = scmp.eq.s32.totalorder %s37, 1
      %p223 = por %p221, %p222
      %p224 = scmp.ne.s32.totalorder %s215, %s216
      %p225 = scmp.eq.s32.totalorder %s37, 0
      %p226 = por %p224, %p225
      %p227 = scmp.ne.s32.totalorder %s215, %s216
      %p228 = scmp.eq.s32.totalorder %s38, 1
      %p229 = por %p227, %p228
      %p231 = scmp.ne.s32.totalorder %s216, %s230
      %p232 = scmp.eq.s32.totalorder %s38, 0
      %p233 = por %p231, %p232
      %s235 = sadd.s32 %s234, 1
      %p238 = scmp.eq.s32.totalorder %s32, 1
      %p239 = scmp.ne.s32.totalorder %s234, %s236
      %p240 = scmp.eq.s32.totalorder %s32, 0
      %p241 = por %p239, %p240
      %p242 = scmp.ne.s32.totalorder %s234, %s236
      %p243 = scmp.eq.s32.totalorder %s37, 1
      %p244 = por %p242, %p243
      %p245 = scmp.ne.s32.totalorder %s236, %s237
      %p246 = scmp.eq.s32.totalorder %s37, 0
      %p247 = por %p245, %p246
      %p248 = scmp.ne.s32.totalorder %s236, %s237
      %p249 = scmp.eq.s32.totalorder %s38, 1
      %p250 = por %p248, %p249
      %p252 = scmp.ne.s32.totalorder %s237, %s251
      %p253 = scmp.eq.s32.totalorder %s38, 0
      %p254 = por %p252, %p253
      %s256 = sadd.s32 %s255, 1
      %p259 = scmp.eq.s32.totalorder %s32, 1
      %p260 = scmp.ne.s32.totalorder %s255, %s257
      %p261 = scmp.eq.s32.totalorder %s32, 0
      %p262 = por %p260, %p261
      %p263 = scmp.ne.s32.totalorder %s255, %s257
      %p264 = scmp.eq.s32.totalorder %s37, 1
      %p265 = por %p263, %p264
      %p266 = scmp.ne.s32.totalorder %s257, %s258
      %p267 = scmp.eq.s32.totalorder %s37, 0
      %p268 = por %p266, %p267
      %p269 = scmp.ne.s32.totalorder %s257, %s258
      %p270 = scmp.eq.s32.totalorder %s38, 1
      %p271 = por %p269, %p270
      %p273 = scmp.ne.s32.totalorder %s258, %s272
      %p274 = scmp.eq.s32.totalorder %s38, 0
      %p275 = por %p273, %p274
      %s277 = sadd.s32 %s276, 1
      %p280 = scmp.eq.s32.totalorder %s32, 1
      %p281 = scmp.ne.s32.totalorder %s276, %s278
      %p282 = scmp.eq.s32.totalorder %s32, 0
      %p283 = por %p281, %p282
      %p284 = scmp.ne.s32.totalorder %s276, %s278
      %p285 = scmp.eq.s32.totalorder %s37, 1
      %p286 = por %p284, %p285
      %p287 = scmp.ne.s32.totalorder %s278, %s279
      %p288 = scmp.eq.s32.totalorder %s37, 0
      %p289 = por %p287, %p288
      %p290 = scmp.ne.s32.totalorder %s278, %s279
      %p291 = scmp.eq.s32.totalorder %s38, 1
      %p292 = por %p290, %p291
      %p294 = scmp.ne.s32.totalorder %s279, %s293
      %p295 = scmp.eq.s32.totalorder %s38, 0
      %p296 = por %p294, %p295
      %s298 = sadd.s32 %s297, 1
      %p301 = scmp.eq.s32.totalorder %s32, 1
      %p302 = scmp.ne.s32.totalorder %s297, %s299
      %p303 = scmp.eq.s32.totalorder %s32, 0
      %p304 = por %p302, %p303
      %p305 = scmp.ne.s32.totalorder %s297, %s299
      %p306 = scmp.eq.s32.totalorder %s37, 1
      %p307 = por %p305, %p306
      %p308 = scmp.ne.s32.totalorder %s299, %s300
      %p309 = scmp.eq.s32.totalorder %s37, 0
      %p310 = por %p308, %p309
      %p311 = scmp.ne.s32.totalorder %s299, %s300
      %p312 = scmp.eq.s32.totalorder %s38, 1
      %p313 = por %p311, %p312
      %p315 = scmp.ne.s32.totalorder %s300, %s314
      %p316 = scmp.eq.s32.totalorder %s38, 0
      %p317 = por %p315, %p316
      %s319 = sadd.s32 %s318, 1
      %p322 = scmp.eq.s32.totalorder %s32, 1
      %p323 = scmp.ne.s32.totalorder %s318, %s320
      %p324 = scmp.eq.s32.totalorder %s32, 0
      %p325 = por %p323, %p324
      %p326 = scmp.ne.s32.totalorder %s318, %s320
      %p327 = scmp.eq.s32.totalorder %s37, 1
      %p328 = por %p326, %p327
      %p329 = scmp.ne.s32.totalorder %s320, %s321
      %p330 = scmp.eq.s32.totalorder %s37, 0
      %p331 = por %p329, %p330
      %p332 = scmp.ne.s32.totalorder %s320, %s321
      %p333 = scmp.eq.s32.totalorder %s38, 1
      %p334 = por %p332, %p333
      %p336 = scmp.ne.s32.totalorder %s321, %s335
      %p337 = scmp.eq.s32.totalorder %s38, 0
      %p338 = por %p336, %p337
      %s340 = sadd.s32 %s339, 1
      %p343 = scmp.eq.s32.totalorder %s32, 1
      %p344 = scmp.ne.s32.totalorder %s339, %s341
      %p345 = scmp.eq.s32.totalorder %s32, 0
      %p346 = por %p344, %p345
      %p347 = scmp.ne.s32.totalorder %s339, %s341
      %p348 = scmp.eq.s32.totalorder %s37, 1
      %p349 = por %p347, %p348
      %p350 = scmp.ne.s32.totalorder %s341, %s342
      %p351 = scmp.eq.s32.totalorder %s37, 0
      %p352 = por %p350, %p351
      %p353 = scmp.ne.s32.totalorder %s341, %s342
      %p354 = scmp.eq.s32.totalorder %s38, 1
      %p355 = por %p353, %p354
      %p357 = scmp.ne.s32.totalorder %s342, %s356
      %p358 = scmp.eq.s32.totalorder %s38, 0
      %p359 = por %p357, %p358
      %s361 = sadd.s32 %s360, 1
      %p364 = scmp.eq.s32.totalorder %s32, 1
      %p365 = scmp.ne.s32.totalorder %s360, %s362
      %p366 = scmp.eq.s32.totalorder %s32, 0
      %p367 = por %p365, %p366
      %p368 = scmp.ne.s32.totalorder %s360, %s362
      %p369 = scmp.eq.s32.totalorder %s37, 1
      %p370 = por %p368, %p369
      %p371 = scmp.ne.s32.totalorder %s362, %s363
      %p372 = scmp.eq.s32.totalorder %s37, 0
      %p373 = por %p371, %p372
      %p374 = scmp.ne.s32.totalorder %s362, %s363
      %p375 = scmp.eq.s32.totalorder %s38, 1
      %p376 = por %p374, %p375
      %p378 = scmp.ne.s32.totalorder %s363, %s377
      %p379 = scmp.eq.s32.totalorder %s38, 0
      %p380 = por %p378, %p379
      %s382 = sadd.s32 %s381, 1
      %p385 = scmp.eq.s32.totalorder %s32, 1
      %p386 = scmp.ne.s32.totalorder %s381, %s383
      %p387 = scmp.eq.s32.totalorder %s32, 0
      %p388 = por %p386, %p387
      %p389 = scmp.ne.s32.totalorder %s381, %s383
      %p390 = scmp.eq.s32.totalorder %s37, 1
      %p391 = por %p389, %p390
      %p392 = scmp.ne.s32.totalorder %s383, %s384
      %p393 = scmp.eq.s32.totalorder %s37, 0
      %p394 = por %p392, %p393
      %p395 = scmp.ne.s32.totalorder %s383, %s384
      %p396 = scmp.eq.s32.totalorder %s38, 1
      %p397 = por %p395, %p396
      %p399 = scmp.ne.s32.totalorder %s384, %s398
      %p400 = scmp.eq.s32.totalorder %s38, 0
      %p401 = por %p399, %p400
      %s403 = sadd.s32 %s402, 1
      %p406 = scmp.eq.s32.totalorder %s32, 1
      %p407 = scmp.ne.s32.totalorder %s402, %s404
      %p408 = scmp.eq.s32.totalorder %s32, 0
      %p409 = por %p407, %p408
      %p410 = scmp.ne.s32.totalorder %s402, %s404
      %p411 = scmp.eq.s32.totalorder %s37, 1
      %p412 = por %p410, %p411
      %p413 = scmp.ne.s32.totalorder %s404, %s405
      %p414 = scmp.eq.s32.totalorder %s37, 0
      %p415 = por %p413, %p414
      %p416 = scmp.ne.s32.totalorder %s404, %s405
      %p417 = scmp.eq.s32.totalorder %s38, 1
      %p418 = por %p416, %p417
      %p420 = scmp.ne.s32.totalorder %s405, %s419
      %p421 = scmp.eq.s32.totalorder %s38, 0
      %p422 = por %p420, %p421
      %s424 = sadd.s32 %s423, 1
      %p427 = scmp.eq.s32.totalorder %s32, 1
      %p428 = scmp.ne.s32.totalorder %s423, %s425
      %p429 = scmp.eq.s32.totalorder %s32, 0
      %p430 = por %p428, %p429
      %p431 = scmp.ne.s32.totalorder %s423, %s425
      %p432 = scmp.eq.s32.totalorder %s37, 1
      %p433 = por %p431, %p432
      %p434 = scmp.ne.s32.totalorder %s425, %s426
      %p435 = scmp.eq.s32.totalorder %s37, 0
      %p436 = por %p434, %p435
      %p437 = scmp.ne.s32.totalorder %s425, %s426
      %p438 = scmp.eq.s32.totalorder %s38, 1
      %p439 = por %p437, %p438
      %p441 = scmp.ne.s32.totalorder %s426, %s440
      %p442 = scmp.eq.s32.totalorder %s38, 0
      %p443 = por %p441, %p442
      %s445 = sadd.s32 %s444, 1
      %p448 = scmp.eq.s32.totalorder %s32, 1
      %p449 = scmp.ne.s32.totalorder %s444, %s446
      %p450 = scmp.eq.s32.totalorder %s32, 0
      %p451 = por %p449, %p450
      %p452 = scmp.ne.s32.totalorder %s444, %s446
      %p453 = scmp.eq.s32.totalorder %s37, 1
      %p454 = por %p452, %p453
      %p455 = scmp.ne.s32.totalorder %s446, %s447
      %p456 = scmp.eq.s32.totalorder %s37, 0
      %p457 = por %p455, %p456
      %p458 = scmp.ne.s32.totalorder %s446, %s447
      %p459 = scmp.eq.s32.totalorder %s38, 1
      %p460 = por %p458, %p459
      %p462 = scmp.ne.s32.totalorder %s447, %s461
      %p463 = scmp.eq.s32.totalorder %s38, 0
      %p464 = por %p462, %p463
      %s465 = ssub.s32 %s32, %s39
      %p466 = scmp.eq.s32.totalorder %s465, 0
      %s468 = sadd.s32 %s467, 1
      %s469 = scalar_select %p466, %s467, %s468
      %p472 = pneg %p466
      %p473 = scmp.eq.s32.totalorder %s32, 1
      %p474 = por %p472, %p473
      %p475 = scmp.ne.s32.totalorder %s467, %s470
      %p476 = scmp.eq.s32.totalorder %s32, 0
      %p477 = por %p475, %p476
      %p478 = scmp.ne.s32.totalorder %s467, %s470
      %p479 = scmp.eq.s32.totalorder %s37, 1
      %p480 = por %p478, %p479
      %p481 = scmp.ne.s32.totalorder %s470, %s471
      %p482 = scmp.eq.s32.totalorder %s37, 0
      %p483 = por %p481, %p482
      %p484 = scmp.ne.s32.totalorder %s470, %s471
      %p485 = scmp.eq.s32.totalorder %s38, 1
      %p486 = por %p484, %p485
      %p488 = scmp.ne.s32.totalorder %s471, %s487
      %p489 = scmp.eq.s32.totalorder %s38, 0
      %p490 = por %p488, %p489
      %p491 = scmp.le.s32.totalorder 1, %s32
      %p492 = scmp.lt.s32.totalorder %s32, 3
      %p493 = pnand %p491, %p492
      %p494 = pneg %p493
      // Predicated region
      $region9: #{tpu_custom_call.1} parent=5 // pred_check
        _
      $region10: #{tpu_custom_call.1} parent=5 // pred_check_branch
        %496 = sbr.rel (%p493) target = $region12
      $region11: #{tpu_custom_call.1} parent=5 // pred_region
        %s497 = ssub.s32 %s32, 1
        // Predicated region
        $region13: #{tpu_custom_call.1} parent=11 // pred_check
          %p498 = pneg %p79
        $region14: #{tpu_custom_call.1} parent=11 // pred_check_branch
          %500 = sbr.rel (%p498) target = $region16
        $region15: #{tpu_custom_call.1} parent=11 // pred_region
          _
        $region16: #{tpu_custom_call.1} parent=11 // pred_fallthru
          _
        // Predicated region
        $region17: #{tpu_custom_call.1} parent=11 // pred_check
          %p501 = pneg %p100
        $region18: #{tpu_custom_call.1} parent=11 // pred_check_branch
          %503 = sbr.rel (%p501) target = $region20
        $region19: #{tpu_custom_call.1} parent=11 // pred_region
          %505 = vsyncadd [#allocation3], 0
          %s506 = sshll.u32 %s2, 4
          %s507 = int_to_ptr.hbm [resolvable:$true] %s506
          %s508 = sshll.u32 [#allocation2], 4
          %s509 = int_to_ptr.vmem [resolvable:$true] %s508
          %514 = dma.hbm_to_vmem [thread:$0]  %s507, 12288, %s509, [#allocation3], 768, 768, 48
        $region20: #{tpu_custom_call.1} parent=11 // pred_fallthru
          _
        // Predicated region
        $region21: #{tpu_custom_call.1} parent=11 // pred_check
          %p515 = pneg %p121
        $region22: #{tpu_custom_call.1} parent=11 // pred_check_branch
          %517 = sbr.rel (%p515) target = $region24
        $region23: #{tpu_custom_call.1} parent=11 // pred_region
          _
        $region24: #{tpu_custom_call.1} parent=11 // pred_fallthru
          _
        // Predicated region
        $region25: #{tpu_custom_call.1} parent=11 // pred_check
          %p518 = pneg %p142
        $region26: #{tpu_custom_call.1} parent=11 // pred_check_branch
          %520 = sbr.rel (%p518) target = $region28
        $region27: #{tpu_custom_call.1} parent=11 // pred_region
          _
        $region28: #{tpu_custom_call.1} parent=11 // pred_fallthru
          _
        // Predicated region
        $region29: #{tpu_custom_call.1} parent=11 // pred_check
          %p521 = pneg %p163
        $region30: #{tpu_custom_call.1} parent=11 // pred_check_branch
          %523 = sbr.rel (%p521) target = $region32
        $region31: #{tpu_custom_call.1} parent=11 // pred_region
          %525 = vsyncadd [#allocation6], 0
          %s526 = sshll.u32 %s5, 4
          %s527 = int_to_ptr.hbm [resolvable:$true] %s526
          %s528 = sshll.u32 [#allocation5], 4
          %s529 = int_to_ptr.vmem [resolvable:$true] %s528
          %534 = dma.hbm_to_vmem [thread:$0]  %s527, 6144, %s529, [#allocation6], 128, 128, 8
        $region32: #{tpu_custom_call.1} parent=11 // pred_fallthru
          _
        // Predicated region
        $region33: #{tpu_custom_call.1} parent=11 // pred_check
          %p535 = pneg %p184
        $region34: #{tpu_custom_call.1} parent=11 // pred_check_branch
          %537 = sbr.rel (%p535) target = $region36
        $region35: #{tpu_custom_call.1} parent=11 // pred_region
          %539 = vsyncadd [#allocation6], 0
          %s540 = sshll.u32 %s6, 4
          %s541 = int_to_ptr.hbm [resolvable:$true] %s540
          %s542 = sshll.u32 [#allocation7], 4
          %s543 = int_to_ptr.vmem [resolvable:$true] %s542
          %548 = dma.hbm_to_vmem [thread:$0]  %s541, 12288, %s543, [#allocation6], 768, 768, 48
        $region36: #{tpu_custom_call.1} parent=11 // pred_fallthru
          _
        // Predicated region
        $region37: #{tpu_custom_call.1} parent=11 // pred_check
          %p549 = pneg %p205
        $region38: #{tpu_custom_call.1} parent=11 // pred_check_branch
          %551 = sbr.rel (%p549) target = $region40
        $region39: #{tpu_custom_call.1} parent=11 // pred_region
          _
        $region40: #{tpu_custom_call.1} parent=11 // pred_fallthru
          _
        // Predicated region
        $region41: #{tpu_custom_call.1} parent=11 // pred_check
          %p552 = pneg %p226
        $region42: #{tpu_custom_call.1} parent=11 // pred_check_branch
          %554 = sbr.rel (%p552) target = $region44
        $region43: #{tpu_custom_call.1} parent=11 // pred_region
          _
        $region44: #{tpu_custom_call.1} parent=11 // pred_fallthru
          _
        // Predicated region
        $region45: #{tpu_custom_call.1} parent=11 // pred_check
          %p555 = pneg %p247
        $region46: #{tpu_custom_call.1} parent=11 // pred_check_branch
          %557 = sbr.rel (%p555) target = $region48
        $region47: #{tpu_custom_call.1} parent=11 // pred_region
          %559 = vsyncadd [#allocation9], 0
          %s560 = sshll.u32 %s9, 4
          %s561 = int_to_ptr.hbm [resolvable:$true] %s560
          %s562 = sshll.u32 [#allocation8], 4
          %s563 = int_to_ptr.vmem [resolvable:$true] %s562
          %568 = dma.hbm_to_vmem [thread:$0]  %s561, 6144, %s563, [#allocation9], 128, 128, 8
        $region48: #{tpu_custom_call.1} parent=11 // pred_fallthru
          _
        // Predicated region
        $region49: #{tpu_custom_call.1} parent=11 // pred_check
          %p569 = pneg %p268
        $region50: #{tpu_custom_call.1} parent=11 // pred_check_branch
          %571 = sbr.rel (%p569) target = $region52
        $region51: #{tpu_custom_call.1} parent=11 // pred_region
          %573 = vsyncadd [#allocation9], 0
          %s574 = sshll.u32 %s10, 4
          %s575 = int_to_ptr.hbm [resolvable:$true] %s574
          %s576 = sshll.u32 [#allocation10], 4
          %s577 = int_to_ptr.vmem [resolvable:$true] %s576
          %582 = dma.hbm_to_vmem [thread:$0]  %s575, 12288, %s577, [#allocation9], 768, 768, 48
        $region52: #{tpu_custom_call.1} parent=11 // pred_fallthru
          _
        // Predicated region
        $region53: #{tpu_custom_call.1} parent=11 // pred_check
          %p583 = pneg %p289
        $region54: #{tpu_custom_call.1} parent=11 // pred_check_branch
          %585 = sbr.rel (%p583) target = $region56
        $region55: #{tpu_custom_call.1} parent=11 // pred_region
          _
        $region56: #{tpu_custom_call.1} parent=11 // pred_fallthru
          _
        // Predicated region
        $region57: #{tpu_custom_call.1} parent=11 // pred_check
          %p586 = pneg %p310
        $region58: #{tpu_custom_call.1} parent=11 // pred_check_branch
          %588 = sbr.rel (%p586) target = $region60
        $region59: #{tpu_custom_call.1} parent=11 // pred_region
          _
        $region60: #{tpu_custom_call.1} parent=11 // pred_fallthru
          _
        // Predicated region
        $region61: #{tpu_custom_call.1} parent=11 // pred_check
          %p589 = pneg %p331
        $region62: #{tpu_custom_call.1} parent=11 // pred_check_branch
          %591 = sbr.rel (%p589) target = $region64
        $region63: #{tpu_custom_call.1} parent=11 // pred_region
          _
        $region64: #{tpu_custom_call.1} parent=11 // pred_fallthru
          _
        // Predicated region
        $region65: #{tpu_custom_call.1} parent=11 // pred_check
          %p592 = pneg %p352
        $region66: #{tpu_custom_call.1} parent=11 // pred_check_branch
          %594 = sbr.rel (%p592) target = $region68
        $region67: #{tpu_custom_call.1} parent=11 // pred_region
          _
        $region68: #{tpu_custom_call.1} parent=11 // pred_fallthru
          _
        // Predicated region
        $region69: #{tpu_custom_call.1} parent=11 // pred_check
          %p595 = pneg %p373
        $region70: #{tpu_custom_call.1} parent=11 // pred_check_branch
          %597 = sbr.rel (%p595) target = $region72
        $region71: #{tpu_custom_call.1} parent=11 // pred_region
          _
        $region72: #{tpu_custom_call.1} parent=11 // pred_fallthru
          _
        // Predicated region
        $region73: #{tpu_custom_call.1} parent=11 // pred_check
          %p598 = pneg %p394
        $region74: #{tpu_custom_call.1} parent=11 // pred_check_branch
          %600 = sbr.rel (%p598) target = $region76
        $region75: #{tpu_custom_call.1} parent=11 // pred_region
          _
        $region76: #{tpu_custom_call.1} parent=11 // pred_fallthru
          _
        // Predicated region
        $region77: #{tpu_custom_call.1} parent=11 // pred_check
          %p601 = pneg %p415
        $region78: #{tpu_custom_call.1} parent=11 // pred_check_branch
          %603 = sbr.rel (%p601) target = $region80
        $region79: #{tpu_custom_call.1} parent=11 // pred_region
          _
        $region80: #{tpu_custom_call.1} parent=11 // pred_fallthru
          _
        // Predicated region
        $region81: #{tpu_custom_call.1} parent=11 // pred_check
          %p604 = pneg %p436
        $region82: #{tpu_custom_call.1} parent=11 // pred_check_branch
          %606 = sbr.rel (%p604) target = $region84
        $region83: #{tpu_custom_call.1} parent=11 // pred_region
          _
        $region84: #{tpu_custom_call.1} parent=11 // pred_fallthru
          _
        // Predicated region
        $region85: #{tpu_custom_call.1} parent=11 // pred_check
          %p607 = pneg %p457
        $region86: #{tpu_custom_call.1} parent=11 // pred_check_branch
          %609 = sbr.rel (%p607) target = $region88
        $region87: #{tpu_custom_call.1} parent=11 // pred_region
          _
        $region88: #{tpu_custom_call.1} parent=11 // pred_fallthru
          _
      $region12: #{tpu_custom_call.1} parent=5 // pred_fallthru
        _
      %p610 = scmp.lt.s32.totalorder %s32, 2
      // Predicated region
      $region89: #{tpu_custom_call.1} parent=5 // pred_check
        %p611 = pneg %p610
      $region90: #{tpu_custom_call.1} parent=5 // pred_check_branch
        %613 = sbr.rel (%p611) target = $region92
      $region91: #{tpu_custom_call.1} parent=5 // pred_region
        // Predicated region
        $region93: #{tpu_custom_call.1} parent=91 // pred_check
          %p614 = pneg %p52
        $region94: #{tpu_custom_call.1} parent=91 // pred_check_branch
          %616 = sbr.rel (%p614) target = $region96
        $region95: #{tpu_custom_call.1} parent=91 // pred_region
          %p617 = scmp.lt.s32.totalorder %s32, 1
          %s618 = scalar_select %p617, %s32, 1
          %s619 = smul.addr %s618, 8
          %s620 = scalar_lea.vmem %s0, %s619
        $region96: #{tpu_custom_call.1} parent=91 // pred_fallthru
          _
      $region92: #{tpu_custom_call.1} parent=5 // pred_fallthru
        _
      %p621 = scmp.le.s32.totalorder 1, %s32
      %p622 = scmp.lt.s32.totalorder %s32, 3
      %p623 = pnand %p621, %p622
      %p624 = pneg %p623
      // Predicated region
      $region97: #{tpu_custom_call.1} parent=5 // pred_check
        _
      $region98: #{tpu_custom_call.1} parent=5 // pred_check_branch
        %626 = sbr.rel (%p623) target = $region100
      $region99: #{tpu_custom_call.1} parent=5 // pred_region
        %s627 = ssub.s32 %s32, 1
        // Predicated region
        $region101: #{tpu_custom_call.1} parent=99 // pred_check
          %p628 = pneg %p100
        $region102: #{tpu_custom_call.1} parent=99 // pred_check_branch
          %630 = sbr.rel (%p628) target = $region104
        $region103: #{tpu_custom_call.1} parent=99 // pred_region
          %632 = dma.done [#allocation3], 12288
        $region104: #{tpu_custom_call.1} parent=99 // pred_fallthru
          _
        // Predicated region
        $region105: #{tpu_custom_call.1} parent=99 // pred_check
          %p633 = pneg %p163
        $region106: #{tpu_custom_call.1} parent=99 // pred_check_branch
          %635 = sbr.rel (%p633) target = $region108
        $region107: #{tpu_custom_call.1} parent=99 // pred_region
          %637 = dma.done [#allocation6], 6144
        $region108: #{tpu_custom_call.1} parent=99 // pred_fallthru
          _
        // Predicated region
        $region109: #{tpu_custom_call.1} parent=99 // pred_check
          %p638 = pneg %p184
        $region110: #{tpu_custom_call.1} parent=99 // pred_check_branch
          %640 = sbr.rel (%p638) target = $region112
        $region111: #{tpu_custom_call.1} parent=99 // pred_region
          %642 = dma.done [#allocation6], 12288
        $region112: #{tpu_custom_call.1} parent=99 // pred_fallthru
          _
        // Predicated region
        $region113: #{tpu_custom_call.1} parent=99 // pred_check
          %p643 = pneg %p247
        $region114: #{tpu_custom_call.1} parent=99 // pred_check_branch
          %645 = sbr.rel (%p643) target = $region116
        $region115: #{tpu_custom_call.1} parent=99 // pred_region
          %647 = dma.done [#allocation9], 6144
        $region116: #{tpu_custom_call.1} parent=99 // pred_fallthru
          _
        // Predicated region
        $region117: #{tpu_custom_call.1} parent=99 // pred_check
          %p648 = pneg %p268
        $region118: #{tpu_custom_call.1} parent=99 // pred_check_branch
          %650 = sbr.rel (%p648) target = $region120
        $region119: #{tpu_custom_call.1} parent=99 // pred_region
          %652 = dma.done [#allocation9], 12288
        $region120: #{tpu_custom_call.1} parent=99 // pred_fallthru
          _
        %p653 = scmp.lt.s32.totalorder %s37, 1
        %s654 = scalar_select %p653, %s37, 1
        %s655 = smul.addr %s654, 8
        %s656 = scalar_lea.vmem %s0, %s655
        %p657 = pneg %p58
        %p658 = pneg %p55
        %p659 = pneg %p79
        %p660 = pneg %p76
        %p661 = pneg %p100
        %p662 = pneg %p97
        %p663 = pneg %p121
        %p664 = pneg %p118
        %p665 = pneg %p142
        %p666 = pneg %p139
        %p667 = pneg %p163
        %p668 = pneg %p160
        %p669 = pneg %p184
        %p670 = pneg %p181
        %p671 = pneg %p205
        %p672 = pneg %p202
        %p673 = pneg %p226
        %p674 = pneg %p223
        %p675 = pneg %p247
        %p676 = pneg %p244
        %p677 = pneg %p268
        %p678 = pneg %p265
        %p679 = pneg %p289
        %p680 = pneg %p286
        %p681 = pneg %p310
        %p682 = pneg %p307
        %p683 = pneg %p331
        %p684 = pneg %p328
        %p685 = pneg %p352
        %p686 = pneg %p349
        %p687 = pneg %p373
        %p688 = pneg %p370
        %p689 = pneg %p394
        %p690 = pneg %p391
        %p691 = pneg %p415
        %p692 = pneg %p412
        %p693 = pneg %p436
        %p694 = pneg %p433
        %p695 = pneg %p457
        %p696 = pneg %p454
        %p697 = pneg %p483
        %p698 = pneg %p480
        %s699 = sand.u32 %s470, 1
        %s700 = scalar_lea.sflag [#allocation4], %s699
        %s701 = sand.u32 %s470, 1
        %s702 = scalar_lea.vmem [#allocation11], %s701
        %p703 = scmp.lt.s32.totalorder %s37, 1
        %s704 = scalar_select %p703, %s37, 1
        %s705 = smul.addr %s704, 8
        %s706 = scalar_lea.vmem %s0, %s705
        %v707 = vld [vmem:[%s706] sm:$0xff]
        %v708 = vld [vmem:[%s1] sm:$0xff]
        %v709 = vld [vmem:[%s1 + $0x8] sm:$0xff]
        %v710 = vld [vmem:[%s1 + $0x10] sm:$0xff]
        %v711 = vld [vmem:[%s1 + $0x18] sm:$0xff]
        %v712 = vld [vmem:[%s1 + $0x20] sm:$0xff]
        %v713 = vld [vmem:[%s1 + $0x28] sm:$0xff]
        %v714 = vld [vmem:[#allocation2] sm:$0xff]
        %v715 = vld [vmem:[#allocation2 + $0x8] sm:$0xff]
        %v716 = vld [vmem:[#allocation2 + $0x10] sm:$0xff]
        %v717 = vld [vmem:[#allocation2 + $0x18] sm:$0xff]
        %v718 = vld [vmem:[#allocation2 + $0x20] sm:$0xff]
        %v719 = vld [vmem:[#allocation2 + $0x28] sm:$0xff]
        %v720 = vld [vmem:[#allocation2 + $0x30] sm:$0xff]
        %v721 = vld [vmem:[#allocation2 + $0x38] sm:$0xff]
        %v722 = vld [vmem:[#allocation2 + $0x40] sm:$0xff]
        %v723 = vld [vmem:[#allocation2 + $0x48] sm:$0xff]
        %v724 = vld [vmem:[#allocation2 + $0x50] sm:$0xff]
        %v725 = vld [vmem:[#allocation2 + $0x58] sm:$0xff]
        %v726 = vld [vmem:[#allocation2 + $0x60] sm:$0xff]
        %v727 = vld [vmem:[#allocation2 + $0x68] sm:$0xff]
        %v728 = vld [vmem:[#allocation2 + $0x70] sm:$0xff]
        %v729 = vld [vmem:[#allocation2 + $0x78] sm:$0xff]
        %v730 = vld [vmem:[#allocation2 + $0x80] sm:$0xff]
        %v731 = vld [vmem:[#allocation2 + $0x88] sm:$0xff]
        %v732 = vld [vmem:[#allocation2 + $0x90] sm:$0xff]
        %v733 = vld [vmem:[#allocation2 + $0x98] sm:$0xff]
        %v734 = vld [vmem:[#allocation2 + $0xa0] sm:$0xff]
        %v735 = vld [vmem:[#allocation2 + $0xa8] sm:$0xff]
        %v736 = vld [vmem:[#allocation2 + $0xb0] sm:$0xff]
        %v737 = vld [vmem:[#allocation2 + $0xb8] sm:$0xff]
        %v738 = vld [vmem:[#allocation2 + $0xc0] sm:$0xff]
        %v739 = vld [vmem:[#allocation2 + $0xc8] sm:$0xff]
        %v740 = vld [vmem:[#allocation2 + $0xd0] sm:$0xff]
        %v741 = vld [vmem:[#allocation2 + $0xd8] sm:$0xff]
        %v742 = vld [vmem:[#allocation2 + $0xe0] sm:$0xff]
        %v743 = vld [vmem:[#allocation2 + $0xe8] sm:$0xff]
        %v744 = vld [vmem:[#allocation2 + $0xf0] sm:$0xff]
        %v745 = vld [vmem:[#allocation2 + $0xf8] sm:$0xff]
        %v746 = vld [vmem:[#allocation2 + $0x100] sm:$0xff]
        %v747 = vld [vmem:[#allocation2 + $0x108] sm:$0xff]
        %v748 = vld [vmem:[#allocation2 + $0x110] sm:$0xff]
        %v749 = vld [vmem:[#allocation2 + $0x118] sm:$0xff]
        %v750 = vld [vmem:[#allocation2 + $0x120] sm:$0xff]
        %v751 = vld [vmem:[#allocation2 + $0x128] sm:$0xff]
        %v752 = vld [vmem:[#allocation2 + $0x130] sm:$0xff]
        %v753 = vld [vmem:[#allocation2 + $0x138] sm:$0xff]
        %v754 = vld [vmem:[#allocation2 + $0x140] sm:$0xff]
        %v755 = vld [vmem:[#allocation2 + $0x148] sm:$0xff]
        %v756 = vld [vmem:[#allocation2 + $0x150] sm:$0xff]
        %v757 = vld [vmem:[#allocation2 + $0x158] sm:$0xff]
        %v758 = vld [vmem:[#allocation2 + $0x160] sm:$0xff]
        %v759 = vld [vmem:[#allocation2 + $0x168] sm:$0xff]
        %v760 = vld [vmem:[#allocation2 + $0x170] sm:$0xff]
        %v761 = vld [vmem:[#allocation2 + $0x178] sm:$0xff]
        %v762 = vld [vmem:[#allocation2 + $0x180] sm:$0xff]
        %v763 = vld [vmem:[#allocation2 + $0x188] sm:$0xff]
        %v764 = vld [vmem:[#allocation2 + $0x190] sm:$0xff]
        %v765 = vld [vmem:[#allocation2 + $0x198] sm:$0xff]
        %v766 = vld [vmem:[#allocation2 + $0x1a0] sm:$0xff]
        %v767 = vld [vmem:[#allocation2 + $0x1a8] sm:$0xff]
        %v768 = vld [vmem:[#allocation2 + $0x1b0] sm:$0xff]
        %v769 = vld [vmem:[#allocation2 + $0x1b8] sm:$0xff]
        %v770 = vld [vmem:[#allocation2 + $0x1c0] sm:$0xff]
        %v771 = vld [vmem:[#allocation2 + $0x1c8] sm:$0xff]
        %v772 = vld [vmem:[#allocation2 + $0x1d0] sm:$0xff]
        %v773 = vld [vmem:[#allocation2 + $0x1d8] sm:$0xff]
        %v774 = vld [vmem:[#allocation2 + $0x1e0] sm:$0xff]
        %v775 = vld [vmem:[#allocation2 + $0x1e8] sm:$0xff]
        %v776 = vld [vmem:[#allocation2 + $0x1f0] sm:$0xff]
        %v777 = vld [vmem:[#allocation2 + $0x1f8] sm:$0xff]
        %v778 = vld [vmem:[#allocation2 + $0x200] sm:$0xff]
        %v779 = vld [vmem:[#allocation2 + $0x208] sm:$0xff]
        %v780 = vld [vmem:[#allocation2 + $0x210] sm:$0xff]
        %v781 = vld [vmem:[#allocation2 + $0x218] sm:$0xff]
        %v782 = vld [vmem:[#allocation2 + $0x220] sm:$0xff]
        %v783 = vld [vmem:[#allocation2 + $0x228] sm:$0xff]
        %v784 = vld [vmem:[#allocation2 + $0x230] sm:$0xff]
        %v785 = vld [vmem:[#allocation2 + $0x238] sm:$0xff]
        %v786 = vld [vmem:[#allocation2 + $0x240] sm:$0xff]
        %v787 = vld [vmem:[#allocation2 + $0x248] sm:$0xff]
        %v788 = vld [vmem:[#allocation2 + $0x250] sm:$0xff]
        %v789 = vld [vmem:[#allocation2 + $0x258] sm:$0xff]
        %v790 = vld [vmem:[#allocation2 + $0x260] sm:$0xff]
        %v791 = vld [vmem:[#allocation2 + $0x268] sm:$0xff]
        %v792 = vld [vmem:[#allocation2 + $0x270] sm:$0xff]
        %v793 = vld [vmem:[#allocation2 + $0x278] sm:$0xff]
        %v794 = vld [vmem:[#allocation2 + $0x280] sm:$0xff]
        %v795 = vld [vmem:[#allocation2 + $0x288] sm:$0xff]
        %v796 = vld [vmem:[#allocation2 + $0x290] sm:$0xff]
        %v797 = vld [vmem:[#allocation2 + $0x298] sm:$0xff]
        %v798 = vld [vmem:[#allocation2 + $0x2a0] sm:$0xff]
        %v799 = vld [vmem:[#allocation2 + $0x2a8] sm:$0xff]
        %v800 = vld [vmem:[#allocation2 + $0x2b0] sm:$0xff]
        %v801 = vld [vmem:[#allocation2 + $0x2b8] sm:$0xff]
        %v802 = vld [vmem:[#allocation2 + $0x2c0] sm:$0xff]
        %v803 = vld [vmem:[#allocation2 + $0x2c8] sm:$0xff]
        %v804 = vld [vmem:[#allocation2 + $0x2d0] sm:$0xff]
        %v805 = vld [vmem:[#allocation2 + $0x2d8] sm:$0xff]
        %v806 = vld [vmem:[#allocation2 + $0x2e0] sm:$0xff]
        %v807 = vld [vmem:[#allocation2 + $0x2e8] sm:$0xff]
        %v808 = vld [vmem:[#allocation2 + $0x2f0] sm:$0xff]
        %v809 = vld [vmem:[#allocation2 + $0x2f8] sm:$0xff]
        %v810 = vld [vmem:[%s3] sm:$0x3f]
        %v811 = vld [vmem:[%s4] sm:$0x1f]
        %v812 = vld [vmem:[%s13] sm:$0xff]
        %v813 = vld [vmem:[%s13 + $0x8] sm:$0x3]
        %v814 = vld [vmem:[%s13 + $0x10] sm:$0xff]
        %v815 = vld [vmem:[%s13 + $0x18] sm:$0x3]
        %v816 = vld [vmem:[%s13 + $0x20] sm:$0xff]
        %v817 = vld [vmem:[%s13 + $0x28] sm:$0x3]
        %v818 = vld [vmem:[%s14] sm:$0xff]
        %v819 = vld [vmem:[%s14 + $0x8] sm:$0x3]
        %vm820 = vcmask 130048
        %v822 = vsel %vm820, %v707, 0
        %824 = vmatpush.msra.mxu0 0.0
        %825 = vmatpush.msra.mxu0 0.0
        %826 = vmatpush.msra.mxu0 0.0
        %827 = vmatpush.msra.mxu0 0.0
        %828 = vmatpush.msra.mxu0 0.0
        %829 = vmatpush.msra.mxu0 0.0
        %830 = vmatpush.msra.mxu0 0.0
        %831 = vmatpush.msra.mxu0 0.0
        %832 = vmatpush.msra.mxu0 0.0
        %833 = vmatpush.msra.mxu0 0.0
        %834 = vmatpush.msra.mxu0 0.0
        %835 = vmatpush.msra.mxu0 0.0
        %836 = vmatpush.msra.mxu0 0.0
        %837 = vmatpush.msra.mxu0 0.0
        %838 = vmatpush.msra.mxu0 %v709
        %839 = vmatpush.msra.mxu0 %v708
        %840 = vmatmul.f32.gmra.mxu0 %v822
        %v841 = vpop.f32.mrf.mxu0
        %v842 = vadd.f32 0.0, %v841
        %843 = vdwg.mxu0
        %844 = vmatpush.msra.mxu0 0.0
        %845 = vmatpush.msra.mxu0 0.0
        %846 = vmatpush.msra.mxu0 0.0
        %847 = vmatpush.msra.mxu0 0.0
        %848 = vmatpush.msra.mxu0 0.0
        %849 = vmatpush.msra.mxu0 0.0
        %850 = vmatpush.msra.mxu0 0.0
        %851 = vmatpush.msra.mxu0 0.0
        %852 = vmatpush.msra.mxu0 0.0
        %853 = vmatpush.msra.mxu0 0.0
        %854 = vmatpush.msra.mxu0 0.0
        %855 = vmatpush.msra.mxu0 0.0
        %856 = vmatpush.msra.mxu0 0.0
        %857 = vmatpush.msra.mxu0 0.0
        %858 = vmatpush.msra.mxu0 %v711
        %859 = vmatpush.msra.mxu0 %v710
        %860 = vmatmul.f32.gmra.mxu0 %v822
        %v861 = vpop.f32.mrf.mxu0
        %v862 = vadd.f32 0.0, %v861
        %863 = vdwg.mxu0
        %vm864 = vcmask 64512
        %v866 = vsel %vm864, %v814, 0
        %v869 = vsel %vm864, %v815, 0
        %871 = vmatpush.msra.mxu0 0.0
        %872 = vmatpush.msra.mxu0 0.0
        %873 = vmatpush.msra.mxu0 0.0
        %874 = vmatpush.msra.mxu0 0.0
        %875 = vmatpush.msra.mxu0 0.0
        %876 = vmatpush.msra.mxu0 0.0
        %877 = vmatpush.msra.mxu0 0.0
        %878 = vmatpush.msra.mxu0 0.0
        %879 = vmatpush.msra.mxu0 0.0
        %880 = vmatpush.msra.mxu0 0.0
        %881 = vmatpush.msra.mxu0 0.0
        %882 = vmatpush.msra.mxu0 0.0
        %883 = vmatpush.msra.mxu0 0.0
        %884 = vmatpush.msra.mxu0 0.0
        %885 = vmatpush.msra.mxu0 0.0
        %886 = vmatpush.msra.mxu0 %v862
        %887 = vmatmul.f32.gmra.mxu0 %v866
        %v888 = vpop.f32.mrf.mxu0
        %v889 = vadd.f32 0.0, %v888
        %890 = vmatmul.f32.gmra.mxu0 %v869
        %v891 = vpop.f32.mrf.mxu0
        %v892 = vadd.f32 0.0, %v891
        %893 = vdwg.mxu0
        %v895 = vsel %vm864, %v812, 0
        %v898 = vsel %vm864, %v813, 0
        %900 = vmatpush.msra.mxu0 0.0
        %901 = vmatpush.msra.mxu0 0.0
        %902 = vmatpush.msra.mxu0 0.0
        %903 = vmatpush.msra.mxu0 0.0
        %904 = vmatpush.msra.mxu0 0.0
        %905 = vmatpush.msra.mxu0 0.0
        %906 = vmatpush.msra.mxu0 0.0
        %907 = vmatpush.msra.mxu0 0.0
        %908 = vmatpush.msra.mxu0 0.0
        %909 = vmatpush.msra.mxu0 0.0
        %910 = vmatpush.msra.mxu0 0.0
        %911 = vmatpush.msra.mxu0 0.0
        %912 = vmatpush.msra.mxu0 0.0
        %913 = vmatpush.msra.mxu0 0.0
        %914 = vmatpush.msra.mxu0 0.0
        %915 = vmatpush.msra.mxu0 %v842
        %916 = vmatmul.f32.gmra.mxu0 %v895
        %v917 = vpop.f32.mrf.mxu0
        %v918 = vadd.f32 %v889, %v917
        %919 = vmatmul.f32.gmra.mxu0 %v898
        %v920 = vpop.f32.mrf.mxu0
        %v921 = vadd.f32 %v892, %v920
        %922 = vdwg.mxu0
        %923 = vmatpush.msra.mxu0 0.0
        %924 = vmatpush.msra.mxu0 0.0
        %925 = vmatpush.msra.mxu0 0.0
        %926 = vmatpush.msra.mxu0 0.0
        %927 = vmatpush.msra.mxu0 0.0
        %928 = vmatpush.msra.mxu0 0.0
        %929 = vmatpush.msra.mxu0 0.0
        %930 = vmatpush.msra.mxu0 0.0
        %931 = vmatpush.msra.mxu0 0.0
        %932 = vmatpush.msra.mxu0 0.0
        %933 = vmatpush.msra.mxu0 0.0
        %934 = vmatpush.msra.mxu0 0.0
        %935 = vmatpush.msra.mxu0 0.0
        %936 = vmatpush.msra.mxu0 0.0
        %937 = vmatpush.msra.mxu0 %v713
        %938 = vmatpush.msra.mxu0 %v712
        %939 = vmatmul.f32.gmra.mxu0 %v822
        %v940 = vpop.f32.mrf.mxu0
        %v941 = vadd.f32 0.0, %v940
        %942 = vdwg.mxu0
        %v944 = vsel %vm864, %v816, 0
        %v947 = vsel %vm864, %v817, 0
        %949 = vmatpush.msra.mxu0 0.0
        %950 = vmatpush.msra.mxu0 0.0
        %951 = vmatpush.msra.mxu0 0.0
        %952 = vmatpush.msra.mxu0 0.0
        %953 = vmatpush.msra.mxu0 0.0
        %954 = vmatpush.msra.mxu0 0.0
        %955 = vmatpush.msra.mxu0 0.0
        %956 = vmatpush.msra.mxu0 0.0
        %957 = vmatpush.msra.mxu0 0.0
        %958 = vmatpush.msra.mxu0 0.0
        %959 = vmatpush.msra.mxu0 0.0
        %960 = vmatpush.msra.mxu0 0.0
        %961 = vmatpush.msra.mxu0 0.0
        %962 = vmatpush.msra.mxu0 0.0
        %963 = vmatpush.msra.mxu0 0.0
        %964 = vmatpush.msra.mxu0 %v941
        %965 = vmatmul.f32.gmra.mxu0 %v944
        %v966 = vpop.f32.mrf.mxu0
        %v967 = vadd.f32 0.0, %v966
        %968 = vmatmul.f32.gmra.mxu0 %v947
        %v969 = vpop.f32.mrf.mxu0
        %v970 = vadd.f32 0.0, %v969
        %971 = vdwg.mxu0
        %v972 = vadd.f32 %v918, %v967
        %v973 = vadd.f32 %v921, %v970
        %v974 = vperm.slane %v811, 0
        %v975 = vadd.f32 %v972, %v974
        %v976 = vadd.f32 %v973, %v974
        %v977 = vmax.f32 %v975, 0.0
        %v978 = vmax.f32 %v976, 0.0
        %v980 = vperm.slane %v810, 0
        %v981 = vperm.slane %v810, 1
        %v982 = vperm.slane %v810, 2
        %v983 = vperm.slane %v810, 3
        %v984 = vperm.slane %v810, 4
        %v985 = vperm.slane %v810, 5
        %992 = vmatpush.msra.mxu0 %v804
        %993 = vmatpush.msra.mxu0 %v798
        %994 = vmatpush.msra.mxu0 %v792
        %995 = vmatpush.msra.mxu0 %v786
        %996 = vmatpush.msra.mxu0 %v780
        %997 = vmatpush.msra.mxu0 %v774
        %998 = vmatpush.msra.mxu0 %v768
        %999 = vmatpush.msra.mxu0 %v762
        %1000 = vmatpush.msra.mxu0 %v756
        %1001 = vmatpush.msra.mxu0 %v750
        %1002 = vmatpush.msra.mxu0 %v744
        %1003 = vmatpush.msra.mxu0 %v738
        %1004 = vmatpush.msra.mxu0 %v732
        %1005 = vmatpush.msra.mxu0 %v726
        %1006 = vmatpush.msra.mxu0 %v720
        %1007 = vmatpush.msra.mxu0 %v714
        %1008 = vmatmul.f32.gmra.mxu0 %v977
        %v1009 = vpop.f32.mrf.mxu0
        %v1010 = vadd.f32 %v980, %v1009
        %1011 = vmatmul.f32.gmra.mxu0 %v978
        %v1012 = vpop.f32.mrf.mxu0
        %v1013 = vadd.f32 %v980, %v1012
        %1014 = vdwg.mxu0
        %1015 = vmatpush.msra.mxu0 %v805
        %1016 = vmatpush.msra.mxu0 %v799
        %1017 = vmatpush.msra.mxu0 %v793
        %1018 = vmatpush.msra.mxu0 %v787
        %1019 = vmatpush.msra.mxu0 %v781
        %1020 = vmatpush.msra.mxu0 %v775
        %1021 = vmatpush.msra.mxu0 %v769
        %1022 = vmatpush.msra.mxu0 %v763
        %1023 = vmatpush.msra.mxu0 %v757
        %1024 = vmatpush.msra.mxu0 %v751
        %1025 = vmatpush.msra.mxu0 %v745
        %1026 = vmatpush.msra.mxu0 %v739
        %1027 = vmatpush.msra.mxu0 %v733
        %1028 = vmatpush.msra.mxu0 %v727
        %1029 = vmatpush.msra.mxu0 %v721
        %1030 = vmatpush.msra.mxu0 %v715
        %1031 = vmatmul.f32.gmra.mxu0 %v977
        %v1032 = vpop.f32.mrf.mxu0
        %v1033 = vadd.f32 %v981, %v1032
        %1034 = vmatmul.f32.gmra.mxu0 %v978
        %v1035 = vpop.f32.mrf.mxu0
        %v1036 = vadd.f32 %v981, %v1035
        %1037 = vdwg.mxu0
        %1038 = vmatpush.msra.mxu0 %v806
        %1039 = vmatpush.msra.mxu0 %v800
        %1040 = vmatpush.msra.mxu0 %v794
        %1041 = vmatpush.msra.mxu0 %v788
        %1042 = vmatpush.msra.mxu0 %v782
        %1043 = vmatpush.msra.mxu0 %v776
        %1044 = vmatpush.msra.mxu0 %v770
        %1045 = vmatpush.msra.mxu0 %v764
        %1046 = vmatpush.msra.mxu0 %v758
        %1047 = vmatpush.msra.mxu0 %v752
        %1048 = vmatpush.msra.mxu0 %v746
        %1049 = vmatpush.msra.mxu0 %v740
        %1050 = vmatpush.msra.mxu0 %v734
        %1051 = vmatpush.msra.mxu0 %v728
        %1052 = vmatpush.msra.mxu0 %v722
        %1053 = vmatpush.msra.mxu0 %v716
        %1054 = vmatmul.f32.gmra.mxu0 %v977
        %v1055 = vpop.f32.mrf.mxu0
        %v1056 = vadd.f32 %v982, %v1055
        %1057 = vmatmul.f32.gmra.mxu0 %v978
        %v1058 = vpop.f32.mrf.mxu0
        %v1059 = vadd.f32 %v982, %v1058
        %1060 = vdwg.mxu0
        %1061 = vmatpush.msra.mxu0 %v807
        %1062 = vmatpush.msra.mxu0 %v801
        %1063 = vmatpush.msra.mxu0 %v795
        %1064 = vmatpush.msra.mxu0 %v789
        %1065 = vmatpush.msra.mxu0 %v783
        %1066 = vmatpush.msra.mxu0 %v777
        %1067 = vmatpush.msra.mxu0 %v771
        %1068 = vmatpush.msra.mxu0 %v765
        %1069 = vmatpush.msra.mxu0 %v759
        %1070 = vmatpush.msra.mxu0 %v753
        %1071 = vmatpush.msra.mxu0 %v747
        %1072 = vmatpush.msra.mxu0 %v741
        %1073 = vmatpush.msra.mxu0 %v735
        %1074 = vmatpush.msra.mxu0 %v729
        %1075 = vmatpush.msra.mxu0 %v723
        %1076 = vmatpush.msra.mxu0 %v717
        %1077 = vmatmul.f32.gmra.mxu0 %v977
        %v1078 = vpop.f32.mrf.mxu0
        %v1079 = vadd.f32 %v983, %v1078
        %1080 = vmatmul.f32.gmra.mxu0 %v978
        %v1081 = vpop.f32.mrf.mxu0
        %v1082 = vadd.f32 %v983, %v1081
        %1083 = vdwg.mxu0
        %1084 = vmatpush.msra.mxu0 %v808
        %1085 = vmatpush.msra.mxu0 %v802
        %1086 = vmatpush.msra.mxu0 %v796
        %1087 = vmatpush.msra.mxu0 %v790
        %1088 = vmatpush.msra.mxu0 %v784
        %1089 = vmatpush.msra.mxu0 %v778
        %1090 = vmatpush.msra.mxu0 %v772
        %1091 = vmatpush.msra.mxu0 %v766
        %1092 = vmatpush.msra.mxu0 %v760
        %1093 = vmatpush.msra.mxu0 %v754
        %1094 = vmatpush.msra.mxu0 %v748
        %1095 = vmatpush.msra.mxu0 %v742
        %1096 = vmatpush.msra.mxu0 %v736
        %1097 = vmatpush.msra.mxu0 %v730
        %1098 = vmatpush.msra.mxu0 %v724
        %1099 = vmatpush.msra.mxu0 %v718
        %1100 = vmatmul.f32.gmra.mxu0 %v977
        %v1101 = vpop.f32.mrf.mxu0
        %v1102 = vadd.f32 %v984, %v1101
        %1103 = vmatmul.f32.gmra.mxu0 %v978
        %v1104 = vpop.f32.mrf.mxu0
        %v1105 = vadd.f32 %v984, %v1104
        %1106 = vdwg.mxu0
        %1107 = vmatpush.msra.mxu0 %v809
        %1108 = vmatpush.msra.mxu0 %v803
        %1109 = vmatpush.msra.mxu0 %v797
        %1110 = vmatpush.msra.mxu0 %v791
        %1111 = vmatpush.msra.mxu0 %v785
        %1112 = vmatpush.msra.mxu0 %v779
        %1113 = vmatpush.msra.mxu0 %v773
        %1114 = vmatpush.msra.mxu0 %v767
        %1115 = vmatpush.msra.mxu0 %v761
        %1116 = vmatpush.msra.mxu0 %v755
        %1117 = vmatpush.msra.mxu0 %v749
        %1118 = vmatpush.msra.mxu0 %v743
        %1119 = vmatpush.msra.mxu0 %v737
        %1120 = vmatpush.msra.mxu0 %v731
        %1121 = vmatpush.msra.mxu0 %v725
        %1122 = vmatpush.msra.mxu0 %v719
        %1123 = vmatmul.f32.gmra.mxu0 %v977
        %v1124 = vpop.f32.mrf.mxu0
        %v1125 = vadd.f32 %v985, %v1124
        %1126 = vmatmul.f32.gmra.mxu0 %v978
        %v1127 = vpop.f32.mrf.mxu0
        %v1128 = vadd.f32 %v985, %v1127
        %1129 = vdwg.mxu0
        %v1130 = vperm.slane %v811, 1
        %v1131 = vadd.f32 %v1130, 0.0
        %vm1132 = vcmask 261120
        %v1134 = vsel %vm1132, %v1010, 0
        %v1137 = vsel %vm1132, %v1013, 0
        %v1140 = vsel %vm1132, %v1033, 0
        %v1143 = vsel %vm1132, %v1036, 0
        %1145 = vmatpush.xpose.msra.mxu0 0.0
        %1146 = vmatpush.xpose.msra.mxu0 0.0
        %1147 = vmatpush.xpose.msra.mxu0 0.0
        %1148 = vmatpush.xpose.msra.mxu0 0.0
        %1149 = vmatpush.xpose.msra.mxu0 0.0
        %1150 = vmatpush.xpose.msra.mxu0 0.0
        %1151 = vmatpush.xpose.msra.mxu0 0.0
        %1152 = vmatpush.xpose.msra.mxu0 0.0
        %1153 = vmatpush.xpose.msra.mxu0 0.0
        %1154 = vmatpush.xpose.msra.mxu0 0.0
        %1155 = vmatpush.xpose.msra.mxu0 0.0
        %1156 = vmatpush.xpose.msra.mxu0 0.0
        %1157 = vmatpush.xpose.msra.mxu0 0.0
        %1158 = vmatpush.xpose.msra.mxu0 0.0
        %1159 = vmatpush.xpose.msra.mxu0 %v1143
        %1160 = vmatpush.xpose.msra.mxu0 %v1140
        %1161 = vmatmul.f32.gmra.mxu0 %v1134
        %v1162 = vpop.f32.mrf.mxu0
        %v1163 = vadd.f32 0.0, %v1162
        %1164 = vmatmul.f32.gmra.mxu0 %v1137
        %v1165 = vpop.f32.mrf.mxu0
        %v1166 = vadd.f32 0.0, %v1165
        %1167 = vdwg.mxu0
        %v1168 = vmul.f32 %v1163, 0.17677669
        %v1169 = vmul.f32 %v1166, 0.17677669
        %v1170 = vadd.f32 %v1168, %v818
        %v1171 = vadd.f32 %v1169, %v819
        %vm1172 = vcmask 80896
        %v1173 = vsel %vm1172, %v1170, -inf
        %1174 = vmax.xlane.f32.xlu0 %v1173
        %v1175 = vpop.xlane.xlu0 %1174
        %vm1176 = vcmask 74752
        %v1177 = vsel %vm1176, %v1171, -inf
        %1178 = vmax.xlane.f32.xlu0 %v1177
        %v1179 = vpop.xlane.xlu0 %1178
        %v1180 = vsub.f32 %v1170, %v1175
        %v1181 = vsub.f32 %v1171, %v1179
        %v1182 = vmul.f32 %v1180, 1.442695
        %v1183 = vpow.pop %v1182
        %v1184 = vmul.f32 %v1181, 1.442695
        %v1185 = vpow.pop %v1184
        %v1186 = vsel %vm1172, %v1183, 0.0
        %1187 = vadd.xlane.f32.xlu0 %v1186
        %v1188 = vpop.xlane.xlu0 %1187
        %v1189 = vsel %vm1176, %v1185, 0.0
        %1190 = vadd.xlane.f32.xlu0 %v1189
        %v1191 = vpop.xlane.xlu0 %1190
        %v1192 = vrcp.pop %v1188
        %v1193 = vrcp.pop %v1191
        %v1194 = vmul.f32 %v1183, %v1192
        %v1195 = vmul.f32 %v1185, %v1193
        %v1197 = vsel %vm1172, %v1194, 0
        %v1200 = vsel %vm1172, %v1195, 0
        %vm1202 = vcmask 1041408
        %v1204 = vsel %vm1202, %v1059, 0
        %1206 = vmatpush.msra.mxu0 0.0
        %1207 = vmatpush.msra.mxu0 0.0
        %1208 = vmatpush.msra.mxu0 0.0
        %1209 = vmatpush.msra.mxu0 0.0
        %1210 = vmatpush.msra.mxu0 0.0
        %1211 = vmatpush.msra.mxu0 0.0
        %1212 = vmatpush.msra.mxu0 0.0
        %1213 = vmatpush.msra.mxu0 0.0
        %1214 = vmatpush.msra.mxu0 0.0
        %1215 = vmatpush.msra.mxu0 0.0
        %1216 = vmatpush.msra.mxu0 0.0
        %1217 = vmatpush.msra.mxu0 0.0
        %1218 = vmatpush.msra.mxu0 0.0
        %1219 = vmatpush.msra.mxu0 0.0
        %1220 = vmatpush.msra.mxu0 %v1204
        %1221 = vmatpush.msra.mxu0 %v1056
        %1222 = vmatmul.f32.gmra.mxu0 %v1197
        %v1223 = vpop.f32.mrf.mxu0
        %v1224 = vadd.f32 0.0, %v1223
        %1225 = vmatmul.f32.gmra.mxu0 %v1200
        %v1226 = vpop.f32.mrf.mxu0
        %v1227 = vadd.f32 0.0, %v1226
        %1228 = vdwg.mxu0
        %v1229 = vadd.f32 %v1131, %v1224
        %v1230 = vadd.f32 %v1131, %v1227
        %1231 = vrot.lane.b32.xlu0 %v1010, 96
        %v1232 = vpop.permute.xlu0 %1231
        %1233 = vrot.lane.b32.xlu0 %v1013, 96
        %v1234 = vpop.permute.xlu0 %1233
        %1235 = vrot.lane.b32.xlu0 %v1033, 96
        %v1236 = vpop.permute.xlu0 %1235
        %1237 = vrot.lane.b32.xlu0 %v1036, 96
        %v1238 = vpop.permute.xlu0 %1237
        %v1239 = vsel %vm1132, %v1232, 0
        %v1241 = vsel %vm1132, %v1234, 0
        %v1243 = vsel %vm1132, %v1236, 0
        %v1245 = vsel %vm1132, %v1238, 0
        %1247 = vmatpush.xpose.msra.mxu0 0.0
        %1248 = vmatpush.xpose.msra.mxu0 0.0
        %1249 = vmatpush.xpose.msra.mxu0 0.0
        %1250 = vmatpush.xpose.msra.mxu0 0.0
        %1251 = vmatpush.xpose.msra.mxu0 0.0
        %1252 = vmatpush.xpose.msra.mxu0 0.0
        %1253 = vmatpush.xpose.msra.mxu0 0.0
        %1254 = vmatpush.xpose.msra.mxu0 0.0
        %1255 = vmatpush.xpose.msra.mxu0 0.0
        %1256 = vmatpush.xpose.msra.mxu0 0.0
        %1257 = vmatpush.xpose.msra.mxu0 0.0
        %1258 = vmatpush.xpose.msra.mxu0 0.0
        %1259 = vmatpush.xpose.msra.mxu0 0.0
        %1260 = vmatpush.xpose.msra.mxu0 0.0
        %1261 = vmatpush.xpose.msra.mxu0 %v1245
        %1262 = vmatpush.xpose.msra.mxu0 %v1243
        %1263 = vmatmul.f32.gmra.mxu0 %v1239
        %v1264 = vpop.f32.mrf.mxu0
        %v1265 = vadd.f32 0.0, %v1264
        %1266 = vmatmul.f32.gmra.mxu0 %v1241
        %v1267 = vpop.f32.mrf.mxu0
        %v1268 = vadd.f32 0.0, %v1267
        %1269 = vdwg.mxu0
        %v1270 = vmul.f32 %v1265, 0.17677669
        %v1271 = vmul.f32 %v1268, 0.17677669
        %v1272 = vadd.f32 %v1270, %v818
        %v1273 = vadd.f32 %v1271, %v819
        %v1274 = vsel %vm1172, %v1272, -inf
        %1275 = vmax.xlane.f32.xlu0 %v1274
        %v1276 = vpop.xlane.xlu0 %1275
        %v1277 = vsel %vm1176, %v1273, -inf
        %1278 = vmax.xlane.f32.xlu0 %v1277
        %v1279 = vpop.xlane.xlu0 %1278
        %v1280 = vsub.f32 %v1272, %v1276
        %v1281 = vsub.f32 %v1273, %v1279
        %v1282 = vmul.f32 %v1280, 1.442695
        %v1283 = vpow.pop %v1282
        %v1284 = vmul.f32 %v1281, 1.442695
        %v1285 = vpow.pop %v1284
        %v1286 = vsel %vm1172, %v1283, 0.0
        %1287 = vadd.xlane.f32.xlu0 %v1286
        %v1288 = vpop.xlane.xlu0 %1287
        %v1289 = vsel %vm1176, %v1285, 0.0
        %1290 = vadd.xlane.f32.xlu0 %v1289
        %v1291 = vpop.xlane.xlu0 %1290
        %v1292 = vrcp.pop %v1288
        %v1293 = vrcp.pop %v1291
        %v1294 = vmul.f32 %v1283, %v1292
        %v1295 = vmul.f32 %v1285, %v1293
        %v1297 = vsel %vm1172, %v1294, 0
        %v1300 = vsel %vm1172, %v1295, 0
        %v1303 = vsel %vm1202, %v1082, 0
        %1305 = vmatpush.msra.mxu0 0.0
        %1306 = vmatpush.msra.mxu0 0.0
        %1307 = vmatpush.msra.mxu0 0.0
        %1308 = vmatpush.msra.mxu0 0.0
        %1309 = vmatpush.msra.mxu0 0.0
        %1310 = vmatpush.msra.mxu0 0.0
        %1311 = vmatpush.msra.mxu0 0.0
        %1312 = vmatpush.msra.mxu0 0.0
        %1313 = vmatpush.msra.mxu0 0.0
        %1314 = vmatpush.msra.mxu0 0.0
        %1315 = vmatpush.msra.mxu0 0.0
        %1316 = vmatpush.msra.mxu0 0.0
        %1317 = vmatpush.msra.mxu0 0.0
        %1318 = vmatpush.msra.mxu0 0.0
        %1319 = vmatpush.msra.mxu0 %v1303
        %1320 = vmatpush.msra.mxu0 %v1079
        %1321 = vmatmul.f32.gmra.mxu0 %v1297
        %v1322 = vpop.f32.mrf.mxu0
        %v1323 = vadd.f32 0.0, %v1322
        %1324 = vmatmul.f32.gmra.mxu0 %v1300
        %v1325 = vpop.f32.mrf.mxu0
        %v1326 = vadd.f32 0.0, %v1325
        %1327 = vdwg.mxu0
        %v1328 = vadd.f32 %v1229, %v1323
        %v1329 = vadd.f32 %v1230, %v1326
        %1330 = vrot.lane.b32.xlu0 %v1010, 64
        %v1331 = vpop.permute.xlu0 %1330
        %1332 = vrot.lane.b32.xlu0 %v1013, 64
        %v1333 = vpop.permute.xlu0 %1332
        %1334 = vrot.lane.b32.xlu0 %v1033, 64
        %v1335 = vpop.permute.xlu0 %1334
        %1336 = vrot.lane.b32.xlu0 %v1036, 64
        %v1337 = vpop.permute.xlu0 %1336
        %v1338 = vsel %vm1132, %v1331, 0
        %v1340 = vsel %vm1132, %v1333, 0
        %v1342 = vsel %vm1132, %v1335, 0
        %v1344 = vsel %vm1132, %v1337, 0
        %1346 = vmatpush.xpose.msra.mxu0 0.0
        %1347 = vmatpush.xpose.msra.mxu0 0.0
        %1348 = vmatpush.xpose.msra.mxu0 0.0
        %1349 = vmatpush.xpose.msra.mxu0 0.0
        %1350 = vmatpush.xpose.msra.mxu0 0.0
        %1351 = vmatpush.xpose.msra.mxu0 0.0
        %1352 = vmatpush.xpose.msra.mxu0 0.0
        %1353 = vmatpush.xpose.msra.mxu0 0.0
        %1354 = vmatpush.xpose.msra.mxu0 0.0
        %1355 = vmatpush.xpose.msra.mxu0 0.0
        %1356 = vmatpush.xpose.msra.mxu0 0.0
        %1357 = vmatpush.xpose.msra.mxu0 0.0
        %1358 = vmatpush.xpose.msra.mxu0 0.0
        %1359 = vmatpush.xpose.msra.mxu0 0.0
        %1360 = vmatpush.xpose.msra.mxu0 %v1344
        %1361 = vmatpush.xpose.msra.mxu0 %v1342
        %1362 = vmatmul.f32.gmra.mxu0 %v1338
        %v1363 = vpop.f32.mrf.mxu0
        %v1364 = vadd.f32 0.0, %v1363
        %1365 = vmatmul.f32.gmra.mxu0 %v1340
        %v1366 = vpop.f32.mrf.mxu0
        %v1367 = vadd.f32 0.0, %v1366
        %1368 = vdwg.mxu0
        %v1369 = vmul.f32 %v1364, 0.17677669
        %v1370 = vmul.f32 %v1367, 0.17677669
        %v1371 = vadd.f32 %v1369, %v818
        %v1372 = vadd.f32 %v1370, %v819
        %v1373 = vsel %vm1172, %v1371, -inf
        %1374 = vmax.xlane.f32.xlu0 %v1373
        %v1375 = vpop.xlane.xlu0 %1374
        %v1376 = vsel %vm1176, %v1372, -inf
        %1377 = vmax.xlane.f32.xlu0 %v1376
        %v1378 = vpop.xlane.xlu0 %1377
        %v1379 = vsub.f32 %v1371, %v1375
        %v1380 = vsub.f32 %v1372, %v1378
        %v1381 = vmul.f32 %v1379, 1.442695
        %v1382 = vpow.pop %v1381
        %v1383 = vmul.f32 %v1380, 1.442695
        %v1384 = vpow.pop %v1383
        %v1385 = vsel %vm1172, %v1382, 0.0
        %1386 = vadd.xlane.f32.xlu0 %v1385
        %v1387 = vpop.xlane.xlu0 %1386
        %v1388 = vsel %vm1176, %v1384, 0.0
        %1389 = vadd.xlane.f32.xlu0 %v1388
        %v1390 = vpop.xlane.xlu0 %1389
        %v1391 = vrcp.pop %v1387
        %v1392 = vrcp.pop %v1390
        %v1393 = vmul.f32 %v1382, %v1391
        %v1394 = vmul.f32 %v1384, %v1392
        %v1396 = vsel %vm1172, %v1393, 0
        %v1399 = vsel %vm1172, %v1394, 0
        %v1402 = vsel %vm1202, %v1105, 0
        %1404 = vmatpush.msra.mxu0 0.0
        %1405 = vmatpush.msra.mxu0 0.0
        %1406 = vmatpush.msra.mxu0 0.0
        %1407 = vmatpush.msra.mxu0 0.0
        %1408 = vmatpush.msra.mxu0 0.0
        %1409 = vmatpush.msra.mxu0 0.0
        %1410 = vmatpush.msra.mxu0 0.0
        %1411 = vmatpush.msra.mxu0 0.0
        %1412 = vmatpush.msra.mxu0 0.0
        %1413 = vmatpush.msra.mxu0 0.0
        %1414 = vmatpush.msra.mxu0 0.0
        %1415 = vmatpush.msra.mxu0 0.0
        %1416 = vmatpush.msra.mxu0 0.0
        %1417 = vmatpush.msra.mxu0 0.0
        %1418 = vmatpush.msra.mxu0 %v1402
        %1419 = vmatpush.msra.mxu0 %v1102
        %1420 = vmatmul.f32.gmra.mxu0 %v1396
        %v1421 = vpop.f32.mrf.mxu0
        %v1422 = vadd.f32 0.0, %v1421
        %1423 = vmatmul.f32.gmra.mxu0 %v1399
        %v1424 = vpop.f32.mrf.mxu0
        %v1425 = vadd.f32 0.0, %v1424
        %1426 = vdwg.mxu0
        %v1427 = vadd.f32 %v1328, %v1422
        %v1428 = vadd.f32 %v1329, %v1425
        %1429 = vrot.lane.b32.xlu0 %v1010, 32
        %v1430 = vpop.permute.xlu0 %1429
        %1431 = vrot.lane.b32.xlu0 %v1013, 32
        %v1432 = vpop.permute.xlu0 %1431
        %1433 = vrot.lane.b32.xlu0 %v1033, 32
        %v1434 = vpop.permute.xlu0 %1433
        %1435 = vrot.lane.b32.xlu0 %v1036, 32
        %v1436 = vpop.permute.xlu0 %1435
        %v1437 = vsel %vm1132, %v1430, 0
        %v1439 = vsel %vm1132, %v1432, 0
        %v1441 = vsel %vm1132, %v1434, 0
        %v1443 = vsel %vm1132, %v1436, 0
        %1445 = vmatpush.xpose.msra.mxu0 0.0
        %1446 = vmatpush.xpose.msra.mxu0 0.0
        %1447 = vmatpush.xpose.msra.mxu0 0.0
        %1448 = vmatpush.xpose.msra.mxu0 0.0
        %1449 = vmatpush.xpose.msra.mxu0 0.0
        %1450 = vmatpush.xpose.msra.mxu0 0.0
        %1451 = vmatpush.xpose.msra.mxu0 0.0
        %1452 = vmatpush.xpose.msra.mxu0 0.0
        %1453 = vmatpush.xpose.msra.mxu0 0.0
        %1454 = vmatpush.xpose.msra.mxu0 0.0
        %1455 = vmatpush.xpose.msra.mxu0 0.0
        %1456 = vmatpush.xpose.msra.mxu0 0.0
        %1457 = vmatpush.xpose.msra.mxu0 0.0
        %1458 = vmatpush.xpose.msra.mxu0 0.0
        %1459 = vmatpush.xpose.msra.mxu0 %v1443
        %1460 = vmatpush.xpose.msra.mxu0 %v1441
        %1461 = vmatmul.f32.gmra.mxu0 %v1437
        %v1462 = vpop.f32.mrf.mxu0
        %v1463 = vadd.f32 0.0, %v1462
        %1464 = vmatmul.f32.gmra.mxu0 %v1439
        %v1465 = vpop.f32.mrf.mxu0
        %v1466 = vadd.f32 0.0, %v1465
        %1467 = vdwg.mxu0
        %v1468 = vmul.f32 %v1463, 0.17677669
        %v1469 = vmul.f32 %v1466, 0.17677669
        %v1470 = vadd.f32 %v1468, %v818
        %v1471 = vadd.f32 %v1469, %v819
        %v1472 = vsel %vm1172, %v1470, -inf
        %1473 = vmax.xlane.f32.xlu0 %v1472
        %v1474 = vpop.xlane.xlu0 %1473
        %v1475 = vsel %vm1176, %v1471, -inf
        %1476 = vmax.xlane.f32.xlu0 %v1475
        %v1477 = vpop.xlane.xlu0 %1476
        %v1478 = vsub.f32 %v1470, %v1474
        %v1479 = vsub.f32 %v1471, %v1477
        %v1480 = vmul.f32 %v1478, 1.442695
        %v1481 = vpow.pop %v1480
        %v1482 = vmul.f32 %v1479, 1.442695
        %v1483 = vpow.pop %v1482
        %v1484 = vsel %vm1172, %v1481, 0.0
        %1485 = vadd.xlane.f32.xlu0 %v1484
        %v1486 = vpop.xlane.xlu0 %1485
        %v1487 = vsel %vm1176, %v1483, 0.0
        %1488 = vadd.xlane.f32.xlu0 %v1487
        %v1489 = vpop.xlane.xlu0 %1488
        %v1490 = vrcp.pop %v1486
        %v1491 = vrcp.pop %v1489
        %v1492 = vmul.f32 %v1481, %v1490
        %v1493 = vmul.f32 %v1483, %v1491
        %v1495 = vsel %vm1172, %v1492, 0
        %v1498 = vsel %vm1172, %v1493, 0
        %v1501 = vsel %vm1202, %v1128, 0
        %1503 = vmatpush.msra.mxu0 0.0
        %1504 = vmatpush.msra.mxu0 0.0
        %1505 = vmatpush.msra.mxu0 0.0
        %1506 = vmatpush.msra.mxu0 0.0
        %1507 = vmatpush.msra.mxu0 0.0
        %1508 = vmatpush.msra.mxu0 0.0
        %1509 = vmatpush.msra.mxu0 0.0
        %1510 = vmatpush.msra.mxu0 0.0
        %1511 = vmatpush.msra.mxu0 0.0
        %1512 = vmatpush.msra.mxu0 0.0
        %1513 = vmatpush.msra.mxu0 0.0
        %1514 = vmatpush.msra.mxu0 0.0
        %1515 = vmatpush.msra.mxu0 0.0
        %1516 = vmatpush.msra.mxu0 0.0
        %1517 = vmatpush.msra.mxu0 %v1501
        %1518 = vmatpush.msra.mxu0 %v1125
        %1519 = vmatmul.f32.gmra.mxu0 %v1495
        %v1520 = vpop.f32.mrf.mxu0
        %v1521 = vadd.f32 0.0, %v1520
        %1522 = vmatmul.f32.gmra.mxu0 %v1498
        %v1523 = vpop.f32.mrf.mxu0
        %v1524 = vadd.f32 0.0, %v1523
        %1525 = vdwg.mxu0
        %v1526 = vadd.f32 %v1427, %v1521
        %v1527 = vadd.f32 %v1428, %v1524
        %v1528 = vadd.f32 %v977, %v1526
        %v1529 = vadd.f32 %v978, %v1527
        %1530 = vadd.xlane.f32.xlu0 %v1528
        %v1531 = vpop.xlane.xlu0 %1530
        %v1532 = vsel %vm1202, %v1529, 0.0
        %1533 = vadd.xlane.f32.xlu0 %v1532
        %v1534 = vpop.xlane.xlu0 %1533
        %v1535 = vmul.f32 %v1531, 0.0078125
        %v1536 = vmul.f32 %v1534, 0.0078125
        %v1537 = vsub.f32 %v1528, %v1535
        %v1538 = vsub.f32 %v1529, %v1536
        %v1539 = vperm.slane %v811, 4
        %v1540 = vmul.f32 %v1537, %v1539
        %v1541 = vmul.f32 %v1538, %v1539
        %v1542 = vmul.f32 %v1540, %v1540
        %v1543 = vmul.f32 %v1541, %v1541
        %1544 = vadd.xlane.f32.xlu0 %v1542
        %v1545 = vpop.xlane.xlu0 %1544
        %v1546 = vsel %vm1202, %v1543, 0.0
        %1547 = vadd.xlane.f32.xlu0 %v1546
        %v1548 = vpop.xlane.xlu0 %1547
        %v1549 = vmul.f32 %v1545, 0.0078125
        %v1550 = vmul.f32 %v1548, 0.0078125
        %v1551 = vadd.f32 %v1549, 1e-05
        %v1552 = vadd.f32 %v1550, 1e-05
        %v1553 = vrsqrt.pop %v1551
        %v1554 = vmul.f32 %v1553, %v1551
        %v1555 = vmul.f32 %v1554, %v1553
        %v1556 = vmul.f32 0.5, %v1555
        %v1557 = vsub.f32 1.5, %v1556
        %v1558 = vmul.f32 %v1553, %v1557
        %vm1559 = vweird.f32 %v1551
        %vm1560 = vweird.f32 %v1553
        %vm1561 = vmor %vm1559, %vm1560
        %v1562 = vsel %vm1561, %v1553, %v1558
        %v1563 = vrsqrt.pop %v1552
        %v1564 = vmul.f32 %v1563, %v1552
        %v1565 = vmul.f32 %v1564, %v1563
        %v1566 = vmul.f32 0.5, %v1565
        %v1567 = vsub.f32 1.5, %v1566
        %v1568 = vmul.f32 %v1563, %v1567
        %vm1569 = vweird.f32 %v1552
        %vm1570 = vweird.f32 %v1563
        %vm1571 = vmor %vm1569, %vm1570
        %v1572 = vsel %vm1571, %v1563, %v1568
        %v1573 = vmul.f32 %v1540, %v1562
        %v1574 = vmul.f32 %v1541, %v1572
        %v1575 = vperm.slane %v811, 2
        %v1576 = vmul.f32 %v1573, %v1575
        %v1577 = vmul.f32 %v1574, %v1575
        %v1578 = vperm.slane %v811, 3
        %v1579 = vadd.f32 %v1576, %v1578
        %v1580 = vadd.f32 %v1577, %v1578
        %v1581 = vld [vmem:[#allocation5] sm:$0xff]
        %v1582 = vld [vmem:[#allocation5 + $0x8] sm:$0xff]
        %v1583 = vld [vmem:[#allocation5 + $0x10] sm:$0xff]
        %v1584 = vld [vmem:[#allocation5 + $0x18] sm:$0xff]
        %v1585 = vld [vmem:[#allocation5 + $0x20] sm:$0xff]
        %v1586 = vld [vmem:[#allocation5 + $0x28] sm:$0xff]
        %v1587 = vld [vmem:[#allocation5 + $0x30] sm:$0xff]
        %v1588 = vld [vmem:[#allocation5 + $0x38] sm:$0xff]
        %v1589 = vld [vmem:[#allocation5 + $0x40] sm:$0xff]
        %v1590 = vld [vmem:[#allocation5 + $0x48] sm:$0xff]
        %v1591 = vld [vmem:[#allocation5 + $0x50] sm:$0xff]
        %v1592 = vld [vmem:[#allocation5 + $0x58] sm:$0xff]
        %v1593 = vld [vmem:[#allocation5 + $0x60] sm:$0xff]
        %v1594 = vld [vmem:[#allocation5 + $0x68] sm:$0xff]
        %v1595 = vld [vmem:[#allocation5 + $0x70] sm:$0xff]
        %v1596 = vld [vmem:[#allocation5 + $0x78] sm:$0xff]
        %v1597 = vld [vmem:[#allocation5 + $0x80] sm:$0xff]
        %v1598 = vld [vmem:[#allocation5 + $0x88] sm:$0xff]
        %v1599 = vld [vmem:[#allocation5 + $0x90] sm:$0xff]
        %v1600 = vld [vmem:[#allocation5 + $0x98] sm:$0xff]
        %v1601 = vld [vmem:[#allocation5 + $0xa0] sm:$0xff]
        %v1602 = vld [vmem:[#allocation5 + $0xa8] sm:$0xff]
        %v1603 = vld [vmem:[#allocation5 + $0xb0] sm:$0xff]
        %v1604 = vld [vmem:[#allocation5 + $0xb8] sm:$0xff]
        %v1605 = vld [vmem:[#allocation5 + $0xc0] sm:$0xff]
        %v1606 = vld [vmem:[#allocation5 + $0xc8] sm:$0xff]
        %v1607 = vld [vmem:[#allocation5 + $0xd0] sm:$0xff]
        %v1608 = vld [vmem:[#allocation5 + $0xd8] sm:$0xff]
        %v1609 = vld [vmem:[#allocation5 + $0xe0] sm:$0xff]
        %v1610 = vld [vmem:[#allocation5 + $0xe8] sm:$0xff]
        %v1611 = vld [vmem:[#allocation5 + $0xf0] sm:$0xff]
        %v1612 = vld [vmem:[#allocation5 + $0xf8] sm:$0xff]
        %v1613 = vld [vmem:[#allocation5 + $0x100] sm:$0xff]
        %v1614 = vld [vmem:[#allocation5 + $0x108] sm:$0xff]
        %v1615 = vld [vmem:[#allocation5 + $0x110] sm:$0xff]
        %v1616 = vld [vmem:[#allocation5 + $0x118] sm:$0xff]
        %v1617 = vld [vmem:[#allocation5 + $0x120] sm:$0xff]
        %v1618 = vld [vmem:[#allocation5 + $0x128] sm:$0xff]
        %v1619 = vld [vmem:[#allocation5 + $0x130] sm:$0xff]
        %v1620 = vld [vmem:[#allocation5 + $0x138] sm:$0xff]
        %v1621 = vld [vmem:[#allocation5 + $0x140] sm:$0xff]
        %v1622 = vld [vmem:[#allocation5 + $0x148] sm:$0xff]
        %v1623 = vld [vmem:[#allocation5 + $0x150] sm:$0xff]
        %v1624 = vld [vmem:[#allocation5 + $0x158] sm:$0xff]
        %v1625 = vld [vmem:[#allocation5 + $0x160] sm:$0xff]
        %v1626 = vld [vmem:[#allocation5 + $0x168] sm:$0xff]
        %v1627 = vld [vmem:[#allocation5 + $0x170] sm:$0xff]
        %v1628 = vld [vmem:[#allocation5 + $0x178] sm:$0xff]
        %v1629 = vld [vmem:[#allocation7] sm:$0xff]
        %v1630 = vld [vmem:[#allocation7 + $0x8] sm:$0xff]
        %v1631 = vld [vmem:[#allocation7 + $0x10] sm:$0xff]
        %v1632 = vld [vmem:[#allocation7 + $0x18] sm:$0xff]
        %v1633 = vld [vmem:[#allocation7 + $0x20] sm:$0xff]
        %v1634 = vld [vmem:[#allocation7 + $0x28] sm:$0xff]
        %v1635 = vld [vmem:[#allocation7 + $0x30] sm:$0xff]
        %v1636 = vld [vmem:[#allocation7 + $0x38] sm:$0xff]
        %v1637 = vld [vmem:[#allocation7 + $0x40] sm:$0xff]
        %v1638 = vld [vmem:[#allocation7 + $0x48] sm:$0xff]
        %v1639 = vld [vmem:[#allocation7 + $0x50] sm:$0xff]
        %v1640 = vld [vmem:[#allocation7 + $0x58] sm:$0xff]
        %v1641 = vld [vmem:[#allocation7 + $0x60] sm:$0xff]
        %v1642 = vld [vmem:[#allocation7 + $0x68] sm:$0xff]
        %v1643 = vld [vmem:[#allocation7 + $0x70] sm:$0xff]
        %v1644 = vld [vmem:[#allocation7 + $0x78] sm:$0xff]
        %v1645 = vld [vmem:[#allocation7 + $0x80] sm:$0xff]
        %v1646 = vld [vmem:[#allocation7 + $0x88] sm:$0xff]
        %v1647 = vld [vmem:[#allocation7 + $0x90] sm:$0xff]
        %v1648 = vld [vmem:[#allocation7 + $0x98] sm:$0xff]
        %v1649 = vld [vmem:[#allocation7 + $0xa0] sm:$0xff]
        %v1650 = vld [vmem:[#allocation7 + $0xa8] sm:$0xff]
        %v1651 = vld [vmem:[#allocation7 + $0xb0] sm:$0xff]
        %v1652 = vld [vmem:[#allocation7 + $0xb8] sm:$0xff]
        %v1653 = vld [vmem:[#allocation7 + $0xc0] sm:$0xff]
        %v1654 = vld [vmem:[#allocation7 + $0xc8] sm:$0xff]
        %v1655 = vld [vmem:[#allocation7 + $0xd0] sm:$0xff]
        %v1656 = vld [vmem:[#allocation7 + $0xd8] sm:$0xff]
        %v1657 = vld [vmem:[#allocation7 + $0xe0] sm:$0xff]
        %v1658 = vld [vmem:[#allocation7 + $0xe8] sm:$0xff]
        %v1659 = vld [vmem:[#allocation7 + $0xf0] sm:$0xff]
        %v1660 = vld [vmem:[#allocation7 + $0xf8] sm:$0xff]
        %v1661 = vld [vmem:[#allocation7 + $0x100] sm:$0xff]
        %v1662 = vld [vmem:[#allocation7 + $0x108] sm:$0xff]
        %v1663 = vld [vmem:[#allocation7 + $0x110] sm:$0xff]
        %v1664 = vld [vmem:[#allocation7 + $0x118] sm:$0xff]
        %v1665 = vld [vmem:[#allocation7 + $0x120] sm:$0xff]
        %v1666 = vld [vmem:[#allocation7 + $0x128] sm:$0xff]
        %v1667 = vld [vmem:[#allocation7 + $0x130] sm:$0xff]
        %v1668 = vld [vmem:[#allocation7 + $0x138] sm:$0xff]
        %v1669 = vld [vmem:[#allocation7 + $0x140] sm:$0xff]
        %v1670 = vld [vmem:[#allocation7 + $0x148] sm:$0xff]
        %v1671 = vld [vmem:[#allocation7 + $0x150] sm:$0xff]
        %v1672 = vld [vmem:[#allocation7 + $0x158] sm:$0xff]
        %v1673 = vld [vmem:[#allocation7 + $0x160] sm:$0xff]
        %v1674 = vld [vmem:[#allocation7 + $0x168] sm:$0xff]
        %v1675 = vld [vmem:[#allocation7 + $0x170] sm:$0xff]
        %v1676 = vld [vmem:[#allocation7 + $0x178] sm:$0xff]
        %v1677 = vld [vmem:[#allocation7 + $0x180] sm:$0xff]
        %v1678 = vld [vmem:[#allocation7 + $0x188] sm:$0xff]
        %v1679 = vld [vmem:[#allocation7 + $0x190] sm:$0xff]
        %v1680 = vld [vmem:[#allocation7 + $0x198] sm:$0xff]
        %v1681 = vld [vmem:[#allocation7 + $0x1a0] sm:$0xff]
        %v1682 = vld [vmem:[#allocation7 + $0x1a8] sm:$0xff]
        %v1683 = vld [vmem:[#allocation7 + $0x1b0] sm:$0xff]
        %v1684 = vld [vmem:[#allocation7 + $0x1b8] sm:$0xff]
        %v1685 = vld [vmem:[#allocation7 + $0x1c0] sm:$0xff]
        %v1686 = vld [vmem:[#allocation7 + $0x1c8] sm:$0xff]
        %v1687 = vld [vmem:[#allocation7 + $0x1d0] sm:$0xff]
        %v1688 = vld [vmem:[#allocation7 + $0x1d8] sm:$0xff]
        %v1689 = vld [vmem:[#allocation7 + $0x1e0] sm:$0xff]
        %v1690 = vld [vmem:[#allocation7 + $0x1e8] sm:$0xff]
        %v1691 = vld [vmem:[#allocation7 + $0x1f0] sm:$0xff]
        %v1692 = vld [vmem:[#allocation7 + $0x1f8] sm:$0xff]
        %v1693 = vld [vmem:[#allocation7 + $0x200] sm:$0xff]
        %v1694 = vld [vmem:[#allocation7 + $0x208] sm:$0xff]
        %v1695 = vld [vmem:[#allocation7 + $0x210] sm:$0xff]
        %v1696 = vld [vmem:[#allocation7 + $0x218] sm:$0xff]
        %v1697 = vld [vmem:[#allocation7 + $0x220] sm:$0xff]
        %v1698 = vld [vmem:[#allocation7 + $0x228] sm:$0xff]
        %v1699 = vld [vmem:[#allocation7 + $0x230] sm:$0xff]
        %v1700 = vld [vmem:[#allocation7 + $0x238] sm:$0xff]
        %v1701 = vld [vmem:[#allocation7 + $0x240] sm:$0xff]
        %v1702 = vld [vmem:[#allocation7 + $0x248] sm:$0xff]
        %v1703 = vld [vmem:[#allocation7 + $0x250] sm:$0xff]
        %v1704 = vld [vmem:[#allocation7 + $0x258] sm:$0xff]
        %v1705 = vld [vmem:[#allocation7 + $0x260] sm:$0xff]
        %v1706 = vld [vmem:[#allocation7 + $0x268] sm:$0xff]
        %v1707 = vld [vmem:[#allocation7 + $0x270] sm:$0xff]
        %v1708 = vld [vmem:[#allocation7 + $0x278] sm:$0xff]
        %v1709 = vld [vmem:[#allocation7 + $0x280] sm:$0xff]
        %v1710 = vld [vmem:[#allocation7 + $0x288] sm:$0xff]
        %v1711 = vld [vmem:[#allocation7 + $0x290] sm:$0xff]
        %v1712 = vld [vmem:[#allocation7 + $0x298] sm:$0xff]
        %v1713 = vld [vmem:[#allocation7 + $0x2a0] sm:$0xff]
        %v1714 = vld [vmem:[#allocation7 + $0x2a8] sm:$0xff]
        %v1715 = vld [vmem:[#allocation7 + $0x2b0] sm:$0xff]
        %v1716 = vld [vmem:[#allocation7 + $0x2b8] sm:$0xff]
        %v1717 = vld [vmem:[#allocation7 + $0x2c0] sm:$0xff]
        %v1718 = vld [vmem:[#allocation7 + $0x2c8] sm:$0xff]
        %v1719 = vld [vmem:[#allocation7 + $0x2d0] sm:$0xff]
        %v1720 = vld [vmem:[#allocation7 + $0x2d8] sm:$0xff]
        %v1721 = vld [vmem:[#allocation7 + $0x2e0] sm:$0xff]
        %v1722 = vld [vmem:[#allocation7 + $0x2e8] sm:$0xff]
        %v1723 = vld [vmem:[#allocation7 + $0x2f0] sm:$0xff]
        %v1724 = vld [vmem:[#allocation7 + $0x2f8] sm:$0xff]
        %v1725 = vld [vmem:[%s7] sm:$0x3f]
        %v1726 = vld [vmem:[%s8] sm:$0x1f]
        %v1727 = vld [vmem:[%s15] sm:$0xff]
        %v1728 = vld [vmem:[%s15 + $0x8] sm:$0xf]
        %v1729 = vld [vmem:[%s15 + $0x10] sm:$0xff]
        %v1730 = vld [vmem:[%s15 + $0x18] sm:$0xf]
        %v1731 = vld [vmem:[%s15 + $0x20] sm:$0xff]
        %v1732 = vld [vmem:[%s15 + $0x28] sm:$0xf]
        %v1733 = vld [vmem:[%s16] sm:$0xff]
        %v1734 = vld [vmem:[%s16 + $0x8] sm:$0xf]
        %1735 = vmatpush.msra.mxu0 %v1596
        %1736 = vmatpush.msra.mxu0 %v1595
        %1737 = vmatpush.msra.mxu0 %v1594
        %1738 = vmatpush.msra.mxu0 %v1593
        %1739 = vmatpush.msra.mxu0 %v1592
        %1740 = vmatpush.msra.mxu0 %v1591
        %1741 = vmatpush.msra.mxu0 %v1590
        %1742 = vmatpush.msra.mxu0 %v1589
        %1743 = vmatpush.msra.mxu0 %v1588
        %1744 = vmatpush.msra.mxu0 %v1587
        %1745 = vmatpush.msra.mxu0 %v1586
        %1746 = vmatpush.msra.mxu0 %v1585
        %1747 = vmatpush.msra.mxu0 %v1584
        %1748 = vmatpush.msra.mxu0 %v1583
        %1749 = vmatpush.msra.mxu0 %v1582
        %1750 = vmatpush.msra.mxu0 %v1581
        %1751 = vmatmul.f32.gmra.mxu0 %v1579
        %v1752 = vpop.f32.mrf.mxu0
        %v1753 = vadd.f32 0.0, %v1752
        %1754 = vmatmul.f32.gmra.mxu0 %v1580
        %v1755 = vpop.f32.mrf.mxu0
        %v1756 = vadd.f32 0.0, %v1755
        %1757 = vdwg.mxu0
        %1758 = vmatpush.msra.mxu0 %v1612
        %1759 = vmatpush.msra.mxu0 %v1611
        %1760 = vmatpush.msra.mxu0 %v1610
        %1761 = vmatpush.msra.mxu0 %v1609
        %1762 = vmatpush.msra.mxu0 %v1608
        %1763 = vmatpush.msra.mxu0 %v1607
        %1764 = vmatpush.msra.mxu0 %v1606
        %1765 = vmatpush.msra.mxu0 %v1605
        %1766 = vmatpush.msra.mxu0 %v1604
        %1767 = vmatpush.msra.mxu0 %v1603
        %1768 = vmatpush.msra.mxu0 %v1602
        %1769 = vmatpush.msra.mxu0 %v1601
        %1770 = vmatpush.msra.mxu0 %v1600
        %1771 = vmatpush.msra.mxu0 %v1599
        %1772 = vmatpush.msra.mxu0 %v1598
        %1773 = vmatpush.msra.mxu0 %v1597
        %1774 = vmatmul.f32.gmra.mxu0 %v1579
        %v1775 = vpop.f32.mrf.mxu0
        %v1776 = vadd.f32 0.0, %v1775
        %1777 = vmatmul.f32.gmra.mxu0 %v1580
        %v1778 = vpop.f32.mrf.mxu0
        %v1779 = vadd.f32 0.0, %v1778
        %1780 = vdwg.mxu0
        %v1782 = vsel %vm1172, %v1729, 0
        %v1785 = vsel %vm1172, %v1730, 0
        %v1788 = vsel %vm1202, %v1779, 0
        %1790 = vmatpush.msra.mxu0 0.0
        %1791 = vmatpush.msra.mxu0 0.0
        %1792 = vmatpush.msra.mxu0 0.0
        %1793 = vmatpush.msra.mxu0 0.0
        %1794 = vmatpush.msra.mxu0 0.0
        %1795 = vmatpush.msra.mxu0 0.0
        %1796 = vmatpush.msra.mxu0 0.0
        %1797 = vmatpush.msra.mxu0 0.0
        %1798 = vmatpush.msra.mxu0 0.0
        %1799 = vmatpush.msra.mxu0 0.0
        %1800 = vmatpush.msra.mxu0 0.0
        %1801 = vmatpush.msra.mxu0 0.0
        %1802 = vmatpush.msra.mxu0 0.0
        %1803 = vmatpush.msra.mxu0 0.0
        %1804 = vmatpush.msra.mxu0 %v1788
        %1805 = vmatpush.msra.mxu0 %v1776
        %1806 = vmatmul.f32.gmra.mxu0 %v1782
        %v1807 = vpop.f32.mrf.mxu0
        %v1808 = vadd.f32 0.0, %v1807
        %1809 = vmatmul.f32.gmra.mxu0 %v1785
        %v1810 = vpop.f32.mrf.mxu0
        %v1811 = vadd.f32 0.0, %v1810
        %1812 = vdwg.mxu0
        %v1814 = vsel %vm1172, %v1727, 0
        %v1817 = vsel %vm1172, %v1728, 0
        %v1820 = vsel %vm1202, %v1756, 0
        %1822 = vmatpush.msra.mxu0 0.0
        %1823 = vmatpush.msra.mxu0 0.0
        %1824 = vmatpush.msra.mxu0 0.0
        %1825 = vmatpush.msra.mxu0 0.0
        %1826 = vmatpush.msra.mxu0 0.0
        %1827 = vmatpush.msra.mxu0 0.0
        %1828 = vmatpush.msra.mxu0 0.0
        %1829 = vmatpush.msra.mxu0 0.0
        %1830 = vmatpush.msra.mxu0 0.0
        %1831 = vmatpush.msra.mxu0 0.0
        %1832 = vmatpush.msra.mxu0 0.0
        %1833 = vmatpush.msra.mxu0 0.0
        %1834 = vmatpush.msra.mxu0 0.0
        %1835 = vmatpush.msra.mxu0 0.0
        %1836 = vmatpush.msra.mxu0 %v1820
        %1837 = vmatpush.msra.mxu0 %v1753
        %1838 = vmatmul.f32.gmra.mxu0 %v1814
        %v1839 = vpop.f32.mrf.mxu0
        %v1840 = vadd.f32 %v1808, %v1839
        %1841 = vmatmul.f32.gmra.mxu0 %v1817
        %v1842 = vpop.f32.mrf.mxu0
        %v1843 = vadd.f32 %v1811, %v1842
        %1844 = vdwg.mxu0
        %1845 = vmatpush.msra.mxu0 %v1628
        %1846 = vmatpush.msra.mxu0 %v1627
        %1847 = vmatpush.msra.mxu0 %v1626
        %1848 = vmatpush.msra.mxu0 %v1625
        %1849 = vmatpush.msra.mxu0 %v1624
        %1850 = vmatpush.msra.mxu0 %v1623
        %1851 = vmatpush.msra.mxu0 %v1622
        %1852 = vmatpush.msra.mxu0 %v1621
        %1853 = vmatpush.msra.mxu0 %v1620
        %1854 = vmatpush.msra.mxu0 %v1619
        %1855 = vmatpush.msra.mxu0 %v1618
        %1856 = vmatpush.msra.mxu0 %v1617
        %1857 = vmatpush.msra.mxu0 %v1616
        %1858 = vmatpush.msra.mxu0 %v1615
        %1859 = vmatpush.msra.mxu0 %v1614
        %1860 = vmatpush.msra.mxu0 %v1613
        %1861 = vmatmul.f32.gmra.mxu0 %v1579
        %v1862 = vpop.f32.mrf.mxu0
        %v1863 = vadd.f32 0.0, %v1862
        %1864 = vmatmul.f32.gmra.mxu0 %v1580
        %v1865 = vpop.f32.mrf.mxu0
        %v1866 = vadd.f32 0.0, %v1865
        %1867 = vdwg.mxu0
        %v1869 = vsel %vm1172, %v1731, 0
        %v1872 = vsel %vm1172, %v1732, 0
        %v1875 = vsel %vm1202, %v1866, 0
        %1877 = vmatpush.msra.mxu0 0.0
        %1878 = vmatpush.msra.mxu0 0.0
        %1879 = vmatpush.msra.mxu0 0.0
        %1880 = vmatpush.msra.mxu0 0.0
        %1881 = vmatpush.msra.mxu0 0.0
        %1882 = vmatpush.msra.mxu0 0.0
        %1883 = vmatpush.msra.mxu0 0.0
        %1884 = vmatpush.msra.mxu0 0.0
        %1885 = vmatpush.msra.mxu0 0.0
        %1886 = vmatpush.msra.mxu0 0.0
        %1887 = vmatpush.msra.mxu0 0.0
        %1888 = vmatpush.msra.mxu0 0.0
        %1889 = vmatpush.msra.mxu0 0.0
        %1890 = vmatpush.msra.mxu0 0.0
        %1891 = vmatpush.msra.mxu0 %v1875
        %1892 = vmatpush.msra.mxu0 %v1863
        %1893 = vmatmul.f32.gmra.mxu0 %v1869
        %v1894 = vpop.f32.mrf.mxu0
        %v1895 = vadd.f32 0.0, %v1894
        %1896 = vmatmul.f32.gmra.mxu0 %v1872
        %v1897 = vpop.f32.mrf.mxu0
        %v1898 = vadd.f32 0.0, %v1897
        %1899 = vdwg.mxu0
        %v1900 = vadd.f32 %v1840, %v1895
        %v1901 = vadd.f32 %v1843, %v1898
        %v1902 = vperm.slane %v1726, 0
        %v1903 = vadd.f32 %v1900, %v1902
        %v1904 = vadd.f32 %v1901, %v1902
        %v1905 = vmax.f32 %v1903, 0.0
        %v1906 = vmax.f32 %v1904, 0.0
        %v1908 = vperm.slane %v1725, 0
        %v1909 = vperm.slane %v1725, 1
        %v1910 = vperm.slane %v1725, 2
        %v1911 = vperm.slane %v1725, 3
        %v1912 = vperm.slane %v1725, 4
        %v1913 = vperm.slane %v1725, 5
        %1920 = vmatpush.msra.mxu0 %v1719
        %1921 = vmatpush.msra.mxu0 %v1713
        %1922 = vmatpush.msra.mxu0 %v1707
        %1923 = vmatpush.msra.mxu0 %v1701
        %1924 = vmatpush.msra.mxu0 %v1695
        %1925 = vmatpush.msra.mxu0 %v1689
        %1926 = vmatpush.msra.mxu0 %v1683
        %1927 = vmatpush.msra.mxu0 %v1677
        %1928 = vmatpush.msra.mxu0 %v1671
        %1929 = vmatpush.msra.mxu0 %v1665
        %1930 = vmatpush.msra.mxu0 %v1659
        %1931 = vmatpush.msra.mxu0 %v1653
        %1932 = vmatpush.msra.mxu0 %v1647
        %1933 = vmatpush.msra.mxu0 %v1641
        %1934 = vmatpush.msra.mxu0 %v1635
        %1935 = vmatpush.msra.mxu0 %v1629
        %1936 = vmatmul.f32.gmra.mxu0 %v1905
        %v1937 = vpop.f32.mrf.mxu0
        %v1938 = vadd.f32 %v1908, %v1937
        %1939 = vmatmul.f32.gmra.mxu0 %v1906
        %v1940 = vpop.f32.mrf.mxu0
        %v1941 = vadd.f32 %v1908, %v1940
        %1942 = vdwg.mxu0
        %1943 = vmatpush.msra.mxu0 %v1720
        %1944 = vmatpush.msra.mxu0 %v1714
        %1945 = vmatpush.msra.mxu0 %v1708
        %1946 = vmatpush.msra.mxu0 %v1702
        %1947 = vmatpush.msra.mxu0 %v1696
        %1948 = vmatpush.msra.mxu0 %v1690
        %1949 = vmatpush.msra.mxu0 %v1684
        %1950 = vmatpush.msra.mxu0 %v1678
        %1951 = vmatpush.msra.mxu0 %v1672
        %1952 = vmatpush.msra.mxu0 %v1666
        %1953 = vmatpush.msra.mxu0 %v1660
        %1954 = vmatpush.msra.mxu0 %v1654
        %1955 = vmatpush.msra.mxu0 %v1648
        %1956 = vmatpush.msra.mxu0 %v1642
        %1957 = vmatpush.msra.mxu0 %v1636
        %1958 = vmatpush.msra.mxu0 %v1630
        %1959 = vmatmul.f32.gmra.mxu0 %v1905
        %v1960 = vpop.f32.mrf.mxu0
        %v1961 = vadd.f32 %v1909, %v1960
        %1962 = vmatmul.f32.gmra.mxu0 %v1906
        %v1963 = vpop.f32.mrf.mxu0
        %v1964 = vadd.f32 %v1909, %v1963
        %1965 = vdwg.mxu0
        %1966 = vmatpush.msra.mxu0 %v1721
        %1967 = vmatpush.msra.mxu0 %v1715
        %1968 = vmatpush.msra.mxu0 %v1709
        %1969 = vmatpush.msra.mxu0 %v1703
        %1970 = vmatpush.msra.mxu0 %v1697
        %1971 = vmatpush.msra.mxu0 %v1691
        %1972 = vmatpush.msra.mxu0 %v1685
        %1973 = vmatpush.msra.mxu0 %v1679
        %1974 = vmatpush.msra.mxu0 %v1673
        %1975 = vmatpush.msra.mxu0 %v1667
        %1976 = vmatpush.msra.mxu0 %v1661
        %1977 = vmatpush.msra.mxu0 %v1655
        %1978 = vmatpush.msra.mxu0 %v1649
        %1979 = vmatpush.msra.mxu0 %v1643
        %1980 = vmatpush.msra.mxu0 %v1637
        %1981 = vmatpush.msra.mxu0 %v1631
        %1982 = vmatmul.f32.gmra.mxu0 %v1905
        %v1983 = vpop.f32.mrf.mxu0
        %v1984 = vadd.f32 %v1910, %v1983
        %1985 = vmatmul.f32.gmra.mxu0 %v1906
        %v1986 = vpop.f32.mrf.mxu0
        %v1987 = vadd.f32 %v1910, %v1986
        %1988 = vdwg.mxu0
        %1989 = vmatpush.msra.mxu0 %v1722
        %1990 = vmatpush.msra.mxu0 %v1716
        %1991 = vmatpush.msra.mxu0 %v1710
        %1992 = vmatpush.msra.mxu0 %v1704
        %1993 = vmatpush.msra.mxu0 %v1698
        %1994 = vmatpush.msra.mxu0 %v1692
        %1995 = vmatpush.msra.mxu0 %v1686
        %1996 = vmatpush.msra.mxu0 %v1680
        %1997 = vmatpush.msra.mxu0 %v1674
        %1998 = vmatpush.msra.mxu0 %v1668
        %1999 = vmatpush.msra.mxu0 %v1662
        %2000 = vmatpush.msra.mxu0 %v1656
        %2001 = vmatpush.msra.mxu0 %v1650
        %2002 = vmatpush.msra.mxu0 %v1644
        %2003 = vmatpush.msra.mxu0 %v1638
        %2004 = vmatpush.msra.mxu0 %v1632
        %2005 = vmatmul.f32.gmra.mxu0 %v1905
        %v2006 = vpop.f32.mrf.mxu0
        %v2007 = vadd.f32 %v1911, %v2006
        %2008 = vmatmul.f32.gmra.mxu0 %v1906
        %v2009 = vpop.f32.mrf.mxu0
        %v2010 = vadd.f32 %v1911, %v2009
        %2011 = vdwg.mxu0
        %2012 = vmatpush.msra.mxu0 %v1723
        %2013 = vmatpush.msra.mxu0 %v1717
        %2014 = vmatpush.msra.mxu0 %v1711
        %2015 = vmatpush.msra.mxu0 %v1705
        %2016 = vmatpush.msra.mxu0 %v1699
        %2017 = vmatpush.msra.mxu0 %v1693
        %2018 = vmatpush.msra.mxu0 %v1687
        %2019 = vmatpush.msra.mxu0 %v1681
        %2020 = vmatpush.msra.mxu0 %v1675
        %2021 = vmatpush.msra.mxu0 %v1669
        %2022 = vmatpush.msra.mxu0 %v1663
        %2023 = vmatpush.msra.mxu0 %v1657
        %2024 = vmatpush.msra.mxu0 %v1651
        %2025 = vmatpush.msra.mxu0 %v1645
        %2026 = vmatpush.msra.mxu0 %v1639
        %2027 = vmatpush.msra.mxu0 %v1633
        %2028 = vmatmul.f32.gmra.mxu0 %v1905
        %v2029 = vpop.f32.mrf.mxu0
        %v2030 = vadd.f32 %v1912, %v2029
        %2031 = vmatmul.f32.gmra.mxu0 %v1906
        %v2032 = vpop.f32.mrf.mxu0
        %v2033 = vadd.f32 %v1912, %v2032
        %2034 = vdwg.mxu0
        %2035 = vmatpush.msra.mxu0 %v1724
        %2036 = vmatpush.msra.mxu0 %v1718
        %2037 = vmatpush.msra.mxu0 %v1712
        %2038 = vmatpush.msra.mxu0 %v1706
        %2039 = vmatpush.msra.mxu0 %v1700
        %2040 = vmatpush.msra.mxu0 %v1694
        %2041 = vmatpush.msra.mxu0 %v1688
        %2042 = vmatpush.msra.mxu0 %v1682
        %2043 = vmatpush.msra.mxu0 %v1676
        %2044 = vmatpush.msra.mxu0 %v1670
        %2045 = vmatpush.msra.mxu0 %v1664
        %2046 = vmatpush.msra.mxu0 %v1658
        %2047 = vmatpush.msra.mxu0 %v1652
        %2048 = vmatpush.msra.mxu0 %v1646
        %2049 = vmatpush.msra.mxu0 %v1640
        %2050 = vmatpush.msra.mxu0 %v1634
        %2051 = vmatmul.f32.gmra.mxu0 %v1905
        %v2052 = vpop.f32.mrf.mxu0
        %v2053 = vadd.f32 %v1913, %v2052
        %2054 = vmatmul.f32.gmra.mxu0 %v1906
        %v2055 = vpop.f32.mrf.mxu0
        %v2056 = vadd.f32 %v1913, %v2055
        %2057 = vdwg.mxu0
        %v2058 = vperm.slane %v1726, 1
        %v2059 = vadd.f32 %v2058, 0.0
        %v2061 = vsel %vm820, %v1938, 0
        %v2064 = vsel %vm820, %v1941, 0
        %v2067 = vsel %vm820, %v1961, 0
        %v2070 = vsel %vm820, %v1964, 0
        %2072 = vmatpush.xpose.msra.mxu0 0.0
        %2073 = vmatpush.xpose.msra.mxu0 0.0
        %2074 = vmatpush.xpose.msra.mxu0 0.0
        %2075 = vmatpush.xpose.msra.mxu0 0.0
        %2076 = vmatpush.xpose.msra.mxu0 0.0
        %2077 = vmatpush.xpose.msra.mxu0 0.0
        %2078 = vmatpush.xpose.msra.mxu0 0.0
        %2079 = vmatpush.xpose.msra.mxu0 0.0
        %2080 = vmatpush.xpose.msra.mxu0 0.0
        %2081 = vmatpush.xpose.msra.mxu0 0.0
        %2082 = vmatpush.xpose.msra.mxu0 0.0
        %2083 = vmatpush.xpose.msra.mxu0 0.0
        %2084 = vmatpush.xpose.msra.mxu0 0.0
        %2085 = vmatpush.xpose.msra.mxu0 0.0
        %2086 = vmatpush.xpose.msra.mxu0 %v2070
        %2087 = vmatpush.xpose.msra.mxu0 %v2067
        %2088 = vmatmul.f32.gmra.mxu0 %v2061
        %v2089 = vpop.f32.mrf.mxu0
        %v2090 = vadd.f32 0.0, %v2089
        %2091 = vmatmul.f32.gmra.mxu0 %v2064
        %v2092 = vpop.f32.mrf.mxu0
        %v2093 = vadd.f32 0.0, %v2092
        %2094 = vdwg.mxu0
        %v2095 = vmul.f32 %v2090, 0.25
        %v2096 = vmul.f32 %v2093, 0.25
        %v2097 = vadd.f32 %v2095, %v1733
        %v2098 = vadd.f32 %v2096, %v1734
        %vm2099 = vcmask 97280
        %v2100 = vsel %vm2099, %v2097, -inf
        %2101 = vmax.xlane.f32.xlu0 %v2100
        %v2102 = vpop.xlane.xlu0 %2101
        %vm2103 = vcmask 93184
        %v2104 = vsel %vm2103, %v2098, -inf
        %2105 = vmax.xlane.f32.xlu0 %v2104
        %v2106 = vpop.xlane.xlu0 %2105
        %v2107 = vsub.f32 %v2097, %v2102
        %v2108 = vsub.f32 %v2098, %v2106
        %v2109 = vmul.f32 %v2107, 1.442695
        %v2110 = vpow.pop %v2109
        %v2111 = vmul.f32 %v2108, 1.442695
        %v2112 = vpow.pop %v2111
        %v2113 = vsel %vm2099, %v2110, 0.0
        %2114 = vadd.xlane.f32.xlu0 %v2113
        %v2115 = vpop.xlane.xlu0 %2114
        %v2116 = vsel %vm2103, %v2112, 0.0
        %2117 = vadd.xlane.f32.xlu0 %v2116
        %v2118 = vpop.xlane.xlu0 %2117
        %v2119 = vrcp.pop %v2115
        %v2120 = vrcp.pop %v2118
        %v2121 = vmul.f32 %v2110, %v2119
        %v2122 = vmul.f32 %v2112, %v2120
        %v2124 = vsel %vm2099, %v2121, 0
        %v2127 = vsel %vm2099, %v2122, 0
        %vm2129 = vcmask 1043456
        %v2131 = vsel %vm2129, %v1987, 0
        %2133 = vmatpush.msra.mxu0 0.0
        %2134 = vmatpush.msra.mxu0 0.0
        %2135 = vmatpush.msra.mxu0 0.0
        %2136 = vmatpush.msra.mxu0 0.0
        %2137 = vmatpush.msra.mxu0 0.0
        %2138 = vmatpush.msra.mxu0 0.0
        %2139 = vmatpush.msra.mxu0 0.0
        %2140 = vmatpush.msra.mxu0 0.0
        %2141 = vmatpush.msra.mxu0 0.0
        %2142 = vmatpush.msra.mxu0 0.0
        %2143 = vmatpush.msra.mxu0 0.0
        %2144 = vmatpush.msra.mxu0 0.0
        %2145 = vmatpush.msra.mxu0 0.0
        %2146 = vmatpush.msra.mxu0 0.0
        %2147 = vmatpush.msra.mxu0 %v2131
        %2148 = vmatpush.msra.mxu0 %v1984
        %2149 = vmatmul.f32.gmra.mxu0 %v2124
        %v2150 = vpop.f32.mrf.mxu0
        %v2151 = vadd.f32 0.0, %v2150
        %2152 = vmatmul.f32.gmra.mxu0 %v2127
        %v2153 = vpop.f32.mrf.mxu0
        %v2154 = vadd.f32 0.0, %v2153
        %2155 = vdwg.mxu0
        %v2156 = vadd.f32 %v2059, %v2151
        %v2157 = vadd.f32 %v2059, %v2154
        %2158 = vrot.lane.b32.xlu0 %v1938, 112
        %v2159 = vpop.permute.xlu0 %2158
        %2160 = vrot.lane.b32.xlu0 %v1941, 112
        %v2161 = vpop.permute.xlu0 %2160
        %2162 = vrot.lane.b32.xlu0 %v1961, 112
        %v2163 = vpop.permute.xlu0 %2162
        %2164 = vrot.lane.b32.xlu0 %v1964, 112
        %v2165 = vpop.permute.xlu0 %2164
        %v2166 = vsel %vm820, %v2159, 0
        %v2168 = vsel %vm820, %v2161, 0
        %v2170 = vsel %vm820, %v2163, 0
        %v2172 = vsel %vm820, %v2165, 0
        %2174 = vmatpush.xpose.msra.mxu0 0.0
        %2175 = vmatpush.xpose.msra.mxu0 0.0
        %2176 = vmatpush.xpose.msra.mxu0 0.0
        %2177 = vmatpush.xpose.msra.mxu0 0.0
        %2178 = vmatpush.xpose.msra.mxu0 0.0
        %2179 = vmatpush.xpose.msra.mxu0 0.0
        %2180 = vmatpush.xpose.msra.mxu0 0.0
        %2181 = vmatpush.xpose.msra.mxu0 0.0
        %2182 = vmatpush.xpose.msra.mxu0 0.0
        %2183 = vmatpush.xpose.msra.mxu0 0.0
        %2184 = vmatpush.xpose.msra.mxu0 0.0
        %2185 = vmatpush.xpose.msra.mxu0 0.0
        %2186 = vmatpush.xpose.msra.mxu0 0.0
        %2187 = vmatpush.xpose.msra.mxu0 0.0
        %2188 = vmatpush.xpose.msra.mxu0 %v2172
        %2189 = vmatpush.xpose.msra.mxu0 %v2170
        %2190 = vmatmul.f32.gmra.mxu0 %v2166
        %v2191 = vpop.f32.mrf.mxu0
        %v2192 = vadd.f32 0.0, %v2191
        %2193 = vmatmul.f32.gmra.mxu0 %v2168
        %v2194 = vpop.f32.mrf.mxu0
        %v2195 = vadd.f32 0.0, %v2194
        %2196 = vdwg.mxu0
        %v2197 = vmul.f32 %v2192, 0.25
        %v2198 = vmul.f32 %v2195, 0.25
        %v2199 = vadd.f32 %v2197, %v1733
        %v2200 = vadd.f32 %v2198, %v1734
        %v2201 = vsel %vm2099, %v2199, -inf
        %2202 = vmax.xlane.f32.xlu0 %v2201
        %v2203 = vpop.xlane.xlu0 %2202
        %v2204 = vsel %vm2103, %v2200, -inf
        %2205 = vmax.xlane.f32.xlu0 %v2204
        %v2206 = vpop.xlane.xlu0 %2205
        %v2207 = vsub.f32 %v2199, %v2203
        %v2208 = vsub.f32 %v2200, %v2206
        %v2209 = vmul.f32 %v2207, 1.442695
        %v2210 = vpow.pop %v2209
        %v2211 = vmul.f32 %v2208, 1.442695
        %v2212 = vpow.pop %v2211
        %v2213 = vsel %vm2099, %v2210, 0.0
        %2214 = vadd.xlane.f32.xlu0 %v2213
        %v2215 = vpop.xlane.xlu0 %2214
        %v2216 = vsel %vm2103, %v2212, 0.0
        %2217 = vadd.xlane.f32.xlu0 %v2216
        %v2218 = vpop.xlane.xlu0 %2217
        %v2219 = vrcp.pop %v2215
        %v2220 = vrcp.pop %v2218
        %v2221 = vmul.f32 %v2210, %v2219
        %v2222 = vmul.f32 %v2212, %v2220
        %v2224 = vsel %vm2099, %v2221, 0
        %v2227 = vsel %vm2099, %v2222, 0
        %v2230 = vsel %vm2129, %v2010, 0
        %2232 = vmatpush.msra.mxu0 0.0
        %2233 = vmatpush.msra.mxu0 0.0
        %2234 = vmatpush.msra.mxu0 0.0
        %2235 = vmatpush.msra.mxu0 0.0
        %2236 = vmatpush.msra.mxu0 0.0
        %2237 = vmatpush.msra.mxu0 0.0
        %2238 = vmatpush.msra.mxu0 0.0
        %2239 = vmatpush.msra.mxu0 0.0
        %2240 = vmatpush.msra.mxu0 0.0
        %2241 = vmatpush.msra.mxu0 0.0
        %2242 = vmatpush.msra.mxu0 0.0
        %2243 = vmatpush.msra.mxu0 0.0
        %2244 = vmatpush.msra.mxu0 0.0
        %2245 = vmatpush.msra.mxu0 0.0
        %2246 = vmatpush.msra.mxu0 %v2230
        %2247 = vmatpush.msra.mxu0 %v2007
        %2248 = vmatmul.f32.gmra.mxu0 %v2224
        %v2249 = vpop.f32.mrf.mxu0
        %v2250 = vadd.f32 0.0, %v2249
        %2251 = vmatmul.f32.gmra.mxu0 %v2227
        %v2252 = vpop.f32.mrf.mxu0
        %v2253 = vadd.f32 0.0, %v2252
        %2254 = vdwg.mxu0
        %v2255 = vadd.f32 %v2156, %v2250
        %v2256 = vadd.f32 %v2157, %v2253
        %2257 = vrot.lane.b32.xlu0 %v1938, 96
        %v2258 = vpop.permute.xlu0 %2257
        %2259 = vrot.lane.b32.xlu0 %v1941, 96
        %v2260 = vpop.permute.xlu0 %2259
        %2261 = vrot.lane.b32.xlu0 %v1961, 96
        %v2262 = vpop.permute.xlu0 %2261
        %2263 = vrot.lane.b32.xlu0 %v1964, 96
        %v2264 = vpop.permute.xlu0 %2263
        %v2265 = vsel %vm820, %v2258, 0
        %v2267 = vsel %vm820, %v2260, 0
        %v2269 = vsel %vm820, %v2262, 0
        %v2271 = vsel %vm820, %v2264, 0
        %2273 = vmatpush.xpose.msra.mxu0 0.0
        %2274 = vmatpush.xpose.msra.mxu0 0.0
        %2275 = vmatpush.xpose.msra.mxu0 0.0
        %2276 = vmatpush.xpose.msra.mxu0 0.0
        %2277 = vmatpush.xpose.msra.mxu0 0.0
        %2278 = vmatpush.xpose.msra.mxu0 0.0
        %2279 = vmatpush.xpose.msra.mxu0 0.0
        %2280 = vmatpush.xpose.msra.mxu0 0.0
        %2281 = vmatpush.xpose.msra.mxu0 0.0
        %2282 = vmatpush.xpose.msra.mxu0 0.0
        %2283 = vmatpush.xpose.msra.mxu0 0.0
        %2284 = vmatpush.xpose.msra.mxu0 0.0
        %2285 = vmatpush.xpose.msra.mxu0 0.0
        %2286 = vmatpush.xpose.msra.mxu0 0.0
        %2287 = vmatpush.xpose.msra.mxu0 %v2271
        %2288 = vmatpush.xpose.msra.mxu0 %v2269
        %2289 = vmatmul.f32.gmra.mxu0 %v2265
        %v2290 = vpop.f32.mrf.mxu0
        %v2291 = vadd.f32 0.0, %v2290
        %2292 = vmatmul.f32.gmra.mxu0 %v2267
        %v2293 = vpop.f32.mrf.mxu0
        %v2294 = vadd.f32 0.0, %v2293
        %2295 = vdwg.mxu0
        %v2296 = vmul.f32 %v2291, 0.25
        %v2297 = vmul.f32 %v2294, 0.25
        %v2298 = vadd.f32 %v2296, %v1733
        %v2299 = vadd.f32 %v2297, %v1734
        %v2300 = vsel %vm2099, %v2298, -inf
        %2301 = vmax.xlane.f32.xlu0 %v2300
        %v2302 = vpop.xlane.xlu0 %2301
        %v2303 = vsel %vm2103, %v2299, -inf
        %2304 = vmax.xlane.f32.xlu0 %v2303
        %v2305 = vpop.xlane.xlu0 %2304
        %v2306 = vsub.f32 %v2298, %v2302
        %v2307 = vsub.f32 %v2299, %v2305
        %v2308 = vmul.f32 %v2306, 1.442695
        %v2309 = vpow.pop %v2308
        %v2310 = vmul.f32 %v2307, 1.442695
        %v2311 = vpow.pop %v2310
        %v2312 = vsel %vm2099, %v2309, 0.0
        %2313 = vadd.xlane.f32.xlu0 %v2312
        %v2314 = vpop.xlane.xlu0 %2313
        %v2315 = vsel %vm2103, %v2311, 0.0
        %2316 = vadd.xlane.f32.xlu0 %v2315
        %v2317 = vpop.xlane.xlu0 %2316
        %v2318 = vrcp.pop %v2314
        %v2319 = vrcp.pop %v2317
        %v2320 = vmul.f32 %v2309, %v2318
        %v2321 = vmul.f32 %v2311, %v2319
        %v2323 = vsel %vm2099, %v2320, 0
        %v2326 = vsel %vm2099, %v2321, 0
        %v2329 = vsel %vm2129, %v2033, 0
        %2331 = vmatpush.msra.mxu0 0.0
        %2332 = vmatpush.msra.mxu0 0.0
        %2333 = vmatpush.msra.mxu0 0.0
        %2334 = vmatpush.msra.mxu0 0.0
        %2335 = vmatpush.msra.mxu0 0.0
        %2336 = vmatpush.msra.mxu0 0.0
        %2337 = vmatpush.msra.mxu0 0.0
        %2338 = vmatpush.msra.mxu0 0.0
        %2339 = vmatpush.msra.mxu0 0.0
        %2340 = vmatpush.msra.mxu0 0.0
        %2341 = vmatpush.msra.mxu0 0.0
        %2342 = vmatpush.msra.mxu0 0.0
        %2343 = vmatpush.msra.mxu0 0.0
        %2344 = vmatpush.msra.mxu0 0.0
        %2345 = vmatpush.msra.mxu0 %v2329
        %2346 = vmatpush.msra.mxu0 %v2030
        %2347 = vmatmul.f32.gmra.mxu0 %v2323
        %v2348 = vpop.f32.mrf.mxu0
        %v2349 = vadd.f32 0.0, %v2348
        %2350 = vmatmul.f32.gmra.mxu0 %v2326
        %v2351 = vpop.f32.mrf.mxu0
        %v2352 = vadd.f32 0.0, %v2351
        %2353 = vdwg.mxu0
        %v2354 = vadd.f32 %v2255, %v2349
        %v2355 = vadd.f32 %v2256, %v2352
        %2356 = vrot.lane.b32.xlu0 %v1938, 80
        %v2357 = vpop.permute.xlu0 %2356
        %2358 = vrot.lane.b32.xlu0 %v1941, 80
        %v2359 = vpop.permute.xlu0 %2358
        %2360 = vrot.lane.b32.xlu0 %v1961, 80
        %v2361 = vpop.permute.xlu0 %2360
        %2362 = vrot.lane.b32.xlu0 %v1964, 80
        %v2363 = vpop.permute.xlu0 %2362
        %v2364 = vsel %vm820, %v2357, 0
        %v2366 = vsel %vm820, %v2359, 0
        %v2368 = vsel %vm820, %v2361, 0
        %v2370 = vsel %vm820, %v2363, 0
        %2372 = vmatpush.xpose.msra.mxu0 0.0
        %2373 = vmatpush.xpose.msra.mxu0 0.0
        %2374 = vmatpush.xpose.msra.mxu0 0.0
        %2375 = vmatpush.xpose.msra.mxu0 0.0
        %2376 = vmatpush.xpose.msra.mxu0 0.0
        %2377 = vmatpush.xpose.msra.mxu0 0.0
        %2378 = vmatpush.xpose.msra.mxu0 0.0
        %2379 = vmatpush.xpose.msra.mxu0 0.0
        %2380 = vmatpush.xpose.msra.mxu0 0.0
        %2381 = vmatpush.xpose.msra.mxu0 0.0
        %2382 = vmatpush.xpose.msra.mxu0 0.0
        %2383 = vmatpush.xpose.msra.mxu0 0.0
        %2384 = vmatpush.xpose.msra.mxu0 0.0
        %2385 = vmatpush.xpose.msra.mxu0 0.0
        %2386 = vmatpush.xpose.msra.mxu0 %v2370
        %2387 = vmatpush.xpose.msra.mxu0 %v2368
        %2388 = vmatmul.f32.gmra.mxu0 %v2364
        %v2389 = vpop.f32.mrf.mxu0
        %v2390 = vadd.f32 0.0, %v2389
        %2391 = vmatmul.f32.gmra.mxu0 %v2366
        %v2392 = vpop.f32.mrf.mxu0
        %v2393 = vadd.f32 0.0, %v2392
        %2394 = vdwg.mxu0
        %v2395 = vmul.f32 %v2390, 0.25
        %v2396 = vmul.f32 %v2393, 0.25
        %v2397 = vadd.f32 %v2395, %v1733
        %v2398 = vadd.f32 %v2396, %v1734
        %v2399 = vsel %vm2099, %v2397, -inf
        %2400 = vmax.xlane.f32.xlu0 %v2399
        %v2401 = vpop.xlane.xlu0 %2400
        %v2402 = vsel %vm2103, %v2398, -inf
        %2403 = vmax.xlane.f32.xlu0 %v2402
        %v2404 = vpop.xlane.xlu0 %2403
        %v2405 = vsub.f32 %v2397, %v2401
        %v2406 = vsub.f32 %v2398, %v2404
        %v2407 = vmul.f32 %v2405, 1.442695
        %v2408 = vpow.pop %v2407
        %v2409 = vmul.f32 %v2406, 1.442695
        %v2410 = vpow.pop %v2409
        %v2411 = vsel %vm2099, %v2408, 0.0
        %2412 = vadd.xlane.f32.xlu0 %v2411
        %v2413 = vpop.xlane.xlu0 %2412
        %v2414 = vsel %vm2103, %v2410, 0.0
        %2415 = vadd.xlane.f32.xlu0 %v2414
        %v2416 = vpop.xlane.xlu0 %2415
        %v2417 = vrcp.pop %v2413
        %v2418 = vrcp.pop %v2416
        %v2419 = vmul.f32 %v2408, %v2417
        %v2420 = vmul.f32 %v2410, %v2418
        %v2422 = vsel %vm2099, %v2419, 0
        %v2425 = vsel %vm2099, %v2420, 0
        %v2428 = vsel %vm2129, %v2056, 0
        %2430 = vmatpush.msra.mxu0 0.0
        %2431 = vmatpush.msra.mxu0 0.0
        %2432 = vmatpush.msra.mxu0 0.0
        %2433 = vmatpush.msra.mxu0 0.0
        %2434 = vmatpush.msra.mxu0 0.0
        %2435 = vmatpush.msra.mxu0 0.0
        %2436 = vmatpush.msra.mxu0 0.0
        %2437 = vmatpush.msra.mxu0 0.0
        %2438 = vmatpush.msra.mxu0 0.0
        %2439 = vmatpush.msra.mxu0 0.0
        %2440 = vmatpush.msra.mxu0 0.0
        %2441 = vmatpush.msra.mxu0 0.0
        %2442 = vmatpush.msra.mxu0 0.0
        %2443 = vmatpush.msra.mxu0 0.0
        %2444 = vmatpush.msra.mxu0 %v2428
        %2445 = vmatpush.msra.mxu0 %v2053
        %2446 = vmatmul.f32.gmra.mxu0 %v2422
        %v2447 = vpop.f32.mrf.mxu0
        %v2448 = vadd.f32 0.0, %v2447
        %2449 = vmatmul.f32.gmra.mxu0 %v2425
        %v2450 = vpop.f32.mrf.mxu0
        %v2451 = vadd.f32 0.0, %v2450
        %2452 = vdwg.mxu0
        %v2453 = vadd.f32 %v2354, %v2448
        %v2454 = vadd.f32 %v2355, %v2451
        %v2455 = vadd.f32 %v1905, %v2453
        %v2456 = vadd.f32 %v1906, %v2454
        %2457 = vadd.xlane.f32.xlu0 %v2455
        %v2458 = vpop.xlane.xlu0 %2457
        %v2459 = vsel %vm2129, %v2456, 0.0
        %2460 = vadd.xlane.f32.xlu0 %v2459
        %v2461 = vpop.xlane.xlu0 %2460
        %v2462 = vmul.f32 %v2458, 0.015625
        %v2463 = vmul.f32 %v2461, 0.015625
        %v2464 = vsub.f32 %v2455, %v2462
        %v2465 = vsub.f32 %v2456, %v2463
        %v2466 = vperm.slane %v1726, 4
        %v2467 = vmul.f32 %v2464, %v2466
        %v2468 = vmul.f32 %v2465, %v2466
        %v2469 = vmul.f32 %v2467, %v2467
        %v2470 = vmul.f32 %v2468, %v2468
        %2471 = vadd.xlane.f32.xlu0 %v2469
        %v2472 = vpop.xlane.xlu0 %2471
        %v2473 = vsel %vm2129, %v2470, 0.0
        %2474 = vadd.xlane.f32.xlu0 %v2473
        %v2475 = vpop.xlane.xlu0 %2474
        %v2476 = vmul.f32 %v2472, 0.015625
        %v2477 = vmul.f32 %v2475, 0.015625
        %v2478 = vadd.f32 %v2476, 1e-05
        %v2479 = vadd.f32 %v2477, 1e-05
        %v2480 = vrsqrt.pop %v2478
        %v2481 = vmul.f32 %v2480, %v2478
        %v2482 = vmul.f32 %v2481, %v2480
        %v2483 = vmul.f32 0.5, %v2482
        %v2484 = vsub.f32 1.5, %v2483
        %v2485 = vmul.f32 %v2480, %v2484
        %vm2486 = vweird.f32 %v2478
        %vm2487 = vweird.f32 %v2480
        %vm2488 = vmor %vm2486, %vm2487
        %v2489 = vsel %vm2488, %v2480, %v2485
        %v2490 = vrsqrt.pop %v2479
        %v2491 = vmul.f32 %v2490, %v2479
        %v2492 = vmul.f32 %v2491, %v2490
        %v2493 = vmul.f32 0.5, %v2492
        %v2494 = vsub.f32 1.5, %v2493
        %v2495 = vmul.f32 %v2490, %v2494
        %vm2496 = vweird.f32 %v2479
        %vm2497 = vweird.f32 %v2490
        %vm2498 = vmor %vm2496, %vm2497
        %v2499 = vsel %vm2498, %v2490, %v2495
        %v2500 = vmul.f32 %v2467, %v2489
        %v2501 = vmul.f32 %v2468, %v2499
        %v2502 = vperm.slane %v1726, 2
        %v2503 = vmul.f32 %v2500, %v2502
        %v2504 = vmul.f32 %v2501, %v2502
        %v2505 = vperm.slane %v1726, 3
        %v2506 = vadd.f32 %v2503, %v2505
        %v2507 = vadd.f32 %v2504, %v2505
        %v2508 = vld [vmem:[#allocation8] sm:$0xff]
        %v2509 = vld [vmem:[#allocation8 + $0x8] sm:$0xff]
        %v2510 = vld [vmem:[#allocation8 + $0x10] sm:$0xff]
        %v2511 = vld [vmem:[#allocation8 + $0x18] sm:$0xff]
        %v2512 = vld [vmem:[#allocation8 + $0x20] sm:$0xff]
        %v2513 = vld [vmem:[#allocation8 + $0x28] sm:$0xff]
        %v2514 = vld [vmem:[#allocation8 + $0x30] sm:$0xff]
        %v2515 = vld [vmem:[#allocation8 + $0x38] sm:$0xff]
        %v2516 = vld [vmem:[#allocation8 + $0x40] sm:$0xff]
        %v2517 = vld [vmem:[#allocation8 + $0x48] sm:$0xff]
        %v2518 = vld [vmem:[#allocation8 + $0x50] sm:$0xff]
        %v2519 = vld [vmem:[#allocation8 + $0x58] sm:$0xff]
        %v2520 = vld [vmem:[#allocation8 + $0x60] sm:$0xff]
        %v2521 = vld [vmem:[#allocation8 + $0x68] sm:$0xff]
        %v2522 = vld [vmem:[#allocation8 + $0x70] sm:$0xff]
        %v2523 = vld [vmem:[#allocation8 + $0x78] sm:$0xff]
        %v2524 = vld [vmem:[#allocation8 + $0x80] sm:$0xff]
        %v2525 = vld [vmem:[#allocation8 + $0x88] sm:$0xff]
        %v2526 = vld [vmem:[#allocation8 + $0x90] sm:$0xff]
        %v2527 = vld [vmem:[#allocation8 + $0x98] sm:$0xff]
        %v2528 = vld [vmem:[#allocation8 + $0xa0] sm:$0xff]
        %v2529 = vld [vmem:[#allocation8 + $0xa8] sm:$0xff]
        %v2530 = vld [vmem:[#allocation8 + $0xb0] sm:$0xff]
        %v2531 = vld [vmem:[#allocation8 + $0xb8] sm:$0xff]
        %v2532 = vld [vmem:[#allocation8 + $0xc0] sm:$0xff]
        %v2533 = vld [vmem:[#allocation8 + $0xc8] sm:$0xff]
        %v2534 = vld [vmem:[#allocation8 + $0xd0] sm:$0xff]
        %v2535 = vld [vmem:[#allocation8 + $0xd8] sm:$0xff]
        %v2536 = vld [vmem:[#allocation8 + $0xe0] sm:$0xff]
        %v2537 = vld [vmem:[#allocation8 + $0xe8] sm:$0xff]
        %v2538 = vld [vmem:[#allocation8 + $0xf0] sm:$0xff]
        %v2539 = vld [vmem:[#allocation8 + $0xf8] sm:$0xff]
        %v2540 = vld [vmem:[#allocation8 + $0x100] sm:$0xff]
        %v2541 = vld [vmem:[#allocation8 + $0x108] sm:$0xff]
        %v2542 = vld [vmem:[#allocation8 + $0x110] sm:$0xff]
        %v2543 = vld [vmem:[#allocation8 + $0x118] sm:$0xff]
        %v2544 = vld [vmem:[#allocation8 + $0x120] sm:$0xff]
        %v2545 = vld [vmem:[#allocation8 + $0x128] sm:$0xff]
        %v2546 = vld [vmem:[#allocation8 + $0x130] sm:$0xff]
        %v2547 = vld [vmem:[#allocation8 + $0x138] sm:$0xff]
        %v2548 = vld [vmem:[#allocation8 + $0x140] sm:$0xff]
        %v2549 = vld [vmem:[#allocation8 + $0x148] sm:$0xff]
        %v2550 = vld [vmem:[#allocation8 + $0x150] sm:$0xff]
        %v2551 = vld [vmem:[#allocation8 + $0x158] sm:$0xff]
        %v2552 = vld [vmem:[#allocation8 + $0x160] sm:$0xff]
        %v2553 = vld [vmem:[#allocation8 + $0x168] sm:$0xff]
        %v2554 = vld [vmem:[#allocation8 + $0x170] sm:$0xff]
        %v2555 = vld [vmem:[#allocation8 + $0x178] sm:$0xff]
        %v2556 = vld [vmem:[#allocation10] sm:$0xff]
        %v2557 = vld [vmem:[#allocation10 + $0x8] sm:$0xff]
        %v2558 = vld [vmem:[#allocation10 + $0x10] sm:$0xff]
        %v2559 = vld [vmem:[#allocation10 + $0x18] sm:$0xff]
        %v2560 = vld [vmem:[#allocation10 + $0x20] sm:$0xff]
        %v2561 = vld [vmem:[#allocation10 + $0x28] sm:$0xff]
        %v2562 = vld [vmem:[#allocation10 + $0x30] sm:$0xff]
        %v2563 = vld [vmem:[#allocation10 + $0x38] sm:$0xff]
        %v2564 = vld [vmem:[#allocation10 + $0x40] sm:$0xff]
        %v2565 = vld [vmem:[#allocation10 + $0x48] sm:$0xff]
        %v2566 = vld [vmem:[#allocation10 + $0x50] sm:$0xff]
        %v2567 = vld [vmem:[#allocation10 + $0x58] sm:$0xff]
        %v2568 = vld [vmem:[#allocation10 + $0x60] sm:$0xff]
        %v2569 = vld [vmem:[#allocation10 + $0x68] sm:$0xff]
        %v2570 = vld [vmem:[#allocation10 + $0x70] sm:$0xff]
        %v2571 = vld [vmem:[#allocation10 + $0x78] sm:$0xff]
        %v2572 = vld [vmem:[#allocation10 + $0x80] sm:$0xff]
        %v2573 = vld [vmem:[#allocation10 + $0x88] sm:$0xff]
        %v2574 = vld [vmem:[#allocation10 + $0x90] sm:$0xff]
        %v2575 = vld [vmem:[#allocation10 + $0x98] sm:$0xff]
        %v2576 = vld [vmem:[#allocation10 + $0xa0] sm:$0xff]
        %v2577 = vld [vmem:[#allocation10 + $0xa8] sm:$0xff]
        %v2578 = vld [vmem:[#allocation10 + $0xb0] sm:$0xff]
        %v2579 = vld [vmem:[#allocation10 + $0xb8] sm:$0xff]
        %v2580 = vld [vmem:[#allocation10 + $0xc0] sm:$0xff]
        %v2581 = vld [vmem:[#allocation10 + $0xc8] sm:$0xff]
        %v2582 = vld [vmem:[#allocation10 + $0xd0] sm:$0xff]
        %v2583 = vld [vmem:[#allocation10 + $0xd8] sm:$0xff]
        %v2584 = vld [vmem:[#allocation10 + $0xe0] sm:$0xff]
        %v2585 = vld [vmem:[#allocation10 + $0xe8] sm:$0xff]
        %v2586 = vld [vmem:[#allocation10 + $0xf0] sm:$0xff]
        %v2587 = vld [vmem:[#allocation10 + $0xf8] sm:$0xff]
        %v2588 = vld [vmem:[#allocation10 + $0x100] sm:$0xff]
        %v2589 = vld [vmem:[#allocation10 + $0x108] sm:$0xff]
        %v2590 = vld [vmem:[#allocation10 + $0x110] sm:$0xff]
        %v2591 = vld [vmem:[#allocation10 + $0x118] sm:$0xff]
        %v2592 = vld [vmem:[#allocation10 + $0x120] sm:$0xff]
        %v2593 = vld [vmem:[#allocation10 + $0x128] sm:$0xff]
        %v2594 = vld [vmem:[#allocation10 + $0x130] sm:$0xff]
        %v2595 = vld [vmem:[#allocation10 + $0x138] sm:$0xff]
        %v2596 = vld [vmem:[#allocation10 + $0x140] sm:$0xff]
        %v2597 = vld [vmem:[#allocation10 + $0x148] sm:$0xff]
        %v2598 = vld [vmem:[#allocation10 + $0x150] sm:$0xff]
        %v2599 = vld [vmem:[#allocation10 + $0x158] sm:$0xff]
        %v2600 = vld [vmem:[#allocation10 + $0x160] sm:$0xff]
        %v2601 = vld [vmem:[#allocation10 + $0x168] sm:$0xff]
        %v2602 = vld [vmem:[#allocation10 + $0x170] sm:$0xff]
        %v2603 = vld [vmem:[#allocation10 + $0x178] sm:$0xff]
        %v2604 = vld [vmem:[#allocation10 + $0x180] sm:$0xff]
        %v2605 = vld [vmem:[#allocation10 + $0x188] sm:$0xff]
        %v2606 = vld [vmem:[#allocation10 + $0x190] sm:$0xff]
        %v2607 = vld [vmem:[#allocation10 + $0x198] sm:$0xff]
        %v2608 = vld [vmem:[#allocation10 + $0x1a0] sm:$0xff]
        %v2609 = vld [vmem:[#allocation10 + $0x1a8] sm:$0xff]
        %v2610 = vld [vmem:[#allocation10 + $0x1b0] sm:$0xff]
        %v2611 = vld [vmem:[#allocation10 + $0x1b8] sm:$0xff]
        %v2612 = vld [vmem:[#allocation10 + $0x1c0] sm:$0xff]
        %v2613 = vld [vmem:[#allocation10 + $0x1c8] sm:$0xff]
        %v2614 = vld [vmem:[#allocation10 + $0x1d0] sm:$0xff]
        %v2615 = vld [vmem:[#allocation10 + $0x1d8] sm:$0xff]
        %v2616 = vld [vmem:[#allocation10 + $0x1e0] sm:$0xff]
        %v2617 = vld [vmem:[#allocation10 + $0x1e8] sm:$0xff]
        %v2618 = vld [vmem:[#allocation10 + $0x1f0] sm:$0xff]
        %v2619 = vld [vmem:[#allocation10 + $0x1f8] sm:$0xff]
        %v2620 = vld [vmem:[#allocation10 + $0x200] sm:$0xff]
        %v2621 = vld [vmem:[#allocation10 + $0x208] sm:$0xff]
        %v2622 = vld [vmem:[#allocation10 + $0x210] sm:$0xff]
        %v2623 = vld [vmem:[#allocation10 + $0x218] sm:$0xff]
        %v2624 = vld [vmem:[#allocation10 + $0x220] sm:$0xff]
        %v2625 = vld [vmem:[#allocation10 + $0x228] sm:$0xff]
        %v2626 = vld [vmem:[#allocation10 + $0x230] sm:$0xff]
        %v2627 = vld [vmem:[#allocation10 + $0x238] sm:$0xff]
        %v2628 = vld [vmem:[#allocation10 + $0x240] sm:$0xff]
        %v2629 = vld [vmem:[#allocation10 + $0x248] sm:$0xff]
        %v2630 = vld [vmem:[#allocation10 + $0x250] sm:$0xff]
        %v2631 = vld [vmem:[#allocation10 + $0x258] sm:$0xff]
        %v2632 = vld [vmem:[#allocation10 + $0x260] sm:$0xff]
        %v2633 = vld [vmem:[#allocation10 + $0x268] sm:$0xff]
        %v2634 = vld [vmem:[#allocation10 + $0x270] sm:$0xff]
        %v2635 = vld [vmem:[#allocation10 + $0x278] sm:$0xff]
        %v2636 = vld [vmem:[#allocation10 + $0x280] sm:$0xff]
        %v2637 = vld [vmem:[#allocation10 + $0x288] sm:$0xff]
        %v2638 = vld [vmem:[#allocation10 + $0x290] sm:$0xff]
        %v2639 = vld [vmem:[#allocation10 + $0x298] sm:$0xff]
        %v2640 = vld [vmem:[#allocation10 + $0x2a0] sm:$0xff]
        %v2641 = vld [vmem:[#allocation10 + $0x2a8] sm:$0xff]
        %v2642 = vld [vmem:[#allocation10 + $0x2b0] sm:$0xff]
        %v2643 = vld [vmem:[#allocation10 + $0x2b8] sm:$0xff]
        %v2644 = vld [vmem:[#allocation10 + $0x2c0] sm:$0xff]
        %v2645 = vld [vmem:[#allocation10 + $0x2c8] sm:$0xff]
        %v2646 = vld [vmem:[#allocation10 + $0x2d0] sm:$0xff]
        %v2647 = vld [vmem:[#allocation10 + $0x2d8] sm:$0xff]
        %v2648 = vld [vmem:[#allocation10 + $0x2e0] sm:$0xff]
        %v2649 = vld [vmem:[#allocation10 + $0x2e8] sm:$0xff]
        %v2650 = vld [vmem:[#allocation10 + $0x2f0] sm:$0xff]
        %v2651 = vld [vmem:[#allocation10 + $0x2f8] sm:$0xff]
        %v2652 = vld [vmem:[%s11] sm:$0x3f]
        %v2653 = vld [vmem:[%s12] sm:$0x1f]
        %v2654 = vld [vmem:[%s17] sm:$0xff]
        %v2655 = vld [vmem:[%s17 + $0x8] sm:$0xff]
        %v2656 = vld [vmem:[%s17 + $0x10] sm:$0xf]
        %v2657 = vld [vmem:[%s17 + $0x18] sm:$0xff]
        %v2658 = vld [vmem:[%s17 + $0x20] sm:$0xff]
        %v2659 = vld [vmem:[%s17 + $0x28] sm:$0xf]
        %v2660 = vld [vmem:[%s17 + $0x30] sm:$0xff]
        %v2661 = vld [vmem:[%s17 + $0x38] sm:$0xff]
        %v2662 = vld [vmem:[%s17 + $0x40] sm:$0xf]
        %v2663 = vld [vmem:[%s18] sm:$0xff]
        %v2664 = vld [vmem:[%s18 + $0x8] sm:$0xff]
        %v2665 = vld [vmem:[%s18 + $0x10] sm:$0xf]
        %2666 = vmatpush.msra.mxu0 %v2523
        %2667 = vmatpush.msra.mxu0 %v2522
        %2668 = vmatpush.msra.mxu0 %v2521
        %2669 = vmatpush.msra.mxu0 %v2520
        %2670 = vmatpush.msra.mxu0 %v2519
        %2671 = vmatpush.msra.mxu0 %v2518
        %2672 = vmatpush.msra.mxu0 %v2517
        %2673 = vmatpush.msra.mxu0 %v2516
        %2674 = vmatpush.msra.mxu0 %v2515
        %2675 = vmatpush.msra.mxu0 %v2514
        %2676 = vmatpush.msra.mxu0 %v2513
        %2677 = vmatpush.msra.mxu0 %v2512
        %2678 = vmatpush.msra.mxu0 %v2511
        %2679 = vmatpush.msra.mxu0 %v2510
        %2680 = vmatpush.msra.mxu0 %v2509
        %2681 = vmatpush.msra.mxu0 %v2508
        %2682 = vmatmul.f32.gmra.mxu0 %v2506
        %v2683 = vpop.f32.mrf.mxu0
        %v2684 = vadd.f32 0.0, %v2683
        %2685 = vmatmul.f32.gmra.mxu0 %v2507
        %v2686 = vpop.f32.mrf.mxu0
        %v2687 = vadd.f32 0.0, %v2686
        %2688 = vdwg.mxu0
        %2689 = vmatpush.msra.mxu0 %v2539
        %2690 = vmatpush.msra.mxu0 %v2538
        %2691 = vmatpush.msra.mxu0 %v2537
        %2692 = vmatpush.msra.mxu0 %v2536
        %2693 = vmatpush.msra.mxu0 %v2535
        %2694 = vmatpush.msra.mxu0 %v2534
        %2695 = vmatpush.msra.mxu0 %v2533
        %2696 = vmatpush.msra.mxu0 %v2532
        %2697 = vmatpush.msra.mxu0 %v2531
        %2698 = vmatpush.msra.mxu0 %v2530
        %2699 = vmatpush.msra.mxu0 %v2529
        %2700 = vmatpush.msra.mxu0 %v2528
        %2701 = vmatpush.msra.mxu0 %v2527
        %2702 = vmatpush.msra.mxu0 %v2526
        %2703 = vmatpush.msra.mxu0 %v2525
        %2704 = vmatpush.msra.mxu0 %v2524
        %2705 = vmatmul.f32.gmra.mxu0 %v2506
        %v2706 = vpop.f32.mrf.mxu0
        %v2707 = vadd.f32 0.0, %v2706
        %2708 = vmatmul.f32.gmra.mxu0 %v2507
        %v2709 = vpop.f32.mrf.mxu0
        %v2710 = vadd.f32 0.0, %v2709
        %2711 = vdwg.mxu0
        %v2713 = vsel %vm2099, %v2657, 0
        %v2716 = vsel %vm2099, %v2658, 0
        %v2719 = vsel %vm2099, %v2659, 0
        %v2722 = vsel %vm2129, %v2710, 0
        %2724 = vmatpush.msra.mxu0 0.0
        %2725 = vmatpush.msra.mxu0 0.0
        %2726 = vmatpush.msra.mxu0 0.0
        %2727 = vmatpush.msra.mxu0 0.0
        %2728 = vmatpush.msra.mxu0 0.0
        %2729 = vmatpush.msra.mxu0 0.0
        %2730 = vmatpush.msra.mxu0 0.0
        %2731 = vmatpush.msra.mxu0 0.0
        %2732 = vmatpush.msra.mxu0 0.0
        %2733 = vmatpush.msra.mxu0 0.0
        %2734 = vmatpush.msra.mxu0 0.0
        %2735 = vmatpush.msra.mxu0 0.0
        %2736 = vmatpush.msra.mxu0 0.0
        %2737 = vmatpush.msra.mxu0 0.0
        %2738 = vmatpush.msra.mxu0 %v2722
        %2739 = vmatpush.msra.mxu0 %v2707
        %2740 = vmatmul.f32.gmra.mxu0 %v2713
        %v2741 = vpop.f32.mrf.mxu0
        %v2742 = vadd.f32 0.0, %v2741
        %2743 = vmatmul.f32.gmra.mxu0 %v2716
        %v2744 = vpop.f32.mrf.mxu0
        %v2745 = vadd.f32 0.0, %v2744
        %2746 = vmatmul.f32.gmra.mxu0 %v2719
        %v2747 = vpop.f32.mrf.mxu0
        %v2748 = vadd.f32 0.0, %v2747
        %2749 = vdwg.mxu0
        %v2751 = vsel %vm2099, %v2654, 0
        %v2754 = vsel %vm2099, %v2655, 0
        %v2757 = vsel %vm2099, %v2656, 0
        %v2760 = vsel %vm2129, %v2687, 0
        %2762 = vmatpush.msra.mxu0 0.0
        %2763 = vmatpush.msra.mxu0 0.0
        %2764 = vmatpush.msra.mxu0 0.0
        %2765 = vmatpush.msra.mxu0 0.0
        %2766 = vmatpush.msra.mxu0 0.0
        %2767 = vmatpush.msra.mxu0 0.0
        %2768 = vmatpush.msra.mxu0 0.0
        %2769 = vmatpush.msra.mxu0 0.0
        %2770 = vmatpush.msra.mxu0 0.0
        %2771 = vmatpush.msra.mxu0 0.0
        %2772 = vmatpush.msra.mxu0 0.0
        %2773 = vmatpush.msra.mxu0 0.0
        %2774 = vmatpush.msra.mxu0 0.0
        %2775 = vmatpush.msra.mxu0 0.0
        %2776 = vmatpush.msra.mxu0 %v2760
        %2777 = vmatpush.msra.mxu0 %v2684
        %2778 = vmatmul.f32.gmra.mxu0 %v2751
        %v2779 = vpop.f32.mrf.mxu0
        %v2780 = vadd.f32 %v2742, %v2779
        %2781 = vmatmul.f32.gmra.mxu0 %v2754
        %v2782 = vpop.f32.mrf.mxu0
        %v2783 = vadd.f32 %v2745, %v2782
        %2784 = vmatmul.f32.gmra.mxu0 %v2757
        %v2785 = vpop.f32.mrf.mxu0
        %v2786 = vadd.f32 %v2748, %v2785
        %2787 = vdwg.mxu0
        %2788 = vmatpush.msra.mxu0 %v2555
        %2789 = vmatpush.msra.mxu0 %v2554
        %2790 = vmatpush.msra.mxu0 %v2553
        %2791 = vmatpush.msra.mxu0 %v2552
        %2792 = vmatpush.msra.mxu0 %v2551
        %2793 = vmatpush.msra.mxu0 %v2550
        %2794 = vmatpush.msra.mxu0 %v2549
        %2795 = vmatpush.msra.mxu0 %v2548
        %2796 = vmatpush.msra.mxu0 %v2547
        %2797 = vmatpush.msra.mxu0 %v2546
        %2798 = vmatpush.msra.mxu0 %v2545
        %2799 = vmatpush.msra.mxu0 %v2544
        %2800 = vmatpush.msra.mxu0 %v2543
        %2801 = vmatpush.msra.mxu0 %v2542
        %2802 = vmatpush.msra.mxu0 %v2541
        %2803 = vmatpush.msra.mxu0 %v2540
        %2804 = vmatmul.f32.gmra.mxu0 %v2506
        %v2805 = vpop.f32.mrf.mxu0
        %v2806 = vadd.f32 0.0, %v2805
        %2807 = vmatmul.f32.gmra.mxu0 %v2507
        %v2808 = vpop.f32.mrf.mxu0
        %v2809 = vadd.f32 0.0, %v2808
        %2810 = vdwg.mxu0
        %v2812 = vsel %vm2099, %v2660, 0
        %v2815 = vsel %vm2099, %v2661, 0
        %v2818 = vsel %vm2099, %v2662, 0
        %v2821 = vsel %vm2129, %v2809, 0
        %2823 = vmatpush.msra.mxu0 0.0
        %2824 = vmatpush.msra.mxu0 0.0
        %2825 = vmatpush.msra.mxu0 0.0
        %2826 = vmatpush.msra.mxu0 0.0
        %2827 = vmatpush.msra.mxu0 0.0
        %2828 = vmatpush.msra.mxu0 0.0
        %2829 = vmatpush.msra.mxu0 0.0
        %2830 = vmatpush.msra.mxu0 0.0
        %2831 = vmatpush.msra.mxu0 0.0
        %2832 = vmatpush.msra.mxu0 0.0
        %2833 = vmatpush.msra.mxu0 0.0
        %2834 = vmatpush.msra.mxu0 0.0
        %2835 = vmatpush.msra.mxu0 0.0
        %2836 = vmatpush.msra.mxu0 0.0
        %2837 = vmatpush.msra.mxu0 %v2821
        %2838 = vmatpush.msra.mxu0 %v2806
        %2839 = vmatmul.f32.gmra.mxu0 %v2812
        %v2840 = vpop.f32.mrf.mxu0
        %v2841 = vadd.f32 0.0, %v2840
        %2842 = vmatmul.f32.gmra.mxu0 %v2815
        %v2843 = vpop.f32.mrf.mxu0
        %v2844 = vadd.f32 0.0, %v2843
        %2845 = vmatmul.f32.gmra.mxu0 %v2818
        %v2846 = vpop.f32.mrf.mxu0
        %v2847 = vadd.f32 0.0, %v2846
        %2848 = vdwg.mxu0
        %v2849 = vadd.f32 %v2780, %v2841
        %v2850 = vadd.f32 %v2783, %v2844
        %v2851 = vadd.f32 %v2786, %v2847
        %v2852 = vperm.slane %v2653, 0
        %v2853 = vadd.f32 %v2849, %v2852
        %v2854 = vadd.f32 %v2850, %v2852
        %v2855 = vadd.f32 %v2851, %v2852
        %v2856 = vmax.f32 %v2853, 0.0
        %v2857 = vmax.f32 %v2854, 0.0
        %v2858 = vmax.f32 %v2855, 0.0
        %v2860 = vperm.slane %v2652, 0
        %v2861 = vperm.slane %v2652, 1
        %v2862 = vperm.slane %v2652, 2
        %v2863 = vperm.slane %v2652, 3
        %v2864 = vperm.slane %v2652, 4
        %v2865 = vperm.slane %v2652, 5
        %2872 = vmatpush.msra.mxu0 %v2646
        %2873 = vmatpush.msra.mxu0 %v2640
        %2874 = vmatpush.msra.mxu0 %v2634
        %2875 = vmatpush.msra.mxu0 %v2628
        %2876 = vmatpush.msra.mxu0 %v2622
        %2877 = vmatpush.msra.mxu0 %v2616
        %2878 = vmatpush.msra.mxu0 %v2610
        %2879 = vmatpush.msra.mxu0 %v2604
        %2880 = vmatpush.msra.mxu0 %v2598
        %2881 = vmatpush.msra.mxu0 %v2592
        %2882 = vmatpush.msra.mxu0 %v2586
        %2883 = vmatpush.msra.mxu0 %v2580
        %2884 = vmatpush.msra.mxu0 %v2574
        %2885 = vmatpush.msra.mxu0 %v2568
        %2886 = vmatpush.msra.mxu0 %v2562
        %2887 = vmatpush.msra.mxu0 %v2556
        %2888 = vmatmul.f32.gmra.mxu0 %v2856
        %v2889 = vpop.f32.mrf.mxu0
        %v2890 = vadd.f32 %v2860, %v2889
        %2891 = vmatmul.f32.gmra.mxu0 %v2857
        %v2892 = vpop.f32.mrf.mxu0
        %v2893 = vadd.f32 %v2860, %v2892
        %2894 = vmatmul.f32.gmra.mxu0 %v2858
        %v2895 = vpop.f32.mrf.mxu0
        %v2896 = vadd.f32 %v2860, %v2895
        %2897 = vdwg.mxu0
        %2898 = vmatpush.msra.mxu0 %v2647
        %2899 = vmatpush.msra.mxu0 %v2641
        %2900 = vmatpush.msra.mxu0 %v2635
        %2901 = vmatpush.msra.mxu0 %v2629
        %2902 = vmatpush.msra.mxu0 %v2623
        %2903 = vmatpush.msra.mxu0 %v2617
        %2904 = vmatpush.msra.mxu0 %v2611
        %2905 = vmatpush.msra.mxu0 %v2605
        %2906 = vmatpush.msra.mxu0 %v2599
        %2907 = vmatpush.msra.mxu0 %v2593
        %2908 = vmatpush.msra.mxu0 %v2587
        %2909 = vmatpush.msra.mxu0 %v2581
        %2910 = vmatpush.msra.mxu0 %v2575
        %2911 = vmatpush.msra.mxu0 %v2569
        %2912 = vmatpush.msra.mxu0 %v2563
        %2913 = vmatpush.msra.mxu0 %v2557
        %2914 = vmatmul.f32.gmra.mxu0 %v2856
        %v2915 = vpop.f32.mrf.mxu0
        %v2916 = vadd.f32 %v2861, %v2915
        %2917 = vmatmul.f32.gmra.mxu0 %v2857
        %v2918 = vpop.f32.mrf.mxu0
        %v2919 = vadd.f32 %v2861, %v2918
        %2920 = vmatmul.f32.gmra.mxu0 %v2858
        %v2921 = vpop.f32.mrf.mxu0
        %v2922 = vadd.f32 %v2861, %v2921
        %2923 = vdwg.mxu0
        %2924 = vmatpush.msra.mxu0 %v2648
        %2925 = vmatpush.msra.mxu0 %v2642
        %2926 = vmatpush.msra.mxu0 %v2636
        %2927 = vmatpush.msra.mxu0 %v2630
        %2928 = vmatpush.msra.mxu0 %v2624
        %2929 = vmatpush.msra.mxu0 %v2618
        %2930 = vmatpush.msra.mxu0 %v2612
        %2931 = vmatpush.msra.mxu0 %v2606
        %2932 = vmatpush.msra.mxu0 %v2600
        %2933 = vmatpush.msra.mxu0 %v2594
        %2934 = vmatpush.msra.mxu0 %v2588
        %2935 = vmatpush.msra.mxu0 %v2582
        %2936 = vmatpush.msra.mxu0 %v2576
        %2937 = vmatpush.msra.mxu0 %v2570
        %2938 = vmatpush.msra.mxu0 %v2564
        %2939 = vmatpush.msra.mxu0 %v2558
        %2940 = vmatmul.f32.gmra.mxu0 %v2856
        %v2941 = vpop.f32.mrf.mxu0
        %v2942 = vadd.f32 %v2862, %v2941
        %2943 = vmatmul.f32.gmra.mxu0 %v2857
        %v2944 = vpop.f32.mrf.mxu0
        %v2945 = vadd.f32 %v2862, %v2944
        %2946 = vmatmul.f32.gmra.mxu0 %v2858
        %v2947 = vpop.f32.mrf.mxu0
        %v2948 = vadd.f32 %v2862, %v2947
        %2949 = vdwg.mxu0
        %2950 = vmatpush.msra.mxu0 %v2649
        %2951 = vmatpush.msra.mxu0 %v2643
        %2952 = vmatpush.msra.mxu0 %v2637
        %2953 = vmatpush.msra.mxu0 %v2631
        %2954 = vmatpush.msra.mxu0 %v2625
        %2955 = vmatpush.msra.mxu0 %v2619
        %2956 = vmatpush.msra.mxu0 %v2613
        %2957 = vmatpush.msra.mxu0 %v2607
        %2958 = vmatpush.msra.mxu0 %v2601
        %2959 = vmatpush.msra.mxu0 %v2595
        %2960 = vmatpush.msra.mxu0 %v2589
        %2961 = vmatpush.msra.mxu0 %v2583
        %2962 = vmatpush.msra.mxu0 %v2577
        %2963 = vmatpush.msra.mxu0 %v2571
        %2964 = vmatpush.msra.mxu0 %v2565
        %2965 = vmatpush.msra.mxu0 %v2559
        %2966 = vmatmul.f32.gmra.mxu0 %v2856
        %v2967 = vpop.f32.mrf.mxu0
        %v2968 = vadd.f32 %v2863, %v2967
        %2969 = vmatmul.f32.gmra.mxu0 %v2857
        %v2970 = vpop.f32.mrf.mxu0
        %v2971 = vadd.f32 %v2863, %v2970
        %2972 = vmatmul.f32.gmra.mxu0 %v2858
        %v2973 = vpop.f32.mrf.mxu0
        %v2974 = vadd.f32 %v2863, %v2973
        %2975 = vdwg.mxu0
        %2976 = vmatpush.msra.mxu0 %v2650
        %2977 = vmatpush.msra.mxu0 %v2644
        %2978 = vmatpush.msra.mxu0 %v2638
        %2979 = vmatpush.msra.mxu0 %v2632
        %2980 = vmatpush.msra.mxu0 %v2626
        %2981 = vmatpush.msra.mxu0 %v2620
        %2982 = vmatpush.msra.mxu0 %v2614
        %2983 = vmatpush.msra.mxu0 %v2608
        %2984 = vmatpush.msra.mxu0 %v2602
        %2985 = vmatpush.msra.mxu0 %v2596
        %2986 = vmatpush.msra.mxu0 %v2590
        %2987 = vmatpush.msra.mxu0 %v2584
        %2988 = vmatpush.msra.mxu0 %v2578
        %2989 = vmatpush.msra.mxu0 %v2572
        %2990 = vmatpush.msra.mxu0 %v2566
        %2991 = vmatpush.msra.mxu0 %v2560
        %2992 = vmatmul.f32.gmra.mxu0 %v2856
        %v2993 = vpop.f32.mrf.mxu0
        %v2994 = vadd.f32 %v2864, %v2993
        %2995 = vmatmul.f32.gmra.mxu0 %v2857
        %v2996 = vpop.f32.mrf.mxu0
        %v2997 = vadd.f32 %v2864, %v2996
        %2998 = vmatmul.f32.gmra.mxu0 %v2858
        %v2999 = vpop.f32.mrf.mxu0
        %v3000 = vadd.f32 %v2864, %v2999
        %3001 = vdwg.mxu0
        %3002 = vmatpush.msra.mxu0 %v2651
        %3003 = vmatpush.msra.mxu0 %v2645
        %3004 = vmatpush.msra.mxu0 %v2639
        %3005 = vmatpush.msra.mxu0 %v2633
        %3006 = vmatpush.msra.mxu0 %v2627
        %3007 = vmatpush.msra.mxu0 %v2621
        %3008 = vmatpush.msra.mxu0 %v2615
        %3009 = vmatpush.msra.mxu0 %v2609
        %3010 = vmatpush.msra.mxu0 %v2603
        %3011 = vmatpush.msra.mxu0 %v2597
        %3012 = vmatpush.msra.mxu0 %v2591
        %3013 = vmatpush.msra.mxu0 %v2585
        %3014 = vmatpush.msra.mxu0 %v2579
        %3015 = vmatpush.msra.mxu0 %v2573
        %3016 = vmatpush.msra.mxu0 %v2567
        %3017 = vmatpush.msra.mxu0 %v2561
        %3018 = vmatmul.f32.gmra.mxu0 %v2856
        %v3019 = vpop.f32.mrf.mxu0
        %v3020 = vadd.f32 %v2865, %v3019
        %3021 = vmatmul.f32.gmra.mxu0 %v2857
        %v3022 = vpop.f32.mrf.mxu0
        %v3023 = vadd.f32 %v2865, %v3022
        %3024 = vmatmul.f32.gmra.mxu0 %v2858
        %v3025 = vpop.f32.mrf.mxu0
        %v3026 = vadd.f32 %v2865, %v3025
        %3027 = vdwg.mxu0
        %v3028 = vperm.slane %v2653, 1
        %v3029 = vadd.f32 %v3028, 0.0
        %v3031 = vsel %vm864, %v2890, 0
        %v3034 = vsel %vm864, %v2893, 0
        %v3037 = vsel %vm864, %v2896, 0
        %v3040 = vsel %vm864, %v2916, 0
        %v3043 = vsel %vm864, %v2919, 0
        %v3046 = vsel %vm864, %v2922, 0
        %3048 = vmatpush.xpose.msra.mxu0 0.0
        %3049 = vmatpush.xpose.msra.mxu0 0.0
        %3050 = vmatpush.xpose.msra.mxu0 0.0
        %3051 = vmatpush.xpose.msra.mxu0 0.0
        %3052 = vmatpush.xpose.msra.mxu0 0.0
        %3053 = vmatpush.xpose.msra.mxu0 0.0
        %3054 = vmatpush.xpose.msra.mxu0 0.0
        %3055 = vmatpush.xpose.msra.mxu0 0.0
        %3056 = vmatpush.xpose.msra.mxu0 0.0
        %3057 = vmatpush.xpose.msra.mxu0 0.0
        %3058 = vmatpush.xpose.msra.mxu0 0.0
        %3059 = vmatpush.xpose.msra.mxu0 0.0
        %3060 = vmatpush.xpose.msra.mxu0 0.0
        %3061 = vmatpush.xpose.msra.mxu0 %v3046
        %3062 = vmatpush.xpose.msra.mxu0 %v3043
        %3063 = vmatpush.xpose.msra.mxu0 %v3040
        %3064 = vmatmul.f32.gmra.mxu0 %v3031
        %v3065 = vpop.f32.mrf.mxu0
        %v3066 = vadd.f32 0.0, %v3065
        %3067 = vmatmul.f32.gmra.mxu0 %v3034
        %v3068 = vpop.f32.mrf.mxu0
        %v3069 = vadd.f32 0.0, %v3068
        %3070 = vmatmul.f32.gmra.mxu0 %v3037
        %v3071 = vpop.f32.mrf.mxu0
        %v3072 = vadd.f32 0.0, %v3071
        %3073 = vdwg.mxu0
        %v3074 = vmul.f32 %v3066, 0.35355338
        %v3075 = vmul.f32 %v3069, 0.35355338
        %v3076 = vmul.f32 %v3072, 0.35355338
        %v3077 = vadd.f32 %v3074, %v2663
        %v3078 = vadd.f32 %v3075, %v2664
        %v3079 = vadd.f32 %v3076, %v2665
        %vm3080 = vcmask 162816
        %v3081 = vsel %vm3080, %v3077, -inf
        %3082 = vmax.xlane.f32.xlu0 %v3081
        %v3083 = vpop.xlane.xlu0 %3082
        %v3084 = vsel %vm3080, %v3078, -inf
        %3085 = vmax.xlane.f32.xlu0 %v3084
        %v3086 = vpop.xlane.xlu0 %3085
        %vm3087 = vcmask 158720
        %v3088 = vsel %vm3087, %v3079, -inf
        %3089 = vmax.xlane.f32.xlu0 %v3088
        %v3090 = vpop.xlane.xlu0 %3089
        %v3091 = vsub.f32 %v3077, %v3083
        %v3092 = vsub.f32 %v3078, %v3086
        %v3093 = vsub.f32 %v3079, %v3090
        %v3094 = vmul.f32 %v3091, 1.442695
        %v3095 = vpow.pop %v3094
        %v3096 = vmul.f32 %v3092, 1.442695
        %v3097 = vpow.pop %v3096
        %v3098 = vmul.f32 %v3093, 1.442695
        %v3099 = vpow.pop %v3098
        %v3100 = vsel %vm3080, %v3095, 0.0
        %3101 = vadd.xlane.f32.xlu0 %v3100
        %v3102 = vpop.xlane.xlu0 %3101
        %v3103 = vsel %vm3080, %v3097, 0.0
        %3104 = vadd.xlane.f32.xlu0 %v3103
        %v3105 = vpop.xlane.xlu0 %3104
        %v3106 = vsel %vm3087, %v3099, 0.0
        %3107 = vadd.xlane.f32.xlu0 %v3106
        %v3108 = vpop.xlane.xlu0 %3107
        %v3109 = vrcp.pop %v3102
        %v3110 = vrcp.pop %v3105
        %v3111 = vrcp.pop %v3108
        %v3112 = vmul.f32 %v3095, %v3109
        %v3113 = vmul.f32 %v3097, %v3110
        %v3114 = vmul.f32 %v3099, %v3111
        %v3116 = vsel %vm3080, %v3112, 0
        %v3119 = vsel %vm3080, %v3113, 0
        %v3122 = vsel %vm3080, %v3114, 0
        %v3125 = vsel %vm2129, %v2948, 0
        %3127 = vmatpush.msra.mxu0 0.0
        %3128 = vmatpush.msra.mxu0 0.0
        %3129 = vmatpush.msra.mxu0 0.0
        %3130 = vmatpush.msra.mxu0 0.0
        %3131 = vmatpush.msra.mxu0 0.0
        %3132 = vmatpush.msra.mxu0 0.0
        %3133 = vmatpush.msra.mxu0 0.0
        %3134 = vmatpush.msra.mxu0 0.0
        %3135 = vmatpush.msra.mxu0 0.0
        %3136 = vmatpush.msra.mxu0 0.0
        %3137 = vmatpush.msra.mxu0 0.0
        %3138 = vmatpush.msra.mxu0 0.0
        %3139 = vmatpush.msra.mxu0 0.0
        %3140 = vmatpush.msra.mxu0 %v3125
        %3141 = vmatpush.msra.mxu0 %v2945
        %3142 = vmatpush.msra.mxu0 %v2942
        %3143 = vmatmul.f32.gmra.mxu0 %v3116
        %v3144 = vpop.f32.mrf.mxu0
        %v3145 = vadd.f32 0.0, %v3144
        %3146 = vmatmul.f32.gmra.mxu0 %v3119
        %v3147 = vpop.f32.mrf.mxu0
        %v3148 = vadd.f32 0.0, %v3147
        %3149 = vmatmul.f32.gmra.mxu0 %v3122
        %v3150 = vpop.f32.mrf.mxu0
        %v3151 = vadd.f32 0.0, %v3150
        %3152 = vdwg.mxu0
        %v3153 = vadd.f32 %v3029, %v3145
        %v3154 = vadd.f32 %v3029, %v3148
        %v3155 = vadd.f32 %v3029, %v3151
        %3156 = vrot.lane.b32.xlu0 %v2890, 120
        %v3157 = vpop.permute.xlu0 %3156
        %3158 = vrot.lane.b32.xlu0 %v2893, 120
        %v3159 = vpop.permute.xlu0 %3158
        %3160 = vrot.lane.b32.xlu0 %v2896, 120
        %v3161 = vpop.permute.xlu0 %3160
        %3162 = vrot.lane.b32.xlu0 %v2916, 120
        %v3163 = vpop.permute.xlu0 %3162
        %3164 = vrot.lane.b32.xlu0 %v2919, 120
        %v3165 = vpop.permute.xlu0 %3164
        %3166 = vrot.lane.b32.xlu0 %v2922, 120
        %v3167 = vpop.permute.xlu0 %3166
        %v3168 = vsel %vm864, %v3157, 0
        %v3170 = vsel %vm864, %v3159, 0
        %v3172 = vsel %vm864, %v3161, 0
        %v3174 = vsel %vm864, %v3163, 0
        %v3176 = vsel %vm864, %v3165, 0
        %v3178 = vsel %vm864, %v3167, 0
        %3180 = vmatpush.xpose.msra.mxu0 0.0
        %3181 = vmatpush.xpose.msra.mxu0 0.0
        %3182 = vmatpush.xpose.msra.mxu0 0.0
        %3183 = vmatpush.xpose.msra.mxu0 0.0
        %3184 = vmatpush.xpose.msra.mxu0 0.0
        %3185 = vmatpush.xpose.msra.mxu0 0.0
        %3186 = vmatpush.xpose.msra.mxu0 0.0
        %3187 = vmatpush.xpose.msra.mxu0 0.0
        %3188 = vmatpush.xpose.msra.mxu0 0.0
        %3189 = vmatpush.xpose.msra.mxu0 0.0
        %3190 = vmatpush.xpose.msra.mxu0 0.0
        %3191 = vmatpush.xpose.msra.mxu0 0.0
        %3192 = vmatpush.xpose.msra.mxu0 0.0
        %3193 = vmatpush.xpose.msra.mxu0 %v3178
        %3194 = vmatpush.xpose.msra.mxu0 %v3176
        %3195 = vmatpush.xpose.msra.mxu0 %v3174
        %3196 = vmatmul.f32.gmra.mxu0 %v3168
        %v3197 = vpop.f32.mrf.mxu0
        %v3198 = vadd.f32 0.0, %v3197
        %3199 = vmatmul.f32.gmra.mxu0 %v3170
        %v3200 = vpop.f32.mrf.mxu0
        %v3201 = vadd.f32 0.0, %v3200
        %3202 = vmatmul.f32.gmra.mxu0 %v3172
        %v3203 = vpop.f32.mrf.mxu0
        %v3204 = vadd.f32 0.0, %v3203
        %3205 = vdwg.mxu0
        %v3206 = vmul.f32 %v3198, 0.35355338
        %v3207 = vmul.f32 %v3201, 0.35355338
        %v3208 = vmul.f32 %v3204, 0.35355338
        %v3209 = vadd.f32 %v3206, %v2663
        %v3210 = vadd.f32 %v3207, %v2664
        %v3211 = vadd.f32 %v3208, %v2665
        %v3212 = vsel %vm3080, %v3209, -inf
        %3213 = vmax.xlane.f32.xlu0 %v3212
        %v3214 = vpop.xlane.xlu0 %3213
        %v3215 = vsel %vm3080, %v3210, -inf
        %3216 = vmax.xlane.f32.xlu0 %v3215
        %v3217 = vpop.xlane.xlu0 %3216
        %v3218 = vsel %vm3087, %v3211, -inf
        %3219 = vmax.xlane.f32.xlu0 %v3218
        %v3220 = vpop.xlane.xlu0 %3219
        %v3221 = vsub.f32 %v3209, %v3214
        %v3222 = vsub.f32 %v3210, %v3217
        %v3223 = vsub.f32 %v3211, %v3220
        %v3224 = vmul.f32 %v3221, 1.442695
        %v3225 = vpow.pop %v3224
        %v3226 = vmul.f32 %v3222, 1.442695
        %v3227 = vpow.pop %v3226
        %v3228 = vmul.f32 %v3223, 1.442695
        %v3229 = vpow.pop %v3228
        %v3230 = vsel %vm3080, %v3225, 0.0
        %3231 = vadd.xlane.f32.xlu0 %v3230
        %v3232 = vpop.xlane.xlu0 %3231
        %v3233 = vsel %vm3080, %v3227, 0.0
        %3234 = vadd.xlane.f32.xlu0 %v3233
        %v3235 = vpop.xlane.xlu0 %3234
        %v3236 = vsel %vm3087, %v3229, 0.0
        %3237 = vadd.xlane.f32.xlu0 %v3236
        %v3238 = vpop.xlane.xlu0 %3237
        %v3239 = vrcp.pop %v3232
        %v3240 = vrcp.pop %v3235
        %v3241 = vrcp.pop %v3238
        %v3242 = vmul.f32 %v3225, %v3239
        %v3243 = vmul.f32 %v3227, %v3240
        %v3244 = vmul.f32 %v3229, %v3241
        %v3246 = vsel %vm3080, %v3242, 0
        %v3249 = vsel %vm3080, %v3243, 0
        %v3252 = vsel %vm3080, %v3244, 0
        %v3255 = vsel %vm2129, %v2974, 0
        %3257 = vmatpush.msra.mxu0 0.0
        %3258 = vmatpush.msra.mxu0 0.0
        %3259 = vmatpush.msra.mxu0 0.0
        %3260 = vmatpush.msra.mxu0 0.0
        %3261 = vmatpush.msra.mxu0 0.0
        %3262 = vmatpush.msra.mxu0 0.0
        %3263 = vmatpush.msra.mxu0 0.0
        %3264 = vmatpush.msra.mxu0 0.0
        %3265 = vmatpush.msra.mxu0 0.0
        %3266 = vmatpush.msra.mxu0 0.0
        %3267 = vmatpush.msra.mxu0 0.0
        %3268 = vmatpush.msra.mxu0 0.0
        %3269 = vmatpush.msra.mxu0 0.0
        %3270 = vmatpush.msra.mxu0 %v3255
        %3271 = vmatpush.msra.mxu0 %v2971
        %3272 = vmatpush.msra.mxu0 %v2968
        %3273 = vmatmul.f32.gmra.mxu0 %v3246
        %v3274 = vpop.f32.mrf.mxu0
        %v3275 = vadd.f32 0.0, %v3274
        %3276 = vmatmul.f32.gmra.mxu0 %v3249
        %v3277 = vpop.f32.mrf.mxu0
        %v3278 = vadd.f32 0.0, %v3277
        %3279 = vmatmul.f32.gmra.mxu0 %v3252
        %v3280 = vpop.f32.mrf.mxu0
        %v3281 = vadd.f32 0.0, %v3280
        %3282 = vdwg.mxu0
        %v3283 = vadd.f32 %v3153, %v3275
        %v3284 = vadd.f32 %v3154, %v3278
        %v3285 = vadd.f32 %v3155, %v3281
        %3286 = vrot.lane.b32.xlu0 %v2890, 112
        %v3287 = vpop.permute.xlu0 %3286
        %3288 = vrot.lane.b32.xlu0 %v2893, 112
        %v3289 = vpop.permute.xlu0 %3288
        %3290 = vrot.lane.b32.xlu0 %v2896, 112
        %v3291 = vpop.permute.xlu0 %3290
        %3292 = vrot.lane.b32.xlu0 %v2916, 112
        %v3293 = vpop.permute.xlu0 %3292
        %3294 = vrot.lane.b32.xlu0 %v2919, 112
        %v3295 = vpop.permute.xlu0 %3294
        %3296 = vrot.lane.b32.xlu0 %v2922, 112
        %v3297 = vpop.permute.xlu0 %3296
        %v3298 = vsel %vm864, %v3287, 0
        %v3300 = vsel %vm864, %v3289, 0
        %v3302 = vsel %vm864, %v3291, 0
        %v3304 = vsel %vm864, %v3293, 0
        %v3306 = vsel %vm864, %v3295, 0
        %v3308 = vsel %vm864, %v3297, 0
        %3310 = vmatpush.xpose.msra.mxu0 0.0
        %3311 = vmatpush.xpose.msra.mxu0 0.0
        %3312 = vmatpush.xpose.msra.mxu0 0.0
        %3313 = vmatpush.xpose.msra.mxu0 0.0
        %3314 = vmatpush.xpose.msra.mxu0 0.0
        %3315 = vmatpush.xpose.msra.mxu0 0.0
        %3316 = vmatpush.xpose.msra.mxu0 0.0
        %3317 = vmatpush.xpose.msra.mxu0 0.0
        %3318 = vmatpush.xpose.msra.mxu0 0.0
        %3319 = vmatpush.xpose.msra.mxu0 0.0
        %3320 = vmatpush.xpose.msra.mxu0 0.0
        %3321 = vmatpush.xpose.msra.mxu0 0.0
        %3322 = vmatpush.xpose.msra.mxu0 0.0
        %3323 = vmatpush.xpose.msra.mxu0 %v3308
        %3324 = vmatpush.xpose.msra.mxu0 %v3306
        %3325 = vmatpush.xpose.msra.mxu0 %v3304
        %3326 = vmatmul.f32.gmra.mxu0 %v3298
        %v3327 = vpop.f32.mrf.mxu0
        %v3328 = vadd.f32 0.0, %v3327
        %3329 = vmatmul.f32.gmra.mxu0 %v3300
        %v3330 = vpop.f32.mrf.mxu0
        %v3331 = vadd.f32 0.0, %v3330
        %3332 = vmatmul.f32.gmra.mxu0 %v3302
        %v3333 = vpop.f32.mrf.mxu0
        %v3334 = vadd.f32 0.0, %v3333
        %3335 = vdwg.mxu0
        %v3336 = vmul.f32 %v3328, 0.35355338
        %v3337 = vmul.f32 %v3331, 0.35355338
        %v3338 = vmul.f32 %v3334, 0.35355338
        %v3339 = vadd.f32 %v3336, %v2663
        %v3340 = vadd.f32 %v3337, %v2664
        %v3341 = vadd.f32 %v3338, %v2665
        %v3342 = vsel %vm3080, %v3339, -inf
        %3343 = vmax.xlane.f32.xlu0 %v3342
        %v3344 = vpop.xlane.xlu0 %3343
        %v3345 = vsel %vm3080, %v3340, -inf
        %3346 = vmax.xlane.f32.xlu0 %v3345
        %v3347 = vpop.xlane.xlu0 %3346
        %v3348 = vsel %vm3087, %v3341, -inf
        %3349 = vmax.xlane.f32.xlu0 %v3348
        %v3350 = vpop.xlane.xlu0 %3349
        %v3351 = vsub.f32 %v3339, %v3344
        %v3352 = vsub.f32 %v3340, %v3347
        %v3353 = vsub.f32 %v3341, %v3350
        %v3354 = vmul.f32 %v3351, 1.442695
        %v3355 = vpow.pop %v3354
        %v3356 = vmul.f32 %v3352, 1.442695
        %v3357 = vpow.pop %v3356
        %v3358 = vmul.f32 %v3353, 1.442695
        %v3359 = vpow.pop %v3358
        %v3360 = vsel %vm3080, %v3355, 0.0
        %3361 = vadd.xlane.f32.xlu0 %v3360
        %v3362 = vpop.xlane.xlu0 %3361
        %v3363 = vsel %vm3080, %v3357, 0.0
        %3364 = vadd.xlane.f32.xlu0 %v3363
        %v3365 = vpop.xlane.xlu0 %3364
        %v3366 = vsel %vm3087, %v3359, 0.0
        %3367 = vadd.xlane.f32.xlu0 %v3366
        %v3368 = vpop.xlane.xlu0 %3367
        %v3369 = vrcp.pop %v3362
        %v3370 = vrcp.pop %v3365
        %v3371 = vrcp.pop %v3368
        %v3372 = vmul.f32 %v3355, %v3369
        %v3373 = vmul.f32 %v3357, %v3370
        %v3374 = vmul.f32 %v3359, %v3371
        %v3376 = vsel %vm3080, %v3372, 0
        %v3379 = vsel %vm3080, %v3373, 0
        %v3382 = vsel %vm3080, %v3374, 0
        %v3385 = vsel %vm2129, %v3000, 0
        %3387 = vmatpush.msra.mxu0 0.0
        %3388 = vmatpush.msra.mxu0 0.0
        %3389 = vmatpush.msra.mxu0 0.0
        %3390 = vmatpush.msra.mxu0 0.0
        %3391 = vmatpush.msra.mxu0 0.0
        %3392 = vmatpush.msra.mxu0 0.0
        %3393 = vmatpush.msra.mxu0 0.0
        %3394 = vmatpush.msra.mxu0 0.0
        %3395 = vmatpush.msra.mxu0 0.0
        %3396 = vmatpush.msra.mxu0 0.0
        %3397 = vmatpush.msra.mxu0 0.0
        %3398 = vmatpush.msra.mxu0 0.0
        %3399 = vmatpush.msra.mxu0 0.0
        %3400 = vmatpush.msra.mxu0 %v3385
        %3401 = vmatpush.msra.mxu0 %v2997
        %3402 = vmatpush.msra.mxu0 %v2994
        %3403 = vmatmul.f32.gmra.mxu0 %v3376
        %v3404 = vpop.f32.mrf.mxu0
        %v3405 = vadd.f32 0.0, %v3404
        %3406 = vmatmul.f32.gmra.mxu0 %v3379
        %v3407 = vpop.f32.mrf.mxu0
        %v3408 = vadd.f32 0.0, %v3407
        %3409 = vmatmul.f32.gmra.mxu0 %v3382
        %v3410 = vpop.f32.mrf.mxu0
        %v3411 = vadd.f32 0.0, %v3410
        %3412 = vdwg.mxu0
        %v3413 = vadd.f32 %v3283, %v3405
        %v3414 = vadd.f32 %v3284, %v3408
        %v3415 = vadd.f32 %v3285, %v3411
        %3416 = vrot.lane.b32.xlu0 %v2890, 104
        %v3417 = vpop.permute.xlu0 %3416
        %3418 = vrot.lane.b32.xlu0 %v2893, 104
        %v3419 = vpop.permute.xlu0 %3418
        %3420 = vrot.lane.b32.xlu0 %v2896, 104
        %v3421 = vpop.permute.xlu0 %3420
        %3422 = vrot.lane.b32.xlu0 %v2916, 104
        %v3423 = vpop.permute.xlu0 %3422
        %3424 = vrot.lane.b32.xlu0 %v2919, 104
        %v3425 = vpop.permute.xlu0 %3424
        %3426 = vrot.lane.b32.xlu0 %v2922, 104
        %v3427 = vpop.permute.xlu0 %3426
        %v3428 = vsel %vm864, %v3417, 0
        %v3430 = vsel %vm864, %v3419, 0
        %v3432 = vsel %vm864, %v3421, 0
        %v3434 = vsel %vm864, %v3423, 0
        %v3436 = vsel %vm864, %v3425, 0
        %v3438 = vsel %vm864, %v3427, 0
        %3440 = vmatpush.xpose.msra.mxu0 0.0
        %3441 = vmatpush.xpose.msra.mxu0 0.0
        %3442 = vmatpush.xpose.msra.mxu0 0.0
        %3443 = vmatpush.xpose.msra.mxu0 0.0
        %3444 = vmatpush.xpose.msra.mxu0 0.0
        %3445 = vmatpush.xpose.msra.mxu0 0.0
        %3446 = vmatpush.xpose.msra.mxu0 0.0
        %3447 = vmatpush.xpose.msra.mxu0 0.0
        %3448 = vmatpush.xpose.msra.mxu0 0.0
        %3449 = vmatpush.xpose.msra.mxu0 0.0
        %3450 = vmatpush.xpose.msra.mxu0 0.0
        %3451 = vmatpush.xpose.msra.mxu0 0.0
        %3452 = vmatpush.xpose.msra.mxu0 0.0
        %3453 = vmatpush.xpose.msra.mxu0 %v3438
        %3454 = vmatpush.xpose.msra.mxu0 %v3436
        %3455 = vmatpush.xpose.msra.mxu0 %v3434
        %3456 = vmatmul.f32.gmra.mxu0 %v3428
        %v3457 = vpop.f32.mrf.mxu0
        %v3458 = vadd.f32 0.0, %v3457
        %3459 = vmatmul.f32.gmra.mxu0 %v3430
        %v3460 = vpop.f32.mrf.mxu0
        %v3461 = vadd.f32 0.0, %v3460
        %3462 = vmatmul.f32.gmra.mxu0 %v3432
        %v3463 = vpop.f32.mrf.mxu0
        %v3464 = vadd.f32 0.0, %v3463
        %3465 = vdwg.mxu0
        %v3466 = vmul.f32 %v3458, 0.35355338
        %v3467 = vmul.f32 %v3461, 0.35355338
        %v3468 = vmul.f32 %v3464, 0.35355338
        %v3469 = vadd.f32 %v3466, %v2663
        %v3470 = vadd.f32 %v3467, %v2664
        %v3471 = vadd.f32 %v3468, %v2665
        %v3472 = vsel %vm3080, %v3469, -inf
        %3473 = vmax.xlane.f32.xlu0 %v3472
        %v3474 = vpop.xlane.xlu0 %3473
        %v3475 = vsel %vm3080, %v3470, -inf
        %3476 = vmax.xlane.f32.xlu0 %v3475
        %v3477 = vpop.xlane.xlu0 %3476
        %v3478 = vsel %vm3087, %v3471, -inf
        %3479 = vmax.xlane.f32.xlu0 %v3478
        %v3480 = vpop.xlane.xlu0 %3479
        %v3481 = vsub.f32 %v3469, %v3474
        %v3482 = vsub.f32 %v3470, %v3477
        %v3483 = vsub.f32 %v3471, %v3480
        %v3484 = vmul.f32 %v3481, 1.442695
        %v3485 = vpow.pop %v3484
        %v3486 = vmul.f32 %v3482, 1.442695
        %v3487 = vpow.pop %v3486
        %v3488 = vmul.f32 %v3483, 1.442695
        %v3489 = vpow.pop %v3488
        %v3490 = vsel %vm3080, %v3485, 0.0
        %3491 = vadd.xlane.f32.xlu0 %v3490
        %v3492 = vpop.xlane.xlu0 %3491
        %v3493 = vsel %vm3080, %v3487, 0.0
        %3494 = vadd.xlane.f32.xlu0 %v3493
        %v3495 = vpop.xlane.xlu0 %3494
        %v3496 = vsel %vm3087, %v3489, 0.0
        %3497 = vadd.xlane.f32.xlu0 %v3496
        %v3498 = vpop.xlane.xlu0 %3497
        %v3499 = vrcp.pop %v3492
        %v3500 = vrcp.pop %v3495
        %v3501 = vrcp.pop %v3498
        %v3502 = vmul.f32 %v3485, %v3499
        %v3503 = vmul.f32 %v3487, %v3500
        %v3504 = vmul.f32 %v3489, %v3501
        %v3506 = vsel %vm3080, %v3502, 0
        %v3509 = vsel %vm3080, %v3503, 0
        %v3512 = vsel %vm3080, %v3504, 0
        %v3515 = vsel %vm2129, %v3026, 0
        %3517 = vmatpush.msra.mxu0 0.0
        %3518 = vmatpush.msra.mxu0 0.0
        %3519 = vmatpush.msra.mxu0 0.0
        %3520 = vmatpush.msra.mxu0 0.0
        %3521 = vmatpush.msra.mxu0 0.0
        %3522 = vmatpush.msra.mxu0 0.0
        %3523 = vmatpush.msra.mxu0 0.0
        %3524 = vmatpush.msra.mxu0 0.0
        %3525 = vmatpush.msra.mxu0 0.0
        %3526 = vmatpush.msra.mxu0 0.0
        %3527 = vmatpush.msra.mxu0 0.0
        %3528 = vmatpush.msra.mxu0 0.0
        %3529 = vmatpush.msra.mxu0 0.0
        %3530 = vmatpush.msra.mxu0 %v3515
        %3531 = vmatpush.msra.mxu0 %v3023
        %3532 = vmatpush.msra.mxu0 %v3020
        %3533 = vmatmul.f32.gmra.mxu0 %v3506
        %v3534 = vpop.f32.mrf.mxu0
        %v3535 = vadd.f32 0.0, %v3534
        %3536 = vmatmul.f32.gmra.mxu0 %v3509
        %v3537 = vpop.f32.mrf.mxu0
        %v3538 = vadd.f32 0.0, %v3537
        %3539 = vmatmul.f32.gmra.mxu0 %v3512
        %v3540 = vpop.f32.mrf.mxu0
        %v3541 = vadd.f32 0.0, %v3540
        %3542 = vdwg.mxu0
        %v3543 = vadd.f32 %v3413, %v3535
        %v3544 = vadd.f32 %v3414, %v3538
        %v3545 = vadd.f32 %v3415, %v3541
        %v3546 = vadd.f32 %v2856, %v3543
        %v3547 = vadd.f32 %v2857, %v3544
        %v3548 = vadd.f32 %v2858, %v3545
        %3549 = vadd.xlane.f32.xlu0 %v3546
        %v3550 = vpop.xlane.xlu0 %3549
        %3551 = vadd.xlane.f32.xlu0 %v3547
        %v3552 = vpop.xlane.xlu0 %3551
        %v3553 = vsel %vm2129, %v3548, 0.0
        %3554 = vadd.xlane.f32.xlu0 %v3553
        %v3555 = vpop.xlane.xlu0 %3554
        %v3556 = vmul.f32 %v3550, 0.03125
        %v3557 = vmul.f32 %v3552, 0.03125
        %v3558 = vmul.f32 %v3555, 0.03125
        %v3559 = vsub.f32 %v3546, %v3556
        %v3560 = vsub.f32 %v3547, %v3557
        %v3561 = vsub.f32 %v3548, %v3558
        %v3562 = vperm.slane %v2653, 4
        %v3563 = vmul.f32 %v3559, %v3562
        %v3564 = vmul.f32 %v3560, %v3562
        %v3565 = vmul.f32 %v3561, %v3562
        %v3566 = vmul.f32 %v3563, %v3563
        %v3567 = vmul.f32 %v3564, %v3564
        %v3568 = vmul.f32 %v3565, %v3565
        %3569 = vadd.xlane.f32.xlu0 %v3566
        %v3570 = vpop.xlane.xlu0 %3569
        %3571 = vadd.xlane.f32.xlu0 %v3567
        %v3572 = vpop.xlane.xlu0 %3571
        %v3573 = vsel %vm2129, %v3568, 0.0
        %3574 = vadd.xlane.f32.xlu0 %v3573
        %v3575 = vpop.xlane.xlu0 %3574
        %v3576 = vmul.f32 %v3570, 0.03125
        %v3577 = vmul.f32 %v3572, 0.03125
        %v3578 = vmul.f32 %v3575, 0.03125
        %v3579 = vadd.f32 %v3576, 1e-05
        %v3580 = vadd.f32 %v3577, 1e-05
        %v3581 = vadd.f32 %v3578, 1e-05
        %v3582 = vrsqrt.pop %v3579
        %v3583 = vmul.f32 %v3582, %v3579
        %v3584 = vmul.f32 %v3583, %v3582
        %v3585 = vmul.f32 0.5, %v3584
        %v3586 = vsub.f32 1.5, %v3585
        %v3587 = vmul.f32 %v3582, %v3586
        %vm3588 = vweird.f32 %v3579
        %vm3589 = vweird.f32 %v3582
        %vm3590 = vmor %vm3588, %vm3589
        %v3591 = vsel %vm3590, %v3582, %v3587
        %v3592 = vrsqrt.pop %v3580
        %v3593 = vmul.f32 %v3592, %v3580
        %v3594 = vmul.f32 %v3593, %v3592
        %v3595 = vmul.f32 0.5, %v3594
        %v3596 = vsub.f32 1.5, %v3595
        %v3597 = vmul.f32 %v3592, %v3596
        %vm3598 = vweird.f32 %v3580
        %vm3599 = vweird.f32 %v3592
        %vm3600 = vmor %vm3598, %vm3599
        %v3601 = vsel %vm3600, %v3592, %v3597
        %v3602 = vrsqrt.pop %v3581
        %v3603 = vmul.f32 %v3602, %v3581
        %v3604 = vmul.f32 %v3603, %v3602
        %v3605 = vmul.f32 0.5, %v3604
        %v3606 = vsub.f32 1.5, %v3605
        %v3607 = vmul.f32 %v3602, %v3606
        %vm3608 = vweird.f32 %v3581
        %vm3609 = vweird.f32 %v3602
        %vm3610 = vmor %vm3608, %vm3609
        %v3611 = vsel %vm3610, %v3602, %v3607
        %v3612 = vmul.f32 %v3563, %v3591
        %v3613 = vmul.f32 %v3564, %v3601
        %v3614 = vmul.f32 %v3565, %v3611
        %v3615 = vperm.slane %v2653, 2
        %v3616 = vmul.f32 %v3612, %v3615
        %v3617 = vmul.f32 %v3613, %v3615
        %v3618 = vmul.f32 %v3614, %v3615
        %v3619 = vperm.slane %v2653, 3
        %v3620 = vadd.f32 %v3616, %v3619
        %v3621 = vadd.f32 %v3617, %v3619
        %v3622 = vadd.f32 %v3618, %v3619
        %v3623 = vld [vmem:[%s19] sm:$0x1]
        %v3625 = vsel %vm3080, %v3623, 0
        %v3628 = vsel %vm2129, %v3622, 0
        %3630 = vmatpush.msra.mxu0 0.0
        %3631 = vmatpush.msra.mxu0 0.0
        %3632 = vmatpush.msra.mxu0 0.0
        %3633 = vmatpush.msra.mxu0 0.0
        %3634 = vmatpush.msra.mxu0 0.0
        %3635 = vmatpush.msra.mxu0 0.0
        %3636 = vmatpush.msra.mxu0 0.0
        %3637 = vmatpush.msra.mxu0 0.0
        %3638 = vmatpush.msra.mxu0 0.0
        %3639 = vmatpush.msra.mxu0 0.0
        %3640 = vmatpush.msra.mxu0 0.0
        %3641 = vmatpush.msra.mxu0 0.0
        %3642 = vmatpush.msra.mxu0 0.0
        %3643 = vmatpush.msra.mxu0 %v3628
        %3644 = vmatpush.msra.mxu0 %v3621
        %3645 = vmatpush.msra.mxu0 %v3620
        %3646 = vmatmul.f32.gmra.mxu0 %v3625
        %v3647 = vpop.f32.mrf.mxu0
        %v3648 = vadd.f32 0.0, %v3647
        %3649 = vdwg.mxu0
        %3650 = vst [vmem:[%s702] sm:$0x1] %v3648
        %s3651 = sand.u32 %s470, 1
        %s3652 = scalar_lea.sflag [#allocation4], %s3651
        %s3653 = sand.u32 %s470, 1
        %s3654 = scalar_lea.vmem [#allocation11], %s3653
        // Predicated region
        $region121: #{tpu_custom_call.1} parent=99 // pred_check
          %p3655 = pneg %p480
        $region122: #{tpu_custom_call.1} parent=99 // pred_check_branch
          %3657 = sbr.rel (%p3655) target = $region124
        $region123: #{tpu_custom_call.1} parent=99 // pred_region
          %3659 = vsyncadd %s3652, 0
          %s3660 = scalar_lea.hbm %s20, %s37
          %s3662 = sshll.u32 %s3654, 4
          %s3663 = int_to_ptr.vmem [resolvable:$true] %s3662
          %s3664 = sshll.u32 %s3660, 4
          %s3665 = int_to_ptr.hbm [resolvable:$true] %s3664
          %3667 = dma.vmem_to_hbm [thread:$0]  %s3663, 16, %s3665, %s3652
        $region124: #{tpu_custom_call.1} parent=99 // pred_fallthru
          _
      $region100: #{tpu_custom_call.1} parent=5 // pred_fallthru
        _
      %p3668 = scmp.le.s32.totalorder 2, %s32
      // Predicated region
      $region125: #{tpu_custom_call.1} parent=5 // pred_check
        %p3669 = pneg %p3668
      $region126: #{tpu_custom_call.1} parent=5 // pred_check_branch
        %3671 = sbr.rel (%p3669) target = $region128
      $region127: #{tpu_custom_call.1} parent=5 // pred_region
        %s3672 = ssub.s32 %s32, 2
        // Predicated region
        $region129: #{tpu_custom_call.1} parent=127 // pred_check
          %p3673 = pneg %p486
        $region130: #{tpu_custom_call.1} parent=127 // pred_check_branch
          %3675 = sbr.rel (%p3673) target = $region132
        $region131: #{tpu_custom_call.1} parent=127 // pred_region
          %s3676 = sand.u32 %s471, 1
          %s3677 = scalar_lea.sflag [#allocation4], %s3676
          %s3678 = sand.u32 %s471, 1
          %s3679 = scalar_lea.vmem [#allocation11], %s3678
          %3681 = dma.done %s3677, 16
        $region132: #{tpu_custom_call.1} parent=127 // pred_fallthru
          _
      $region128: #{tpu_custom_call.1} parent=5 // pred_fallthru
        _
    $region6: #{tpu_custom_call.1} parent=1 // loop_footer
      %s36 = sadd.s32 1, %s32
    $region7: #{tpu_custom_call.1} parent=1 // loop_footer_branch
      %31 = sbr.rel target = $region3
    $region8: #{tpu_custom_call.1} parent=1 // loop_exit
      _
    %3682 = vsyncpa [#allocation3], 1
    %s3683 = scalar_lea.sflag [#allocation3], 1
    %3684 = vsyncpa %s3683, 1
    %3685 = vsyncpa [#allocation6], 1
    %3686 = vsyncpa [#allocation9], 1
    %3687 = vsyncpa [#allocation4], 1
    %s3688 = scalar_lea.sflag [#allocation4], 1
    %3689 = vsyncpa %s3688, 1

</llo_original>
